<compile_context>
chip_gen: v7x
topology: tpu7x:2x2x1
jax: 0.10.0
libtpu: 0.0.40
codegen_flags: <defaults>
</compile_context>

<pallas_src>
import functools

import jax
import jax.numpy as jnp
from jax import lax
from jax.experimental import pallas as pl
from jax.experimental.pallas import tpu as pltpu


def _lstm_cell_fused(pre, c_prev, hidden):
    """LSTM cell on a fused (B, 4H) pre-activation with lanes packed [i|f|o|g]."""
    sg = jax.nn.sigmoid(pre[:, 0:3 * hidden])        # one EUP slab for i,f,o
    i = sg[:, 0:hidden]
    f = sg[:, hidden:2 * hidden]
    o = sg[:, 2 * hidden:3 * hidden]
    g = jnp.tanh(pre[:, 3 * hidden:4 * hidden])
    c = f * c_prev + i * g
    h = o * jnp.tanh(c)
    return h, c


def _decoder_kernel(x_ref,
                    r1_wi0_ref, r1_wh0_ref, r1_b0_ref,
                    r1_w1_ref, r1_b1_ref,
                    w_qkv_ref, b_qkv_ref, wo_ref, bo_ref,
                    r2_wi0_ref, r2_wh0_ref, r2_b0_ref,
                    r2_w1_ref, r2_b1_ref,
                    w_out_ref, b_out_ref,
                    out_ref,
                    *, seq_len, num_heads):
    f32 = jnp.float32
    B, D = x_ref.shape
    T = seq_len
    TB = T * B
    H2 = r2_wh0_ref.shape[0]
    dh = D // num_heads

    # ---------------- rnn1: 2-layer LSTM, D -> D (fused gates) -------------
    x = x_ref[...]                                                     # (B, D)
    # every timestep sees the same x -> hoist layer-0 input projection + bias
    xg0 = jnp.dot(x, r1_wi0_ref[...], preferred_element_type=f32) + r1_b0_ref[...]
    r1_wh0 = r1_wh0_ref[...]                                           # (D, 4D)
    r1_w1 = r1_w1_ref[...]                                             # (2D, 4D)
    b1 = r1_b1_ref[...]                                                # (1, 4D)

    z = jnp.zeros((B, D), f32)
    h0, c0, h1, c1 = z, z, z, z
    h1_steps = []
    for _ in range(T):                       # fully unrolled, no scratch stores
        # layer 0: single fused recurrent matmul on the sequential chain
        pre0 = xg0 + jnp.dot(h0, r1_wh0, preferred_element_type=f32)
        h0, c0 = _lstm_cell_fused(pre0, c0, D)
        # layer 1: input + recurrent fused into one [h0|h1] @ (2D,4D) matmul
        pre1 = b1 + jnp.dot(jnp.concatenate([h0, h1], axis=1), r1_w1,
                            preferred_element_type=f32)
        h1, c1 = _lstm_cell_fused(pre1, c1, D)
        h1_steps.append(h1)

    # relu1; time-major flat activations: row = t*B + b
    xa = jnp.maximum(jnp.concatenate(h1_steps, axis=0), 0.0)           # (T*B, D)

    # -------- attention: fused QKV / fused out-proj, cross-batch mask ------
    # custom q/k/v weights + MHA in-projections + softmax scale pre-folded
    qkv = jnp.dot(xa, w_qkv_ref[...], preferred_element_type=f32) + b_qkv_ref[...]

    # additive mask: rows of xa from different batch elements never attend
    rows = lax.broadcasted_iota(jnp.int32, (TB, TB), 0)
    cols = lax.broadcasted_iota(jnp.int32, (TB, TB), 1)
    neg_mask = jnp.where((rows % B) == (cols % B),
                         jnp.float32(0.0), jnp.float32(-1e30))

    ctx_heads = []
    for h in range(num_heads):               # plain 2-D dots, zero relayouts
        q = qkv[:, h * dh:(h + 1) * dh]                                # (TB, dh)
        k = qkv[:, D + h * dh:D + (h + 1) * dh]
        v = qkv[:, 2 * D + h * dh:2 * D + (h + 1) * dh]
        s = jnp.einsum('qd,kd->qk', q, k, preferred_element_type=f32) + neg_mask
        s = s - jnp.max(s, axis=-1, keepdims=True)
        pr = jnp.exp(s)
        pr = pr * pl.reciprocal(jnp.sum(pr, axis=-1, keepdims=True), approx=True)
        ctx_heads.append(jnp.dot(pr, v, preferred_element_type=f32))  # (TB, dh)
    ctx = jnp.concatenate(ctx_heads, axis=1)                           # (TB, D)
    a_flat = jnp.maximum(jnp.dot(ctx, wo_ref[...], preferred_element_type=f32)
                         + bo_ref[...], 0.0)                           # relu2

    # ---------------- rnn2: 2-layer LSTM, D -> 2D (fused gates) ------------
    # hoist all T layer-0 input projections into one matmul (time-major rows)
    ag = jnp.dot(a_flat, r2_wi0_ref[...], preferred_element_type=f32) + r2_b0_ref[...]
    r2_wh0 = r2_wh0_ref[...]                                           # (H2, 4H2)
    r2_w1 = r2_w1_ref[...]                                             # (2H2, 4H2)
    b2 = r2_b1_ref[...]                                                # (1, 4H2)

    z2 = jnp.zeros((B, H2), f32)
    h0, c0, h1, c1 = z2, z2, z2, z2
    for t in range(T):                        # output sequence never stored
        pre0 = ag[t * B:(t + 1) * B, :] + jnp.dot(h0, r2_wh0,
                                                  preferred_element_type=f32)
        h0, c0 = _lstm_cell_fused(pre0, c0, H2)
        pre1 = b2 + jnp.dot(jnp.concatenate([h0, h1], axis=1), r2_w1,
                            preferred_element_type=f32)
        h1, c1 = _lstm_cell_fused(pre1, c1, H2)

    # ---------------- relu3 -> output linear --------------------------------
    hN = jnp.maximum(h1, 0.0)
    out_ref[...] = jnp.dot(hN, w_out_ref[...], preferred_element_type=f32) + b_out_ref[...]


def decoder_forward(x, p, seq_len, num_heads=4):
    B, _ = x.shape
    nf = p['w_out'].shape[1]
    vmem = pl.BlockSpec(memory_space=pltpu.MemorySpace.VMEM)
    args = (x,
            p['r1_wi0'], p['r1_wh0'], p['r1_b0'],
            p['r1_w1'], p['r1_b1'],
            p['w_qkv'], p['b_qkv'], p['wo'], p['bo'],
            p['r2_wi0'], p['r2_wh0'], p['r2_b0'],
            p['r2_w1'], p['r2_b1'],
            p['w_out'], p['b_out'])
    kern = functools.partial(_decoder_kernel, seq_len=seq_len, num_heads=num_heads)
    # Everything (<1 MiB) is VMEM-resident; no grid / tiling / pipelining needed.
    return pl.pallas_call(
        kern,
        out_shape=jax.ShapeDtypeStruct((B, nf), jnp.float32),
        in_specs=[vmem] * len(args),
        out_specs=vmem,
    )(*args)


# ----------------------------------------------------------------------------
# Parameter init (synthetic, PyTorch layouts) + kernel-ready repacking
# ----------------------------------------------------------------------------
def init_decoder_params(key, input_dim, n_features, num_heads=4, scale=0.1):
    D = input_dim
    H = 2 * D
    dh = D // num_heads
    keys = iter(jax.random.split(key, 64))

    def nrm(shape):
        return scale * jax.random.normal(next(keys), shape, dtype=jnp.float32)

    def lstm_layer(in_dim, hidden):              # PyTorch layout
        return (nrm((4 * hidden, in_dim)), nrm((4 * hidden, hidden)),
                nrm((4 * hidden,)), nrm((4 * hidden,)))

    raw = {
        'rnn1': [lstm_layer(D, D), lstm_layer(D, D)],
        'rnn2': [lstm_layer(D, H), lstm_layer(H, H)],
        'wq': nrm((D, D)), 'wk': nrm((D, D)), 'wv': nrm((D, D)),
        'in_w': nrm((3 * D, D)), 'in_b': nrm((3 * D,)),
        'out_w': nrm((D, D)), 'out_b': nrm((D,)),
        'lin_w': nrm((n_features, H)), 'lin_b': nrm((n_features,)),
    }

    def to_ifog(m):
        # last axis packed [i|f|g|o] (PyTorch) -> [i|f|o|g] so the three
        # sigmoid gates are one contiguous lane slab in the kernel
        i, f, g, o = jnp.split(m, 4, axis=-1)
        return jnp.concatenate([i, f, o, g], axis=-1)

    def fuse_l0(w_ih, w_hh, b_ih, b_hh):
        # layer-0: keep input-weight and recurrent-weight fused over gates only
        return (to_ifog(w_ih.T),                               # (In, 4H)
                to_ifog(w_hh.T),                               # (H, 4H)
                to_ifog((b_ih + b_hh).reshape(1, -1)))         # (1, 4H)

    def fuse_l1(w_ih, w_hh, b_ih, b_hh):
        # layer-1: stack input + recurrent weights -> one [h0|h1] matmul/step
        w = jnp.concatenate([w_ih.T, w_hh.T], axis=0)          # (2*In, 4H)
        return to_ifog(w), to_ifog((b_ih + b_hh).reshape(1, -1))

    p = {}
    p['r1_wi0'], p['r1_wh0'], p['r1_b0'] = fuse_l0(*raw['rnn1'][0])
    p['r1_w1'], p['r1_b1'] = fuse_l1(*raw['rnn1'][1])
    p['r2_wi0'], p['r2_wh0'], p['r2_b0'] = fuse_l0(*raw['rnn2'][0])
    p['r2_w1'], p['r2_b1'] = fuse_l1(*raw['rnn2'][1])

    # Fold custom q/k/v weights into the MHA in-projections, fold the softmax
    # scale into q, and fuse all three into one (D, 3D) QKV weight.
    Wq_in, Wk_in, Wv_in = jnp.split(raw['in_w'], 3, axis=0)
    bq, bk, bv = jnp.split(raw['in_b'], 3)
    sm_scale = 1.0 / float(dh) ** 0.5
    FQ = (raw['wq'] @ Wq_in.T) * sm_scale
    FK = raw['wk'] @ Wk_in.T
    FV = raw['wv'] @ Wv_in.T
    p['w_qkv'] = jnp.concatenate([FQ, FK, FV], axis=1)                  # (D, 3D)
    p['b_qkv'] = jnp.concatenate([bq * sm_scale, bk, bv]).reshape(1, 3 * D)
    p['wo'] = raw['out_w'].T                                            # (D, D)
    p['bo'] = raw['out_b'].reshape(1, D)

    p['w_out'] = raw['lin_w'].T
    p['b_out'] = raw['lin_b'].reshape(1, n_features)
    return p, raw


# ----------------------------------------------------------------------------
# Pure-JAX reference built from the raw (unfolded) PyTorch-layout parameters
# ----------------------------------------------------------------------------
def decoder_reference(x, raw, seq_len, num_heads=4):
    B, D = x.shape

    def lstm2(xs, layers):
        out, hT_last = xs, None
        for (w_ih, w_hh, b_ih, b_hh) in layers:
            hidden = w_hh.shape[1]

            def step(carry, x_t):
                h, c = carry
                gates = x_t @ w_ih.T + h @ w_hh.T + b_ih + b_hh
                i, f, g, o = jnp.split(gates, 4, axis=-1)
                c = jax.nn.sigmoid(f) * c + jax.nn.sigmoid(i) * jnp.tanh(g)
                h = jax.nn.sigmoid(o) * jnp.tanh(c)
                return (h, c), h

            init = (jnp.zeros((B, hidden), jnp.float32),
                    jnp.zeros((B, hidden), jnp.float32))
            (hT, _), ys = lax.scan(step, init, jnp.swapaxes(out, 0, 1))
            out, hT_last = jnp.swapaxes(ys, 0, 1), hT
        return out, hT_last

    xs = jnp.broadcast_to(x[:, None, :], (B, seq_len, D))
    y1, _ = lstm2(xs, raw['rnn1'])
    y1 = jax.nn.relu(y1)

    q, k, v = y1 @ raw['wq'], y1 @ raw['wk'], y1 @ raw['wv']
    Wq_in, Wk_in, Wv_in = jnp.split(raw['in_w'], 3, axis=0)
    bq, bk, bv = jnp.split(raw['in_b'], 3)
    q, k, v = q @ Wq_in.T + bq, k @ Wk_in.T + bk, v @ Wv_in.T + bv
    dh = D // num_heads

    def heads(t):
        return jnp.transpose(t.reshape(B, seq_len, num_heads, dh), (0, 2, 1, 3))

    qh, kh, vh = heads(q), heads(k), heads(v)
    s = jnp.einsum('bhqd,bhkd->bhqk', qh, kh) / jnp.sqrt(jnp.float32(dh))
    pr = jax.nn.softmax(s, axis=-1)
    ctx = jnp.einsum('bhqk,bhkd->bhqd', pr, vh)
    ctx = jnp.transpose(ctx, (0, 2, 1, 3)).reshape(B, seq_len, D)
    att = jax.nn.relu(ctx @ raw['out_w'].T + raw['out_b'])

    _, hN = lstm2(att, raw['rnn2'])
    hN = jax.nn.relu(hN)
    return hN @ raw['lin_w'].T + raw['lin_b']


if __name__ == "__main__":
    seq_len, input_dim, n_features, batch = 8, 32, 1, 2   # input_dim % 4 heads == 0
    key = jax.random.PRNGKey(0)
    kp, kx = jax.random.split(key)

    params, raw = init_decoder_params(kp, input_dim, n_features)
    x = jax.random.normal(kx, (batch, input_dim), dtype=jnp.float32)

    out = decoder_forward(x, params, seq_len)
    out = jax.block_until_ready(out)

    assert out.shape == (batch, n_features), out.shape
    assert bool(jnp.all(jnp.isfinite(out)))

    # Cross-check against the plain-JAX reference (tolerance covers folded-weight
    # reassociation, matmul precision defaults and the approximate reciprocal).
    ref = decoder_reference(x, raw, seq_len)
    max_diff = float(jnp.max(jnp.abs(out - ref)))
    assert max_diff < 2e-2, max_diff

    print("KERNEL_OK")
</pallas_src>

<mosaic_0001>
module attributes {stable_mosaic.version = 11 : i64} {
  func.func @_decoder_kernel(%arg0: memref<2x32xf32, #tpu.memory_space<vmem>>, %arg1: memref<32x128xf32, #tpu.memory_space<vmem>>, %arg2: memref<32x128xf32, #tpu.memory_space<vmem>>, %arg3: memref<1x128xf32, #tpu.memory_space<vmem>>, %arg4: memref<64x128xf32, #tpu.memory_space<vmem>>, %arg5: memref<1x128xf32, #tpu.memory_space<vmem>>, %arg6: memref<32x96xf32, #tpu.memory_space<vmem>>, %arg7: memref<1x96xf32, #tpu.memory_space<vmem>>, %arg8: memref<32x32xf32, #tpu.memory_space<vmem>>, %arg9: memref<1x32xf32, #tpu.memory_space<vmem>>, %arg10: memref<32x256xf32, #tpu.memory_space<vmem>>, %arg11: memref<64x256xf32, #tpu.memory_space<vmem>>, %arg12: memref<1x256xf32, #tpu.memory_space<vmem>>, %arg13: memref<128x256xf32, #tpu.memory_space<vmem>>, %arg14: memref<1x256xf32, #tpu.memory_space<vmem>>, %arg15: memref<64x1xf32, #tpu.memory_space<vmem>>, %arg16: memref<1x1xf32, #tpu.memory_space<vmem>>, %arg17: memref<2x1xf32, #tpu.memory_space<vmem>>) attributes {dimension_semantics = [], scalar_prefetch = 0 : i64, scratch_operands = 0 : i64, tpu.core_type = #tpu.core_type<tc>} {
    %c0 = arith.constant 0 : index
    %c0_0 = arith.constant 0 : index
    %0 = vector.load %arg0[%c0, %c0_0] : memref<2x32xf32, #tpu.memory_space<vmem>>, vector<2x32xf32>
    %c0_1 = arith.constant 0 : index
    %c0_2 = arith.constant 0 : index
    %1 = vector.load %arg1[%c0_1, %c0_2] : memref<32x128xf32, #tpu.memory_space<vmem>>, vector<32x128xf32>
    %cst = arith.constant dense<0.000000e+00> : vector<2x128xf32>
    %2 = tpu.matmul %0, %1, %cst {dimension_numbers = #tpu.dot_dimension_numbers<[1], [0], [0], [1], [0, 0, 1, 1], [], []>} : vector<2x32xf32>, vector<32x128xf32>, vector<2x128xf32> -> vector<2x128xf32>
    %c0_3 = arith.constant 0 : index
    %c0_4 = arith.constant 0 : index
    %3 = vector.load %arg3[%c0_3, %c0_4] : memref<1x128xf32, #tpu.memory_space<vmem>>, vector<1x128xf32>
    %4 = vector.broadcast %3 : vector<1x128xf32> to vector<2x128xf32>
    %5 = arith.addf %2, %4 : vector<2x128xf32>
    %c0_5 = arith.constant 0 : index
    %c0_6 = arith.constant 0 : index
    %6 = vector.load %arg2[%c0_5, %c0_6] : memref<32x128xf32, #tpu.memory_space<vmem>>, vector<32x128xf32>
    %c0_7 = arith.constant 0 : index
    %c0_8 = arith.constant 0 : index
    %7 = vector.load %arg4[%c0_7, %c0_8] : memref<64x128xf32, #tpu.memory_space<vmem>>, vector<64x128xf32>
    %c0_9 = arith.constant 0 : index
    %c0_10 = arith.constant 0 : index
    %8 = vector.load %arg5[%c0_9, %c0_10] : memref<1x128xf32, #tpu.memory_space<vmem>>, vector<1x128xf32>
    %cst_11 = arith.constant 0.000000e+00 : f32
    %9 = vector.broadcast %cst_11 : f32 to vector<2x32xf32>
    %cst_12 = arith.constant dense<0.000000e+00> : vector<2x128xf32>
    %10 = tpu.matmul %9, %6, %cst_12 {dimension_numbers = #tpu.dot_dimension_numbers<[1], [0], [0], [1], [0, 0, 1, 1], [], []>} : vector<2x32xf32>, vector<32x128xf32>, vector<2x128xf32> -> vector<2x128xf32>
    %11 = arith.addf %5, %10 : vector<2x128xf32>
    %12 = vector.extract_strided_slice %11 {offsets = [0, 0], sizes = [2, 96], strides = [1, 1]} : vector<2x128xf32> to vector<2x96xf32>
    %13 = arith.negf %12 : vector<2x96xf32>
    %14 = math.exp %13 : vector<2x96xf32>
    %cst_13 = arith.constant 1.000000e+00 : f32
    %15 = vector.broadcast %cst_13 : f32 to vector<2x96xf32>
    %16 = arith.addf %15, %14 : vector<2x96xf32>
    %17 = arith.divf %15, %16 : vector<2x96xf32>
    %18 = vector.extract_strided_slice %17 {offsets = [0, 0], sizes = [2, 32], strides = [1, 1]} : vector<2x96xf32> to vector<2x32xf32>
    %19 = vector.extract_strided_slice %17 {offsets = [0, 32], sizes = [2, 32], strides = [1, 1]} : vector<2x96xf32> to vector<2x32xf32>
    %20 = vector.extract_strided_slice %17 {offsets = [0, 64], sizes = [2, 32], strides = [1, 1]} : vector<2x96xf32> to vector<2x32xf32>
    %21 = vector.extract_strided_slice %11 {offsets = [0, 96], sizes = [2, 32], strides = [1, 1]} : vector<2x128xf32> to vector<2x32xf32>
    %22 = math.tanh %21 : vector<2x32xf32>
    %23 = arith.mulf %19, %9 : vector<2x32xf32>
    %24 = arith.mulf %18, %22 : vector<2x32xf32>
    %25 = arith.addf %23, %24 : vector<2x32xf32>
    %26 = math.tanh %25 : vector<2x32xf32>
    %27 = arith.mulf %20, %26 : vector<2x32xf32>
    %28 = tpu.concatenate %27, %9 in 1 : vector<2x32xf32>, vector<2x32xf32> -> vector<2x64xf32>
    %cst_14 = arith.constant dense<0.000000e+00> : vector<2x128xf32>
    %29 = tpu.matmul %28, %7, %cst_14 {dimension_numbers = #tpu.dot_dimension_numbers<[1], [0], [0], [1], [0, 0, 1, 1], [], []>} : vector<2x64xf32>, vector<64x128xf32>, vector<2x128xf32> -> vector<2x128xf32>
    %30 = vector.broadcast %8 : vector<1x128xf32> to vector<2x128xf32>
    %31 = arith.addf %30, %29 : vector<2x128xf32>
    %32 = vector.extract_strided_slice %31 {offsets = [0, 0], sizes = [2, 96], strides = [1, 1]} : vector<2x128xf32> to vector<2x96xf32>
    %33 = arith.negf %32 : vector<2x96xf32>
    %34 = math.exp %33 : vector<2x96xf32>
    %cst_15 = arith.constant 1.000000e+00 : f32
    %35 = vector.broadcast %cst_15 : f32 to vector<2x96xf32>
    %36 = arith.addf %35, %34 : vector<2x96xf32>
    %37 = arith.divf %35, %36 : vector<2x96xf32>
    %38 = vector.extract_strided_slice %37 {offsets = [0, 0], sizes = [2, 32], strides = [1, 1]} : vector<2x96xf32> to vector<2x32xf32>
    %39 = vector.extract_strided_slice %37 {offsets = [0, 32], sizes = [2, 32], strides = [1, 1]} : vector<2x96xf32> to vector<2x32xf32>
    %40 = vector.extract_strided_slice %37 {offsets = [0, 64], sizes = [2, 32], strides = [1, 1]} : vector<2x96xf32> to vector<2x32xf32>
    %41 = vector.extract_strided_slice %31 {offsets = [0, 96], sizes = [2, 32], strides = [1, 1]} : vector<2x128xf32> to vector<2x32xf32>
    %42 = math.tanh %41 : vector<2x32xf32>
    %43 = arith.mulf %39, %9 : vector<2x32xf32>
    %44 = arith.mulf %38, %42 : vector<2x32xf32>
    %45 = arith.addf %43, %44 : vector<2x32xf32>
    %46 = math.tanh %45 : vector<2x32xf32>
    %47 = arith.mulf %40, %46 : vector<2x32xf32>
    %cst_16 = arith.constant dense<0.000000e+00> : vector<2x128xf32>
    %48 = tpu.matmul %27, %6, %cst_16 {dimension_numbers = #tpu.dot_dimension_numbers<[1], [0], [0], [1], [0, 0, 1, 1], [], []>} : vector<2x32xf32>, vector<32x128xf32>, vector<2x128xf32> -> vector<2x128xf32>
    %49 = arith.addf %5, %48 : vector<2x128xf32>
    %50 = vector.extract_strided_slice %49 {offsets = [0, 0], sizes = [2, 96], strides = [1, 1]} : vector<2x128xf32> to vector<2x96xf32>
    %51 = arith.negf %50 : vector<2x96xf32>
    %52 = math.exp %51 : vector<2x96xf32>
    %cst_17 = arith.constant 1.000000e+00 : f32
    %53 = vector.broadcast %cst_17 : f32 to vector<2x96xf32>
    %54 = arith.addf %53, %52 : vector<2x96xf32>
    %55 = arith.divf %53, %54 : vector<2x96xf32>
    %56 = vector.extract_strided_slice %55 {offsets = [0, 0], sizes = [2, 32], strides = [1, 1]} : vector<2x96xf32> to vector<2x32xf32>
    %57 = vector.extract_strided_slice %55 {offsets = [0, 32], sizes = [2, 32], strides = [1, 1]} : vector<2x96xf32> to vector<2x32xf32>
    %58 = vector.extract_strided_slice %55 {offsets = [0, 64], sizes = [2, 32], strides = [1, 1]} : vector<2x96xf32> to vector<2x32xf32>
    %59 = vector.extract_strided_slice %49 {offsets = [0, 96], sizes = [2, 32], strides = [1, 1]} : vector<2x128xf32> to vector<2x32xf32>
    %60 = math.tanh %59 : vector<2x32xf32>
    %61 = arith.mulf %57, %25 : vector<2x32xf32>
    %62 = arith.mulf %56, %60 : vector<2x32xf32>
    %63 = arith.addf %61, %62 : vector<2x32xf32>
    %64 = math.tanh %63 : vector<2x32xf32>
    %65 = arith.mulf %58, %64 : vector<2x32xf32>
    %66 = tpu.concatenate %65, %47 in 1 : vector<2x32xf32>, vector<2x32xf32> -> vector<2x64xf32>
    %cst_18 = arith.constant dense<0.000000e+00> : vector<2x128xf32>
    %67 = tpu.matmul %66, %7, %cst_18 {dimension_numbers = #tpu.dot_dimension_numbers<[1], [0], [0], [1], [0, 0, 1, 1], [], []>} : vector<2x64xf32>, vector<64x128xf32>, vector<2x128xf32> -> vector<2x128xf32>
    %68 = vector.broadcast %8 : vector<1x128xf32> to vector<2x128xf32>
    %69 = arith.addf %68, %67 : vector<2x128xf32>
    %70 = vector.extract_strided_slice %69 {offsets = [0, 0], sizes = [2, 96], strides = [1, 1]} : vector<2x128xf32> to vector<2x96xf32>
    %71 = arith.negf %70 : vector<2x96xf32>
    %72 = math.exp %71 : vector<2x96xf32>
    %cst_19 = arith.constant 1.000000e+00 : f32
    %73 = vector.broadcast %cst_19 : f32 to vector<2x96xf32>
    %74 = arith.addf %73, %72 : vector<2x96xf32>
    %75 = arith.divf %73, %74 : vector<2x96xf32>
    %76 = vector.extract_strided_slice %75 {offsets = [0, 0], sizes = [2, 32], strides = [1, 1]} : vector<2x96xf32> to vector<2x32xf32>
    %77 = vector.extract_strided_slice %75 {offsets = [0, 32], sizes = [2, 32], strides = [1, 1]} : vector<2x96xf32> to vector<2x32xf32>
    %78 = vector.extract_strided_slice %75 {offsets = [0, 64], sizes = [2, 32], strides = [1, 1]} : vector<2x96xf32> to vector<2x32xf32>
    %79 = vector.extract_strided_slice %69 {offsets = [0, 96], sizes = [2, 32], strides = [1, 1]} : vector<2x128xf32> to vector<2x32xf32>
    %80 = math.tanh %79 : vector<2x32xf32>
    %81 = arith.mulf %77, %45 : vector<2x32xf32>
    %82 = arith.mulf %76, %80 : vector<2x32xf32>
    %83 = arith.addf %81, %82 : vector<2x32xf32>
    %84 = math.tanh %83 : vector<2x32xf32>
    %85 = arith.mulf %78, %84 : vector<2x32xf32>
    %cst_20 = arith.constant dense<0.000000e+00> : vector<2x128xf32>
    %86 = tpu.matmul %65, %6, %cst_20 {dimension_numbers = #tpu.dot_dimension_numbers<[1], [0], [0], [1], [0, 0, 1, 1], [], []>} : vector<2x32xf32>, vector<32x128xf32>, vector<2x128xf32> -> vector<2x128xf32>
    %87 = arith.addf %5, %86 : vector<2x128xf32>
    %88 = vector.extract_strided_slice %87 {offsets = [0, 0], sizes = [2, 96], strides = [1, 1]} : vector<2x128xf32> to vector<2x96xf32>
    %89 = arith.negf %88 : vector<2x96xf32>
    %90 = math.exp %89 : vector<2x96xf32>
    %cst_21 = arith.constant 1.000000e+00 : f32
    %91 = vector.broadcast %cst_21 : f32 to vector<2x96xf32>
    %92 = arith.addf %91, %90 : vector<2x96xf32>
    %93 = arith.divf %91, %92 : vector<2x96xf32>
    %94 = vector.extract_strided_slice %93 {offsets = [0, 0], sizes = [2, 32], strides = [1, 1]} : vector<2x96xf32> to vector<2x32xf32>
    %95 = vector.extract_strided_slice %93 {offsets = [0, 32], sizes = [2, 32], strides = [1, 1]} : vector<2x96xf32> to vector<2x32xf32>
    %96 = vector.extract_strided_slice %93 {offsets = [0, 64], sizes = [2, 32], strides = [1, 1]} : vector<2x96xf32> to vector<2x32xf32>
    %97 = vector.extract_strided_slice %87 {offsets = [0, 96], sizes = [2, 32], strides = [1, 1]} : vector<2x128xf32> to vector<2x32xf32>
    %98 = math.tanh %97 : vector<2x32xf32>
    %99 = arith.mulf %95, %63 : vector<2x32xf32>
    %100 = arith.mulf %94, %98 : vector<2x32xf32>
    %101 = arith.addf %99, %100 : vector<2x32xf32>
    %102 = math.tanh %101 : vector<2x32xf32>
    %103 = arith.mulf %96, %102 : vector<2x32xf32>
    %104 = tpu.concatenate %103, %85 in 1 : vector<2x32xf32>, vector<2x32xf32> -> vector<2x64xf32>
    %cst_22 = arith.constant dense<0.000000e+00> : vector<2x128xf32>
    %105 = tpu.matmul %104, %7, %cst_22 {dimension_numbers = #tpu.dot_dimension_numbers<[1], [0], [0], [1], [0, 0, 1, 1], [], []>} : vector<2x64xf32>, vector<64x128xf32>, vector<2x128xf32> -> vector<2x128xf32>
    %106 = vector.broadcast %8 : vector<1x128xf32> to vector<2x128xf32>
    %107 = arith.addf %106, %105 : vector<2x128xf32>
    %108 = vector.extract_strided_slice %107 {offsets = [0, 0], sizes = [2, 96], strides = [1, 1]} : vector<2x128xf32> to vector<2x96xf32>
    %109 = arith.negf %108 : vector<2x96xf32>
    %110 = math.exp %109 : vector<2x96xf32>
    %cst_23 = arith.constant 1.000000e+00 : f32
    %111 = vector.broadcast %cst_23 : f32 to vector<2x96xf32>
    %112 = arith.addf %111, %110 : vector<2x96xf32>
    %113 = arith.divf %111, %112 : vector<2x96xf32>
    %114 = vector.extract_strided_slice %113 {offsets = [0, 0], sizes = [2, 32], strides = [1, 1]} : vector<2x96xf32> to vector<2x32xf32>
    %115 = vector.extract_strided_slice %113 {offsets = [0, 32], sizes = [2, 32], strides = [1, 1]} : vector<2x96xf32> to vector<2x32xf32>
    %116 = vector.extract_strided_slice %113 {offsets = [0, 64], sizes = [2, 32], strides = [1, 1]} : vector<2x96xf32> to vector<2x32xf32>
    %117 = vector.extract_strided_slice %107 {offsets = [0, 96], sizes = [2, 32], strides = [1, 1]} : vector<2x128xf32> to vector<2x32xf32>
    %118 = math.tanh %117 : vector<2x32xf32>
    %119 = arith.mulf %115, %83 : vector<2x32xf32>
    %120 = arith.mulf %114, %118 : vector<2x32xf32>
    %121 = arith.addf %119, %120 : vector<2x32xf32>
    %122 = math.tanh %121 : vector<2x32xf32>
    %123 = arith.mulf %116, %122 : vector<2x32xf32>
    %cst_24 = arith.constant dense<0.000000e+00> : vector<2x128xf32>
    %124 = tpu.matmul %103, %6, %cst_24 {dimension_numbers = #tpu.dot_dimension_numbers<[1], [0], [0], [1], [0, 0, 1, 1], [], []>} : vector<2x32xf32>, vector<32x128xf32>, vector<2x128xf32> -> vector<2x128xf32>
    %125 = arith.addf %5, %124 : vector<2x128xf32>
    %126 = vector.extract_strided_slice %125 {offsets = [0, 0], sizes = [2, 96], strides = [1, 1]} : vector<2x128xf32> to vector<2x96xf32>
    %127 = arith.negf %126 : vector<2x96xf32>
    %128 = math.exp %127 : vector<2x96xf32>
    %cst_25 = arith.constant 1.000000e+00 : f32
    %129 = vector.broadcast %cst_25 : f32 to vector<2x96xf32>
    %130 = arith.addf %129, %128 : vector<2x96xf32>
    %131 = arith.divf %129, %130 : vector<2x96xf32>
    %132 = vector.extract_strided_slice %131 {offsets = [0, 0], sizes = [2, 32], strides = [1, 1]} : vector<2x96xf32> to vector<2x32xf32>
    %133 = vector.extract_strided_slice %131 {offsets = [0, 32], sizes = [2, 32], strides = [1, 1]} : vector<2x96xf32> to vector<2x32xf32>
    %134 = vector.extract_strided_slice %131 {offsets = [0, 64], sizes = [2, 32], strides = [1, 1]} : vector<2x96xf32> to vector<2x32xf32>
    %135 = vector.extract_strided_slice %125 {offsets = [0, 96], sizes = [2, 32], strides = [1, 1]} : vector<2x128xf32> to vector<2x32xf32>
    %136 = math.tanh %135 : vector<2x32xf32>
    %137 = arith.mulf %133, %101 : vector<2x32xf32>
    %138 = arith.mulf %132, %136 : vector<2x32xf32>
    %139 = arith.addf %137, %138 : vector<2x32xf32>
    %140 = math.tanh %139 : vector<2x32xf32>
    %141 = arith.mulf %134, %140 : vector<2x32xf32>
    %142 = tpu.concatenate %141, %123 in 1 : vector<2x32xf32>, vector<2x32xf32> -> vector<2x64xf32>
    %cst_26 = arith.constant dense<0.000000e+00> : vector<2x128xf32>
    %143 = tpu.matmul %142, %7, %cst_26 {dimension_numbers = #tpu.dot_dimension_numbers<[1], [0], [0], [1], [0, 0, 1, 1], [], []>} : vector<2x64xf32>, vector<64x128xf32>, vector<2x128xf32> -> vector<2x128xf32>
    %144 = vector.broadcast %8 : vector<1x128xf32> to vector<2x128xf32>
    %145 = arith.addf %144, %143 : vector<2x128xf32>
    %146 = vector.extract_strided_slice %145 {offsets = [0, 0], sizes = [2, 96], strides = [1, 1]} : vector<2x128xf32> to vector<2x96xf32>
    %147 = arith.negf %146 : vector<2x96xf32>
    %148 = math.exp %147 : vector<2x96xf32>
    %cst_27 = arith.constant 1.000000e+00 : f32
    %149 = vector.broadcast %cst_27 : f32 to vector<2x96xf32>
    %150 = arith.addf %149, %148 : vector<2x96xf32>
    %151 = arith.divf %149, %150 : vector<2x96xf32>
    %152 = vector.extract_strided_slice %151 {offsets = [0, 0], sizes = [2, 32], strides = [1, 1]} : vector<2x96xf32> to vector<2x32xf32>
    %153 = vector.extract_strided_slice %151 {offsets = [0, 32], sizes = [2, 32], strides = [1, 1]} : vector<2x96xf32> to vector<2x32xf32>
    %154 = vector.extract_strided_slice %151 {offsets = [0, 64], sizes = [2, 32], strides = [1, 1]} : vector<2x96xf32> to vector<2x32xf32>
    %155 = vector.extract_strided_slice %145 {offsets = [0, 96], sizes = [2, 32], strides = [1, 1]} : vector<2x128xf32> to vector<2x32xf32>
    %156 = math.tanh %155 : vector<2x32xf32>
    %157 = arith.mulf %153, %121 : vector<2x32xf32>
    %158 = arith.mulf %152, %156 : vector<2x32xf32>
    %159 = arith.addf %157, %158 : vector<2x32xf32>
    %160 = math.tanh %159 : vector<2x32xf32>
    %161 = arith.mulf %154, %160 : vector<2x32xf32>
    %cst_28 = arith.constant dense<0.000000e+00> : vector<2x128xf32>
    %162 = tpu.matmul %141, %6, %cst_28 {dimension_numbers = #tpu.dot_dimension_numbers<[1], [0], [0], [1], [0, 0, 1, 1], [], []>} : vector<2x32xf32>, vector<32x128xf32>, vector<2x128xf32> -> vector<2x128xf32>
    %163 = arith.addf %5, %162 : vector<2x128xf32>
    %164 = vector.extract_strided_slice %163 {offsets = [0, 0], sizes = [2, 96], strides = [1, 1]} : vector<2x128xf32> to vector<2x96xf32>
    %165 = arith.negf %164 : vector<2x96xf32>
    %166 = math.exp %165 : vector<2x96xf32>
    %cst_29 = arith.constant 1.000000e+00 : f32
    %167 = vector.broadcast %cst_29 : f32 to vector<2x96xf32>
    %168 = arith.addf %167, %166 : vector<2x96xf32>
    %169 = arith.divf %167, %168 : vector<2x96xf32>
    %170 = vector.extract_strided_slice %169 {offsets = [0, 0], sizes = [2, 32], strides = [1, 1]} : vector<2x96xf32> to vector<2x32xf32>
    %171 = vector.extract_strided_slice %169 {offsets = [0, 32], sizes = [2, 32], strides = [1, 1]} : vector<2x96xf32> to vector<2x32xf32>
    %172 = vector.extract_strided_slice %169 {offsets = [0, 64], sizes = [2, 32], strides = [1, 1]} : vector<2x96xf32> to vector<2x32xf32>
    %173 = vector.extract_strided_slice %163 {offsets = [0, 96], sizes = [2, 32], strides = [1, 1]} : vector<2x128xf32> to vector<2x32xf32>
    %174 = math.tanh %173 : vector<2x32xf32>
    %175 = arith.mulf %171, %139 : vector<2x32xf32>
    %176 = arith.mulf %170, %174 : vector<2x32xf32>
    %177 = arith.addf %175, %176 : vector<2x32xf32>
    %178 = math.tanh %177 : vector<2x32xf32>
    %179 = arith.mulf %172, %178 : vector<2x32xf32>
    %180 = tpu.concatenate %179, %161 in 1 : vector<2x32xf32>, vector<2x32xf32> -> vector<2x64xf32>
    %cst_30 = arith.constant dense<0.000000e+00> : vector<2x128xf32>
    %181 = tpu.matmul %180, %7, %cst_30 {dimension_numbers = #tpu.dot_dimension_numbers<[1], [0], [0], [1], [0, 0, 1, 1], [], []>} : vector<2x64xf32>, vector<64x128xf32>, vector<2x128xf32> -> vector<2x128xf32>
    %182 = vector.broadcast %8 : vector<1x128xf32> to vector<2x128xf32>
    %183 = arith.addf %182, %181 : vector<2x128xf32>
    %184 = vector.extract_strided_slice %183 {offsets = [0, 0], sizes = [2, 96], strides = [1, 1]} : vector<2x128xf32> to vector<2x96xf32>
    %185 = arith.negf %184 : vector<2x96xf32>
    %186 = math.exp %185 : vector<2x96xf32>
    %cst_31 = arith.constant 1.000000e+00 : f32
    %187 = vector.broadcast %cst_31 : f32 to vector<2x96xf32>
    %188 = arith.addf %187, %186 : vector<2x96xf32>
    %189 = arith.divf %187, %188 : vector<2x96xf32>
    %190 = vector.extract_strided_slice %189 {offsets = [0, 0], sizes = [2, 32], strides = [1, 1]} : vector<2x96xf32> to vector<2x32xf32>
    %191 = vector.extract_strided_slice %189 {offsets = [0, 32], sizes = [2, 32], strides = [1, 1]} : vector<2x96xf32> to vector<2x32xf32>
    %192 = vector.extract_strided_slice %189 {offsets = [0, 64], sizes = [2, 32], strides = [1, 1]} : vector<2x96xf32> to vector<2x32xf32>
    %193 = vector.extract_strided_slice %183 {offsets = [0, 96], sizes = [2, 32], strides = [1, 1]} : vector<2x128xf32> to vector<2x32xf32>
    %194 = math.tanh %193 : vector<2x32xf32>
    %195 = arith.mulf %191, %159 : vector<2x32xf32>
    %196 = arith.mulf %190, %194 : vector<2x32xf32>
    %197 = arith.addf %195, %196 : vector<2x32xf32>
    %198 = math.tanh %197 : vector<2x32xf32>
    %199 = arith.mulf %192, %198 : vector<2x32xf32>
    %cst_32 = arith.constant dense<0.000000e+00> : vector<2x128xf32>
    %200 = tpu.matmul %179, %6, %cst_32 {dimension_numbers = #tpu.dot_dimension_numbers<[1], [0], [0], [1], [0, 0, 1, 1], [], []>} : vector<2x32xf32>, vector<32x128xf32>, vector<2x128xf32> -> vector<2x128xf32>
    %201 = arith.addf %5, %200 : vector<2x128xf32>
    %202 = vector.extract_strided_slice %201 {offsets = [0, 0], sizes = [2, 96], strides = [1, 1]} : vector<2x128xf32> to vector<2x96xf32>
    %203 = arith.negf %202 : vector<2x96xf32>
    %204 = math.exp %203 : vector<2x96xf32>
    %cst_33 = arith.constant 1.000000e+00 : f32
    %205 = vector.broadcast %cst_33 : f32 to vector<2x96xf32>
    %206 = arith.addf %205, %204 : vector<2x96xf32>
    %207 = arith.divf %205, %206 : vector<2x96xf32>
    %208 = vector.extract_strided_slice %207 {offsets = [0, 0], sizes = [2, 32], strides = [1, 1]} : vector<2x96xf32> to vector<2x32xf32>
    %209 = vector.extract_strided_slice %207 {offsets = [0, 32], sizes = [2, 32], strides = [1, 1]} : vector<2x96xf32> to vector<2x32xf32>
    %210 = vector.extract_strided_slice %207 {offsets = [0, 64], sizes = [2, 32], strides = [1, 1]} : vector<2x96xf32> to vector<2x32xf32>
    %211 = vector.extract_strided_slice %201 {offsets = [0, 96], sizes = [2, 32], strides = [1, 1]} : vector<2x128xf32> to vector<2x32xf32>
    %212 = math.tanh %211 : vector<2x32xf32>
    %213 = arith.mulf %209, %177 : vector<2x32xf32>
    %214 = arith.mulf %208, %212 : vector<2x32xf32>
    %215 = arith.addf %213, %214 : vector<2x32xf32>
    %216 = math.tanh %215 : vector<2x32xf32>
    %217 = arith.mulf %210, %216 : vector<2x32xf32>
    %218 = tpu.concatenate %217, %199 in 1 : vector<2x32xf32>, vector<2x32xf32> -> vector<2x64xf32>
    %cst_34 = arith.constant dense<0.000000e+00> : vector<2x128xf32>
    %219 = tpu.matmul %218, %7, %cst_34 {dimension_numbers = #tpu.dot_dimension_numbers<[1], [0], [0], [1], [0, 0, 1, 1], [], []>} : vector<2x64xf32>, vector<64x128xf32>, vector<2x128xf32> -> vector<2x128xf32>
    %220 = vector.broadcast %8 : vector<1x128xf32> to vector<2x128xf32>
    %221 = arith.addf %220, %219 : vector<2x128xf32>
    %222 = vector.extract_strided_slice %221 {offsets = [0, 0], sizes = [2, 96], strides = [1, 1]} : vector<2x128xf32> to vector<2x96xf32>
    %223 = arith.negf %222 : vector<2x96xf32>
    %224 = math.exp %223 : vector<2x96xf32>
    %cst_35 = arith.constant 1.000000e+00 : f32
    %225 = vector.broadcast %cst_35 : f32 to vector<2x96xf32>
    %226 = arith.addf %225, %224 : vector<2x96xf32>
    %227 = arith.divf %225, %226 : vector<2x96xf32>
    %228 = vector.extract_strided_slice %227 {offsets = [0, 0], sizes = [2, 32], strides = [1, 1]} : vector<2x96xf32> to vector<2x32xf32>
    %229 = vector.extract_strided_slice %227 {offsets = [0, 32], sizes = [2, 32], strides = [1, 1]} : vector<2x96xf32> to vector<2x32xf32>
    %230 = vector.extract_strided_slice %227 {offsets = [0, 64], sizes = [2, 32], strides = [1, 1]} : vector<2x96xf32> to vector<2x32xf32>
    %231 = vector.extract_strided_slice %221 {offsets = [0, 96], sizes = [2, 32], strides = [1, 1]} : vector<2x128xf32> to vector<2x32xf32>
    %232 = math.tanh %231 : vector<2x32xf32>
    %233 = arith.mulf %229, %197 : vector<2x32xf32>
    %234 = arith.mulf %228, %232 : vector<2x32xf32>
    %235 = arith.addf %233, %234 : vector<2x32xf32>
    %236 = math.tanh %235 : vector<2x32xf32>
    %237 = arith.mulf %230, %236 : vector<2x32xf32>
    %cst_36 = arith.constant dense<0.000000e+00> : vector<2x128xf32>
    %238 = tpu.matmul %217, %6, %cst_36 {dimension_numbers = #tpu.dot_dimension_numbers<[1], [0], [0], [1], [0, 0, 1, 1], [], []>} : vector<2x32xf32>, vector<32x128xf32>, vector<2x128xf32> -> vector<2x128xf32>
    %239 = arith.addf %5, %238 : vector<2x128xf32>
    %240 = vector.extract_strided_slice %239 {offsets = [0, 0], sizes = [2, 96], strides = [1, 1]} : vector<2x128xf32> to vector<2x96xf32>
    %241 = arith.negf %240 : vector<2x96xf32>
    %242 = math.exp %241 : vector<2x96xf32>
    %cst_37 = arith.constant 1.000000e+00 : f32
    %243 = vector.broadcast %cst_37 : f32 to vector<2x96xf32>
    %244 = arith.addf %243, %242 : vector<2x96xf32>
    %245 = arith.divf %243, %244 : vector<2x96xf32>
    %246 = vector.extract_strided_slice %245 {offsets = [0, 0], sizes = [2, 32], strides = [1, 1]} : vector<2x96xf32> to vector<2x32xf32>
    %247 = vector.extract_strided_slice %245 {offsets = [0, 32], sizes = [2, 32], strides = [1, 1]} : vector<2x96xf32> to vector<2x32xf32>
    %248 = vector.extract_strided_slice %245 {offsets = [0, 64], sizes = [2, 32], strides = [1, 1]} : vector<2x96xf32> to vector<2x32xf32>
    %249 = vector.extract_strided_slice %239 {offsets = [0, 96], sizes = [2, 32], strides = [1, 1]} : vector<2x128xf32> to vector<2x32xf32>
    %250 = math.tanh %249 : vector<2x32xf32>
    %251 = arith.mulf %247, %215 : vector<2x32xf32>
    %252 = arith.mulf %246, %250 : vector<2x32xf32>
    %253 = arith.addf %251, %252 : vector<2x32xf32>
    %254 = math.tanh %253 : vector<2x32xf32>
    %255 = arith.mulf %248, %254 : vector<2x32xf32>
    %256 = tpu.concatenate %255, %237 in 1 : vector<2x32xf32>, vector<2x32xf32> -> vector<2x64xf32>
    %cst_38 = arith.constant dense<0.000000e+00> : vector<2x128xf32>
    %257 = tpu.matmul %256, %7, %cst_38 {dimension_numbers = #tpu.dot_dimension_numbers<[1], [0], [0], [1], [0, 0, 1, 1], [], []>} : vector<2x64xf32>, vector<64x128xf32>, vector<2x128xf32> -> vector<2x128xf32>
    %258 = vector.broadcast %8 : vector<1x128xf32> to vector<2x128xf32>
    %259 = arith.addf %258, %257 : vector<2x128xf32>
    %260 = vector.extract_strided_slice %259 {offsets = [0, 0], sizes = [2, 96], strides = [1, 1]} : vector<2x128xf32> to vector<2x96xf32>
    %261 = arith.negf %260 : vector<2x96xf32>
    %262 = math.exp %261 : vector<2x96xf32>
    %cst_39 = arith.constant 1.000000e+00 : f32
    %263 = vector.broadcast %cst_39 : f32 to vector<2x96xf32>
    %264 = arith.addf %263, %262 : vector<2x96xf32>
    %265 = arith.divf %263, %264 : vector<2x96xf32>
    %266 = vector.extract_strided_slice %265 {offsets = [0, 0], sizes = [2, 32], strides = [1, 1]} : vector<2x96xf32> to vector<2x32xf32>
    %267 = vector.extract_strided_slice %265 {offsets = [0, 32], sizes = [2, 32], strides = [1, 1]} : vector<2x96xf32> to vector<2x32xf32>
    %268 = vector.extract_strided_slice %265 {offsets = [0, 64], sizes = [2, 32], strides = [1, 1]} : vector<2x96xf32> to vector<2x32xf32>
    %269 = vector.extract_strided_slice %259 {offsets = [0, 96], sizes = [2, 32], strides = [1, 1]} : vector<2x128xf32> to vector<2x32xf32>
    %270 = math.tanh %269 : vector<2x32xf32>
    %271 = arith.mulf %267, %235 : vector<2x32xf32>
    %272 = arith.mulf %266, %270 : vector<2x32xf32>
    %273 = arith.addf %271, %272 : vector<2x32xf32>
    %274 = math.tanh %273 : vector<2x32xf32>
    %275 = arith.mulf %268, %274 : vector<2x32xf32>
    %cst_40 = arith.constant dense<0.000000e+00> : vector<2x128xf32>
    %276 = tpu.matmul %255, %6, %cst_40 {dimension_numbers = #tpu.dot_dimension_numbers<[1], [0], [0], [1], [0, 0, 1, 1], [], []>} : vector<2x32xf32>, vector<32x128xf32>, vector<2x128xf32> -> vector<2x128xf32>
    %277 = arith.addf %5, %276 : vector<2x128xf32>
    %278 = vector.extract_strided_slice %277 {offsets = [0, 0], sizes = [2, 96], strides = [1, 1]} : vector<2x128xf32> to vector<2x96xf32>
    %279 = arith.negf %278 : vector<2x96xf32>
    %280 = math.exp %279 : vector<2x96xf32>
    %cst_41 = arith.constant 1.000000e+00 : f32
    %281 = vector.broadcast %cst_41 : f32 to vector<2x96xf32>
    %282 = arith.addf %281, %280 : vector<2x96xf32>
    %283 = arith.divf %281, %282 : vector<2x96xf32>
    %284 = vector.extract_strided_slice %283 {offsets = [0, 0], sizes = [2, 32], strides = [1, 1]} : vector<2x96xf32> to vector<2x32xf32>
    %285 = vector.extract_strided_slice %283 {offsets = [0, 32], sizes = [2, 32], strides = [1, 1]} : vector<2x96xf32> to vector<2x32xf32>
    %286 = vector.extract_strided_slice %283 {offsets = [0, 64], sizes = [2, 32], strides = [1, 1]} : vector<2x96xf32> to vector<2x32xf32>
    %287 = vector.extract_strided_slice %277 {offsets = [0, 96], sizes = [2, 32], strides = [1, 1]} : vector<2x128xf32> to vector<2x32xf32>
    %288 = math.tanh %287 : vector<2x32xf32>
    %289 = arith.mulf %285, %253 : vector<2x32xf32>
    %290 = arith.mulf %284, %288 : vector<2x32xf32>
    %291 = arith.addf %289, %290 : vector<2x32xf32>
    %292 = math.tanh %291 : vector<2x32xf32>
    %293 = arith.mulf %286, %292 : vector<2x32xf32>
    %294 = tpu.concatenate %293, %275 in 1 : vector<2x32xf32>, vector<2x32xf32> -> vector<2x64xf32>
    %cst_42 = arith.constant dense<0.000000e+00> : vector<2x128xf32>
    %295 = tpu.matmul %294, %7, %cst_42 {dimension_numbers = #tpu.dot_dimension_numbers<[1], [0], [0], [1], [0, 0, 1, 1], [], []>} : vector<2x64xf32>, vector<64x128xf32>, vector<2x128xf32> -> vector<2x128xf32>
    %296 = vector.broadcast %8 : vector<1x128xf32> to vector<2x128xf32>
    %297 = arith.addf %296, %295 : vector<2x128xf32>
    %298 = vector.extract_strided_slice %297 {offsets = [0, 0], sizes = [2, 96], strides = [1, 1]} : vector<2x128xf32> to vector<2x96xf32>
    %299 = arith.negf %298 : vector<2x96xf32>
    %300 = math.exp %299 : vector<2x96xf32>
    %cst_43 = arith.constant 1.000000e+00 : f32
    %301 = vector.broadcast %cst_43 : f32 to vector<2x96xf32>
    %302 = arith.addf %301, %300 : vector<2x96xf32>
    %303 = arith.divf %301, %302 : vector<2x96xf32>
    %304 = vector.extract_strided_slice %303 {offsets = [0, 0], sizes = [2, 32], strides = [1, 1]} : vector<2x96xf32> to vector<2x32xf32>
    %305 = vector.extract_strided_slice %303 {offsets = [0, 32], sizes = [2, 32], strides = [1, 1]} : vector<2x96xf32> to vector<2x32xf32>
    %306 = vector.extract_strided_slice %303 {offsets = [0, 64], sizes = [2, 32], strides = [1, 1]} : vector<2x96xf32> to vector<2x32xf32>
    %307 = vector.extract_strided_slice %297 {offsets = [0, 96], sizes = [2, 32], strides = [1, 1]} : vector<2x128xf32> to vector<2x32xf32>
    %308 = math.tanh %307 : vector<2x32xf32>
    %309 = arith.mulf %305, %273 : vector<2x32xf32>
    %310 = arith.mulf %304, %308 : vector<2x32xf32>
    %311 = arith.addf %309, %310 : vector<2x32xf32>
    %312 = math.tanh %311 : vector<2x32xf32>
    %313 = arith.mulf %306, %312 : vector<2x32xf32>
    %314 = tpu.concatenate %47, %85, %123, %161, %199, %237, %275, %313 in 0 : vector<2x32xf32>, vector<2x32xf32>, vector<2x32xf32>, vector<2x32xf32>, vector<2x32xf32>, vector<2x32xf32>, vector<2x32xf32>, vector<2x32xf32> -> vector<16x32xf32>
    %cst_44 = arith.constant 0.000000e+00 : f32
    %315 = vector.broadcast %cst_44 : f32 to vector<16x32xf32>
    %316 = arith.maximumf %314, %315 : vector<16x32xf32>
    %c0_45 = arith.constant 0 : index
    %c0_46 = arith.constant 0 : index
    %317 = vector.load %arg6[%c0_45, %c0_46] : memref<32x96xf32, #tpu.memory_space<vmem>>, vector<32x96xf32>
    %cst_47 = arith.constant dense<0.000000e+00> : vector<16x96xf32>
    %318 = tpu.matmul %316, %317, %cst_47 {dimension_numbers = #tpu.dot_dimension_numbers<[1], [0], [0], [1], [0, 0, 1, 1], [], []>} : vector<16x32xf32>, vector<32x96xf32>, vector<16x96xf32> -> vector<16x96xf32>
    %c0_48 = arith.constant 0 : index
    %c0_49 = arith.constant 0 : index
    %319 = vector.load %arg7[%c0_48, %c0_49] : memref<1x96xf32, #tpu.memory_space<vmem>>, vector<1x96xf32>
    %320 = vector.broadcast %319 : vector<1x96xf32> to vector<16x96xf32>
    %321 = arith.addf %318, %320 : vector<16x96xf32>
    %322 = tpu.iota {dimensions = array<i32: 0>} : vector<16x16xi32>
    %323 = tpu.iota {dimensions = array<i32: 1>} : vector<16x16xi32>
    %c2_i32 = arith.constant 2 : i32
    %c0_i32 = arith.constant 0 : i32
    %324 = arith.cmpi eq, %c2_i32, %c0_i32 : i32
    %c1_i32 = arith.constant 1 : i32
    %325 = arith.select %324, %c1_i32, %c2_i32 : i32
    %326 = vector.broadcast %325 : i32 to vector<16x16xi32>
    %327 = arith.remsi %322, %326 : vector<16x16xi32>
    %c0_i32_50 = arith.constant 0 : i32
    %328 = vector.broadcast %c0_i32_50 : i32 to vector<16x16xi32>
    %329 = arith.cmpi ne, %327, %328 : vector<16x16xi32>
    %c0_i32_51 = arith.constant 0 : i32
    %330 = vector.broadcast %c0_i32_51 : i32 to vector<16x16xi32>
    %331 = arith.cmpi slt, %327, %330 : vector<16x16xi32>
    %c0_i32_52 = arith.constant 0 : i32
    %332 = arith.cmpi slt, %325, %c0_i32_52 : i32
    %333 = vector.broadcast %332 : i1 to vector<16x16xi1>
    %334 = vector.broadcast %333 : vector<16x16xi1> to vector<16x16xi1>
    %335 = arith.xori %331, %334 : vector<16x16xi1>
    %336 = arith.andi %335, %329 : vector<16x16xi1>
    %337 = vector.broadcast %325 : i32 to vector<16x16xi32>
    %338 = arith.addi %327, %337 : vector<16x16xi32>
    %339 = arith.select %336, %338, %327 : vector<16x16xi1>, vector<16x16xi32>
    %c2_i32_53 = arith.constant 2 : i32
    %c0_i32_54 = arith.constant 0 : i32
    %340 = arith.cmpi eq, %c2_i32_53, %c0_i32_54 : i32
    %c1_i32_55 = arith.constant 1 : i32
    %341 = arith.select %340, %c1_i32_55, %c2_i32_53 : i32
    %342 = vector.broadcast %341 : i32 to vector<16x16xi32>
    %343 = arith.remsi %323, %342 : vector<16x16xi32>
    %c0_i32_56 = arith.constant 0 : i32
    %344 = vector.broadcast %c0_i32_56 : i32 to vector<16x16xi32>
    %345 = arith.cmpi ne, %343, %344 : vector<16x16xi32>
    %c0_i32_57 = arith.constant 0 : i32
    %346 = vector.broadcast %c0_i32_57 : i32 to vector<16x16xi32>
    %347 = arith.cmpi slt, %343, %346 : vector<16x16xi32>
    %c0_i32_58 = arith.constant 0 : i32
    %348 = arith.cmpi slt, %341, %c0_i32_58 : i32
    %349 = vector.broadcast %348 : i1 to vector<16x16xi1>
    %350 = vector.broadcast %349 : vector<16x16xi1> to vector<16x16xi1>
    %351 = arith.xori %347, %350 : vector<16x16xi1>
    %352 = arith.andi %351, %345 : vector<16x16xi1>
    %353 = vector.broadcast %341 : i32 to vector<16x16xi32>
    %354 = arith.addi %343, %353 : vector<16x16xi32>
    %355 = arith.select %352, %354, %343 : vector<16x16xi1>, vector<16x16xi32>
    %356 = arith.cmpi eq, %339, %355 : vector<16x16xi32>
    %cst_59 = arith.constant 0.000000e+00 : f32
    %cst_60 = arith.constant -1.000000e+30 : f32
    %357 = vector.broadcast %cst_59 : f32 to vector<16x16xf32>
    %358 = vector.broadcast %cst_60 : f32 to vector<16x16xf32>
    %359 = arith.select %356, %357, %358 : vector<16x16xi1>, vector<16x16xf32>
    %360 = vector.extract_strided_slice %321 {offsets = [0, 0], sizes = [16, 8], strides = [1, 1]} : vector<16x96xf32> to vector<16x8xf32>
    %361 = vector.extract_strided_slice %321 {offsets = [0, 32], sizes = [16, 8], strides = [1, 1]} : vector<16x96xf32> to vector<16x8xf32>
    %362 = vector.extract_strided_slice %321 {offsets = [0, 64], sizes = [16, 8], strides = [1, 1]} : vector<16x96xf32> to vector<16x8xf32>
    "tpu.trace_start"() <{level = 10 : i32, message = "qd,kd->qk"}> : () -> ()
    %cst_61 = arith.constant dense<0.000000e+00> : vector<16x16xf32>
    %363 = tpu.matmul %360, %361, %cst_61 {dimension_numbers = #tpu.dot_dimension_numbers<[1], [1], [0], [0], [0, 0, 1, 0], [], []>} : vector<16x8xf32>, vector<16x8xf32>, vector<16x16xf32> -> vector<16x16xf32>
    "tpu.trace_stop"() : () -> ()
    %364 = arith.addf %363, %359 : vector<16x16xf32>
    %cst_62 = arith.constant dense<0xFF800000> : vector<16xf32>
    %365 = vector.multi_reduction <maximumf>, %364, %cst_62 [1] : vector<16x16xf32> to vector<16xf32>
    %366 = vector.shape_cast %365 : vector<16xf32> to vector<16x1xf32>
    %367 = vector.broadcast %366 : vector<16x1xf32> to vector<16x16xf32>
    %368 = arith.subf %364, %367 : vector<16x16xf32>
    %369 = math.exp %368 : vector<16x16xf32>
    %cst_63 = arith.constant dense<0.000000e+00> : vector<16xf32>
    %370 = vector.multi_reduction <add>, %369, %cst_63 [1] : vector<16x16xf32> to vector<16xf32>
    %371 = vector.shape_cast %370 : vector<16xf32> to vector<16x1xf32>
    %372 = tpu.reciprocal %371 {approx = true} : vector<16x1xf32> -> vector<16x1xf32>
    %373 = vector.broadcast %372 : vector<16x1xf32> to vector<16x16xf32>
    %374 = arith.mulf %369, %373 : vector<16x16xf32>
    %cst_64 = arith.constant dense<0.000000e+00> : vector<16x8xf32>
    %375 = tpu.matmul %374, %362, %cst_64 {dimension_numbers = #tpu.dot_dimension_numbers<[1], [0], [0], [1], [0, 0, 1, 1], [], []>} : vector<16x16xf32>, vector<16x8xf32>, vector<16x8xf32> -> vector<16x8xf32>
    %376 = vector.extract_strided_slice %321 {offsets = [0, 8], sizes = [16, 8], strides = [1, 1]} : vector<16x96xf32> to vector<16x8xf32>
    %377 = vector.extract_strided_slice %321 {offsets = [0, 40], sizes = [16, 8], strides = [1, 1]} : vector<16x96xf32> to vector<16x8xf32>
    %378 = vector.extract_strided_slice %321 {offsets = [0, 72], sizes = [16, 8], strides = [1, 1]} : vector<16x96xf32> to vector<16x8xf32>
    "tpu.trace_start"() <{level = 10 : i32, message = "qd,kd->qk"}> : () -> ()
    %cst_65 = arith.constant dense<0.000000e+00> : vector<16x16xf32>
    %379 = tpu.matmul %376, %377, %cst_65 {dimension_numbers = #tpu.dot_dimension_numbers<[1], [1], [0], [0], [0, 0, 1, 0], [], []>} : vector<16x8xf32>, vector<16x8xf32>, vector<16x16xf32> -> vector<16x16xf32>
    "tpu.trace_stop"() : () -> ()
    %380 = arith.addf %379, %359 : vector<16x16xf32>
    %cst_66 = arith.constant dense<0xFF800000> : vector<16xf32>
    %381 = vector.multi_reduction <maximumf>, %380, %cst_66 [1] : vector<16x16xf32> to vector<16xf32>
    %382 = vector.shape_cast %381 : vector<16xf32> to vector<16x1xf32>
    %383 = vector.broadcast %382 : vector<16x1xf32> to vector<16x16xf32>
    %384 = arith.subf %380, %383 : vector<16x16xf32>
    %385 = math.exp %384 : vector<16x16xf32>
    %cst_67 = arith.constant dense<0.000000e+00> : vector<16xf32>
    %386 = vector.multi_reduction <add>, %385, %cst_67 [1] : vector<16x16xf32> to vector<16xf32>
    %387 = vector.shape_cast %386 : vector<16xf32> to vector<16x1xf32>
    %388 = tpu.reciprocal %387 {approx = true} : vector<16x1xf32> -> vector<16x1xf32>
    %389 = vector.broadcast %388 : vector<16x1xf32> to vector<16x16xf32>
    %390 = arith.mulf %385, %389 : vector<16x16xf32>
    %cst_68 = arith.constant dense<0.000000e+00> : vector<16x8xf32>
    %391 = tpu.matmul %390, %378, %cst_68 {dimension_numbers = #tpu.dot_dimension_numbers<[1], [0], [0], [1], [0, 0, 1, 1], [], []>} : vector<16x16xf32>, vector<16x8xf32>, vector<16x8xf32> -> vector<16x8xf32>
    %392 = vector.extract_strided_slice %321 {offsets = [0, 16], sizes = [16, 8], strides = [1, 1]} : vector<16x96xf32> to vector<16x8xf32>
    %393 = vector.extract_strided_slice %321 {offsets = [0, 48], sizes = [16, 8], strides = [1, 1]} : vector<16x96xf32> to vector<16x8xf32>
    %394 = vector.extract_strided_slice %321 {offsets = [0, 80], sizes = [16, 8], strides = [1, 1]} : vector<16x96xf32> to vector<16x8xf32>
    "tpu.trace_start"() <{level = 10 : i32, message = "qd,kd->qk"}> : () -> ()
    %cst_69 = arith.constant dense<0.000000e+00> : vector<16x16xf32>
    %395 = tpu.matmul %392, %393, %cst_69 {dimension_numbers = #tpu.dot_dimension_numbers<[1], [1], [0], [0], [0, 0, 1, 0], [], []>} : vector<16x8xf32>, vector<16x8xf32>, vector<16x16xf32> -> vector<16x16xf32>
    "tpu.trace_stop"() : () -> ()
    %396 = arith.addf %395, %359 : vector<16x16xf32>
    %cst_70 = arith.constant dense<0xFF800000> : vector<16xf32>
    %397 = vector.multi_reduction <maximumf>, %396, %cst_70 [1] : vector<16x16xf32> to vector<16xf32>
    %398 = vector.shape_cast %397 : vector<16xf32> to vector<16x1xf32>
    %399 = vector.broadcast %398 : vector<16x1xf32> to vector<16x16xf32>
    %400 = arith.subf %396, %399 : vector<16x16xf32>
    %401 = math.exp %400 : vector<16x16xf32>
    %cst_71 = arith.constant dense<0.000000e+00> : vector<16xf32>
    %402 = vector.multi_reduction <add>, %401, %cst_71 [1] : vector<16x16xf32> to vector<16xf32>
    %403 = vector.shape_cast %402 : vector<16xf32> to vector<16x1xf32>
    %404 = tpu.reciprocal %403 {approx = true} : vector<16x1xf32> -> vector<16x1xf32>
    %405 = vector.broadcast %404 : vector<16x1xf32> to vector<16x16xf32>
    %406 = arith.mulf %401, %405 : vector<16x16xf32>
    %cst_72 = arith.constant dense<0.000000e+00> : vector<16x8xf32>
    %407 = tpu.matmul %406, %394, %cst_72 {dimension_numbers = #tpu.dot_dimension_numbers<[1], [0], [0], [1], [0, 0, 1, 1], [], []>} : vector<16x16xf32>, vector<16x8xf32>, vector<16x8xf32> -> vector<16x8xf32>
    %408 = vector.extract_strided_slice %321 {offsets = [0, 24], sizes = [16, 8], strides = [1, 1]} : vector<16x96xf32> to vector<16x8xf32>
    %409 = vector.extract_strided_slice %321 {offsets = [0, 56], sizes = [16, 8], strides = [1, 1]} : vector<16x96xf32> to vector<16x8xf32>
    %410 = vector.extract_strided_slice %321 {offsets = [0, 88], sizes = [16, 8], strides = [1, 1]} : vector<16x96xf32> to vector<16x8xf32>
    "tpu.trace_start"() <{level = 10 : i32, message = "qd,kd->qk"}> : () -> ()
    %cst_73 = arith.constant dense<0.000000e+00> : vector<16x16xf32>
    %411 = tpu.matmul %408, %409, %cst_73 {dimension_numbers = #tpu.dot_dimension_numbers<[1], [1], [0], [0], [0, 0, 1, 0], [], []>} : vector<16x8xf32>, vector<16x8xf32>, vector<16x16xf32> -> vector<16x16xf32>
    "tpu.trace_stop"() : () -> ()
    %412 = arith.addf %411, %359 : vector<16x16xf32>
    %cst_74 = arith.constant dense<0xFF800000> : vector<16xf32>
    %413 = vector.multi_reduction <maximumf>, %412, %cst_74 [1] : vector<16x16xf32> to vector<16xf32>
    %414 = vector.shape_cast %413 : vector<16xf32> to vector<16x1xf32>
    %415 = vector.broadcast %414 : vector<16x1xf32> to vector<16x16xf32>
    %416 = arith.subf %412, %415 : vector<16x16xf32>
    %417 = math.exp %416 : vector<16x16xf32>
    %cst_75 = arith.constant dense<0.000000e+00> : vector<16xf32>
    %418 = vector.multi_reduction <add>, %417, %cst_75 [1] : vector<16x16xf32> to vector<16xf32>
    %419 = vector.shape_cast %418 : vector<16xf32> to vector<16x1xf32>
    %420 = tpu.reciprocal %419 {approx = true} : vector<16x1xf32> -> vector<16x1xf32>
    %421 = vector.broadcast %420 : vector<16x1xf32> to vector<16x16xf32>
    %422 = arith.mulf %417, %421 : vector<16x16xf32>
    %cst_76 = arith.constant dense<0.000000e+00> : vector<16x8xf32>
    %423 = tpu.matmul %422, %410, %cst_76 {dimension_numbers = #tpu.dot_dimension_numbers<[1], [0], [0], [1], [0, 0, 1, 1], [], []>} : vector<16x16xf32>, vector<16x8xf32>, vector<16x8xf32> -> vector<16x8xf32>
    %424 = tpu.concatenate %375, %391, %407, %423 in 1 : vector<16x8xf32>, vector<16x8xf32>, vector<16x8xf32>, vector<16x8xf32> -> vector<16x32xf32>
    %c0_77 = arith.constant 0 : index
    %c0_78 = arith.constant 0 : index
    %425 = vector.load %arg8[%c0_77, %c0_78] : memref<32x32xf32, #tpu.memory_space<vmem>>, vector<32x32xf32>
    %cst_79 = arith.constant dense<0.000000e+00> : vector<16x32xf32>
    %426 = tpu.matmul %424, %425, %cst_79 {dimension_numbers = #tpu.dot_dimension_numbers<[1], [0], [0], [1], [0, 0, 1, 1], [], []>} : vector<16x32xf32>, vector<32x32xf32>, vector<16x32xf32> -> vector<16x32xf32>
    %c0_80 = arith.constant 0 : index
    %c0_81 = arith.constant 0 : index
    %427 = vector.load %arg9[%c0_80, %c0_81] : memref<1x32xf32, #tpu.memory_space<vmem>>, vector<1x32xf32>
    %428 = vector.broadcast %427 : vector<1x32xf32> to vector<16x32xf32>
    %429 = arith.addf %426, %428 : vector<16x32xf32>
    %cst_82 = arith.constant 0.000000e+00 : f32
    %430 = vector.broadcast %cst_82 : f32 to vector<16x32xf32>
    %431 = arith.maximumf %429, %430 : vector<16x32xf32>
    %c0_83 = arith.constant 0 : index
    %c0_84 = arith.constant 0 : index
    %432 = vector.load %arg10[%c0_83, %c0_84] : memref<32x256xf32, #tpu.memory_space<vmem>>, vector<32x256xf32>
    %cst_85 = arith.constant dense<0.000000e+00> : vector<16x256xf32>
    %433 = tpu.matmul %431, %432, %cst_85 {dimension_numbers = #tpu.dot_dimension_numbers<[1], [0], [0], [1], [0, 0, 1, 1], [], []>} : vector<16x32xf32>, vector<32x256xf32>, vector<16x256xf32> -> vector<16x256xf32>
    %c0_86 = arith.constant 0 : index
    %c0_87 = arith.constant 0 : index
    %434 = vector.load %arg12[%c0_86, %c0_87] : memref<1x256xf32, #tpu.memory_space<vmem>>, vector<1x256xf32>
    %435 = vector.broadcast %434 : vector<1x256xf32> to vector<16x256xf32>
    %436 = arith.addf %433, %435 : vector<16x256xf32>
    %c0_88 = arith.constant 0 : index
    %c0_89 = arith.constant 0 : index
    %437 = vector.load %arg11[%c0_88, %c0_89] : memref<64x256xf32, #tpu.memory_space<vmem>>, vector<64x256xf32>
    %c0_90 = arith.constant 0 : index
    %c0_91 = arith.constant 0 : index
    %438 = vector.load %arg13[%c0_90, %c0_91] : memref<128x256xf32, #tpu.memory_space<vmem>>, vector<128x256xf32>
    %c0_92 = arith.constant 0 : index
    %c0_93 = arith.constant 0 : index
    %439 = vector.load %arg14[%c0_92, %c0_93] : memref<1x256xf32, #tpu.memory_space<vmem>>, vector<1x256xf32>
    %cst_94 = arith.constant 0.000000e+00 : f32
    %440 = vector.broadcast %cst_94 : f32 to vector<2x64xf32>
    %441 = vector.extract_strided_slice %436 {offsets = [0, 0], sizes = [2, 256], strides = [1, 1]} : vector<16x256xf32> to vector<2x256xf32>
    %cst_95 = arith.constant dense<0.000000e+00> : vector<2x256xf32>
    %442 = tpu.matmul %440, %437, %cst_95 {dimension_numbers = #tpu.dot_dimension_numbers<[1], [0], [0], [1], [0, 0, 1, 1], [], []>} : vector<2x64xf32>, vector<64x256xf32>, vector<2x256xf32> -> vector<2x256xf32>
    %443 = arith.addf %441, %442 : vector<2x256xf32>
    %444 = vector.extract_strided_slice %443 {offsets = [0, 0], sizes = [2, 192], strides = [1, 1]} : vector<2x256xf32> to vector<2x192xf32>
    %445 = arith.negf %444 : vector<2x192xf32>
    %446 = math.exp %445 : vector<2x192xf32>
    %cst_96 = arith.constant 1.000000e+00 : f32
    %447 = vector.broadcast %cst_96 : f32 to vector<2x192xf32>
    %448 = arith.addf %447, %446 : vector<2x192xf32>
    %449 = arith.divf %447, %448 : vector<2x192xf32>
    %450 = vector.extract_strided_slice %449 {offsets = [0, 0], sizes = [2, 64], strides = [1, 1]} : vector<2x192xf32> to vector<2x64xf32>
    %451 = vector.extract_strided_slice %449 {offsets = [0, 64], sizes = [2, 64], strides = [1, 1]} : vector<2x192xf32> to vector<2x64xf32>
    %452 = vector.extract_strided_slice %449 {offsets = [0, 128], sizes = [2, 64], strides = [1, 1]} : vector<2x192xf32> to vector<2x64xf32>
    %453 = vector.extract_strided_slice %443 {offsets = [0, 192], sizes = [2, 64], strides = [1, 1]} : vector<2x256xf32> to vector<2x64xf32>
    %454 = math.tanh %453 : vector<2x64xf32>
    %455 = arith.mulf %451, %440 : vector<2x64xf32>
    %456 = arith.mulf %450, %454 : vector<2x64xf32>
    %457 = arith.addf %455, %456 : vector<2x64xf32>
    %458 = math.tanh %457 : vector<2x64xf32>
    %459 = arith.mulf %452, %458 : vector<2x64xf32>
    %460 = tpu.concatenate %459, %440 in 1 : vector<2x64xf32>, vector<2x64xf32> -> vector<2x128xf32>
    %cst_97 = arith.constant dense<0.000000e+00> : vector<2x256xf32>
    %461 = tpu.matmul %460, %438, %cst_97 {dimension_numbers = #tpu.dot_dimension_numbers<[1], [0], [0], [1], [0, 0, 1, 1], [], []>} : vector<2x128xf32>, vector<128x256xf32>, vector<2x256xf32> -> vector<2x256xf32>
    %462 = vector.broadcast %439 : vector<1x256xf32> to vector<2x256xf32>
    %463 = arith.addf %462, %461 : vector<2x256xf32>
    %464 = vector.extract_strided_slice %463 {offsets = [0, 0], sizes = [2, 192], strides = [1, 1]} : vector<2x256xf32> to vector<2x192xf32>
    %465 = arith.negf %464 : vector<2x192xf32>
    %466 = math.exp %465 : vector<2x192xf32>
    %cst_98 = arith.constant 1.000000e+00 : f32
    %467 = vector.broadcast %cst_98 : f32 to vector<2x192xf32>
    %468 = arith.addf %467, %466 : vector<2x192xf32>
    %469 = arith.divf %467, %468 : vector<2x192xf32>
    %470 = vector.extract_strided_slice %469 {offsets = [0, 0], sizes = [2, 64], strides = [1, 1]} : vector<2x192xf32> to vector<2x64xf32>
    %471 = vector.extract_strided_slice %469 {offsets = [0, 64], sizes = [2, 64], strides = [1, 1]} : vector<2x192xf32> to vector<2x64xf32>
    %472 = vector.extract_strided_slice %469 {offsets = [0, 128], sizes = [2, 64], strides = [1, 1]} : vector<2x192xf32> to vector<2x64xf32>
    %473 = vector.extract_strided_slice %463 {offsets = [0, 192], sizes = [2, 64], strides = [1, 1]} : vector<2x256xf32> to vector<2x64xf32>
    %474 = math.tanh %473 : vector<2x64xf32>
    %475 = arith.mulf %471, %440 : vector<2x64xf32>
    %476 = arith.mulf %470, %474 : vector<2x64xf32>
    %477 = arith.addf %475, %476 : vector<2x64xf32>
    %478 = math.tanh %477 : vector<2x64xf32>
    %479 = arith.mulf %472, %478 : vector<2x64xf32>
    %480 = vector.extract_strided_slice %436 {offsets = [2, 0], sizes = [2, 256], strides = [1, 1]} : vector<16x256xf32> to vector<2x256xf32>
    %cst_99 = arith.constant dense<0.000000e+00> : vector<2x256xf32>
    %481 = tpu.matmul %459, %437, %cst_99 {dimension_numbers = #tpu.dot_dimension_numbers<[1], [0], [0], [1], [0, 0, 1, 1], [], []>} : vector<2x64xf32>, vector<64x256xf32>, vector<2x256xf32> -> vector<2x256xf32>
    %482 = arith.addf %480, %481 : vector<2x256xf32>
    %483 = vector.extract_strided_slice %482 {offsets = [0, 0], sizes = [2, 192], strides = [1, 1]} : vector<2x256xf32> to vector<2x192xf32>
    %484 = arith.negf %483 : vector<2x192xf32>
    %485 = math.exp %484 : vector<2x192xf32>
    %cst_100 = arith.constant 1.000000e+00 : f32
    %486 = vector.broadcast %cst_100 : f32 to vector<2x192xf32>
    %487 = arith.addf %486, %485 : vector<2x192xf32>
    %488 = arith.divf %486, %487 : vector<2x192xf32>
    %489 = vector.extract_strided_slice %488 {offsets = [0, 0], sizes = [2, 64], strides = [1, 1]} : vector<2x192xf32> to vector<2x64xf32>
    %490 = vector.extract_strided_slice %488 {offsets = [0, 64], sizes = [2, 64], strides = [1, 1]} : vector<2x192xf32> to vector<2x64xf32>
    %491 = vector.extract_strided_slice %488 {offsets = [0, 128], sizes = [2, 64], strides = [1, 1]} : vector<2x192xf32> to vector<2x64xf32>
    %492 = vector.extract_strided_slice %482 {offsets = [0, 192], sizes = [2, 64], strides = [1, 1]} : vector<2x256xf32> to vector<2x64xf32>
    %493 = math.tanh %492 : vector<2x64xf32>
    %494 = arith.mulf %490, %457 : vector<2x64xf32>
    %495 = arith.mulf %489, %493 : vector<2x64xf32>
    %496 = arith.addf %494, %495 : vector<2x64xf32>
    %497 = math.tanh %496 : vector<2x64xf32>
    %498 = arith.mulf %491, %497 : vector<2x64xf32>
    %499 = tpu.concatenate %498, %479 in 1 : vector<2x64xf32>, vector<2x64xf32> -> vector<2x128xf32>
    %cst_101 = arith.constant dense<0.000000e+00> : vector<2x256xf32>
    %500 = tpu.matmul %499, %438, %cst_101 {dimension_numbers = #tpu.dot_dimension_numbers<[1], [0], [0], [1], [0, 0, 1, 1], [], []>} : vector<2x128xf32>, vector<128x256xf32>, vector<2x256xf32> -> vector<2x256xf32>
    %501 = vector.broadcast %439 : vector<1x256xf32> to vector<2x256xf32>
    %502 = arith.addf %501, %500 : vector<2x256xf32>
    %503 = vector.extract_strided_slice %502 {offsets = [0, 0], sizes = [2, 192], strides = [1, 1]} : vector<2x256xf32> to vector<2x192xf32>
    %504 = arith.negf %503 : vector<2x192xf32>
    %505 = math.exp %504 : vector<2x192xf32>
    %cst_102 = arith.constant 1.000000e+00 : f32
    %506 = vector.broadcast %cst_102 : f32 to vector<2x192xf32>
    %507 = arith.addf %506, %505 : vector<2x192xf32>
    %508 = arith.divf %506, %507 : vector<2x192xf32>
    %509 = vector.extract_strided_slice %508 {offsets = [0, 0], sizes = [2, 64], strides = [1, 1]} : vector<2x192xf32> to vector<2x64xf32>
    %510 = vector.extract_strided_slice %508 {offsets = [0, 64], sizes = [2, 64], strides = [1, 1]} : vector<2x192xf32> to vector<2x64xf32>
    %511 = vector.extract_strided_slice %508 {offsets = [0, 128], sizes = [2, 64], strides = [1, 1]} : vector<2x192xf32> to vector<2x64xf32>
    %512 = vector.extract_strided_slice %502 {offsets = [0, 192], sizes = [2, 64], strides = [1, 1]} : vector<2x256xf32> to vector<2x64xf32>
    %513 = math.tanh %512 : vector<2x64xf32>
    %514 = arith.mulf %510, %477 : vector<2x64xf32>
    %515 = arith.mulf %509, %513 : vector<2x64xf32>
    %516 = arith.addf %514, %515 : vector<2x64xf32>
    %517 = math.tanh %516 : vector<2x64xf32>
    %518 = arith.mulf %511, %517 : vector<2x64xf32>
    %519 = vector.extract_strided_slice %436 {offsets = [4, 0], sizes = [2, 256], strides = [1, 1]} : vector<16x256xf32> to vector<2x256xf32>
    %cst_103 = arith.constant dense<0.000000e+00> : vector<2x256xf32>
    %520 = tpu.matmul %498, %437, %cst_103 {dimension_numbers = #tpu.dot_dimension_numbers<[1], [0], [0], [1], [0, 0, 1, 1], [], []>} : vector<2x64xf32>, vector<64x256xf32>, vector<2x256xf32> -> vector<2x256xf32>
    %521 = arith.addf %519, %520 : vector<2x256xf32>
    %522 = vector.extract_strided_slice %521 {offsets = [0, 0], sizes = [2, 192], strides = [1, 1]} : vector<2x256xf32> to vector<2x192xf32>
    %523 = arith.negf %522 : vector<2x192xf32>
    %524 = math.exp %523 : vector<2x192xf32>
    %cst_104 = arith.constant 1.000000e+00 : f32
    %525 = vector.broadcast %cst_104 : f32 to vector<2x192xf32>
    %526 = arith.addf %525, %524 : vector<2x192xf32>
    %527 = arith.divf %525, %526 : vector<2x192xf32>
    %528 = vector.extract_strided_slice %527 {offsets = [0, 0], sizes = [2, 64], strides = [1, 1]} : vector<2x192xf32> to vector<2x64xf32>
    %529 = vector.extract_strided_slice %527 {offsets = [0, 64], sizes = [2, 64], strides = [1, 1]} : vector<2x192xf32> to vector<2x64xf32>
    %530 = vector.extract_strided_slice %527 {offsets = [0, 128], sizes = [2, 64], strides = [1, 1]} : vector<2x192xf32> to vector<2x64xf32>
    %531 = vector.extract_strided_slice %521 {offsets = [0, 192], sizes = [2, 64], strides = [1, 1]} : vector<2x256xf32> to vector<2x64xf32>
    %532 = math.tanh %531 : vector<2x64xf32>
    %533 = arith.mulf %529, %496 : vector<2x64xf32>
    %534 = arith.mulf %528, %532 : vector<2x64xf32>
    %535 = arith.addf %533, %534 : vector<2x64xf32>
    %536 = math.tanh %535 : vector<2x64xf32>
    %537 = arith.mulf %530, %536 : vector<2x64xf32>
    %538 = tpu.concatenate %537, %518 in 1 : vector<2x64xf32>, vector<2x64xf32> -> vector<2x128xf32>
    %cst_105 = arith.constant dense<0.000000e+00> : vector<2x256xf32>
    %539 = tpu.matmul %538, %438, %cst_105 {dimension_numbers = #tpu.dot_dimension_numbers<[1], [0], [0], [1], [0, 0, 1, 1], [], []>} : vector<2x128xf32>, vector<128x256xf32>, vector<2x256xf32> -> vector<2x256xf32>
    %540 = vector.broadcast %439 : vector<1x256xf32> to vector<2x256xf32>
    %541 = arith.addf %540, %539 : vector<2x256xf32>
    %542 = vector.extract_strided_slice %541 {offsets = [0, 0], sizes = [2, 192], strides = [1, 1]} : vector<2x256xf32> to vector<2x192xf32>
    %543 = arith.negf %542 : vector<2x192xf32>
    %544 = math.exp %543 : vector<2x192xf32>
    %cst_106 = arith.constant 1.000000e+00 : f32
    %545 = vector.broadcast %cst_106 : f32 to vector<2x192xf32>
    %546 = arith.addf %545, %544 : vector<2x192xf32>
    %547 = arith.divf %545, %546 : vector<2x192xf32>
    %548 = vector.extract_strided_slice %547 {offsets = [0, 0], sizes = [2, 64], strides = [1, 1]} : vector<2x192xf32> to vector<2x64xf32>
    %549 = vector.extract_strided_slice %547 {offsets = [0, 64], sizes = [2, 64], strides = [1, 1]} : vector<2x192xf32> to vector<2x64xf32>
    %550 = vector.extract_strided_slice %547 {offsets = [0, 128], sizes = [2, 64], strides = [1, 1]} : vector<2x192xf32> to vector<2x64xf32>
    %551 = vector.extract_strided_slice %541 {offsets = [0, 192], sizes = [2, 64], strides = [1, 1]} : vector<2x256xf32> to vector<2x64xf32>
    %552 = math.tanh %551 : vector<2x64xf32>
    %553 = arith.mulf %549, %516 : vector<2x64xf32>
    %554 = arith.mulf %548, %552 : vector<2x64xf32>
    %555 = arith.addf %553, %554 : vector<2x64xf32>
    %556 = math.tanh %555 : vector<2x64xf32>
    %557 = arith.mulf %550, %556 : vector<2x64xf32>
    %558 = vector.extract_strided_slice %436 {offsets = [6, 0], sizes = [2, 256], strides = [1, 1]} : vector<16x256xf32> to vector<2x256xf32>
    %cst_107 = arith.constant dense<0.000000e+00> : vector<2x256xf32>
    %559 = tpu.matmul %537, %437, %cst_107 {dimension_numbers = #tpu.dot_dimension_numbers<[1], [0], [0], [1], [0, 0, 1, 1], [], []>} : vector<2x64xf32>, vector<64x256xf32>, vector<2x256xf32> -> vector<2x256xf32>
    %560 = arith.addf %558, %559 : vector<2x256xf32>
    %561 = vector.extract_strided_slice %560 {offsets = [0, 0], sizes = [2, 192], strides = [1, 1]} : vector<2x256xf32> to vector<2x192xf32>
    %562 = arith.negf %561 : vector<2x192xf32>
    %563 = math.exp %562 : vector<2x192xf32>
    %cst_108 = arith.constant 1.000000e+00 : f32
    %564 = vector.broadcast %cst_108 : f32 to vector<2x192xf32>
    %565 = arith.addf %564, %563 : vector<2x192xf32>
    %566 = arith.divf %564, %565 : vector<2x192xf32>
    %567 = vector.extract_strided_slice %566 {offsets = [0, 0], sizes = [2, 64], strides = [1, 1]} : vector<2x192xf32> to vector<2x64xf32>
    %568 = vector.extract_strided_slice %566 {offsets = [0, 64], sizes = [2, 64], strides = [1, 1]} : vector<2x192xf32> to vector<2x64xf32>
    %569 = vector.extract_strided_slice %566 {offsets = [0, 128], sizes = [2, 64], strides = [1, 1]} : vector<2x192xf32> to vector<2x64xf32>
    %570 = vector.extract_strided_slice %560 {offsets = [0, 192], sizes = [2, 64], strides = [1, 1]} : vector<2x256xf32> to vector<2x64xf32>
    %571 = math.tanh %570 : vector<2x64xf32>
    %572 = arith.mulf %568, %535 : vector<2x64xf32>
    %573 = arith.mulf %567, %571 : vector<2x64xf32>
    %574 = arith.addf %572, %573 : vector<2x64xf32>
    %575 = math.tanh %574 : vector<2x64xf32>
    %576 = arith.mulf %569, %575 : vector<2x64xf32>
    %577 = tpu.concatenate %576, %557 in 1 : vector<2x64xf32>, vector<2x64xf32> -> vector<2x128xf32>
    %cst_109 = arith.constant dense<0.000000e+00> : vector<2x256xf32>
    %578 = tpu.matmul %577, %438, %cst_109 {dimension_numbers = #tpu.dot_dimension_numbers<[1], [0], [0], [1], [0, 0, 1, 1], [], []>} : vector<2x128xf32>, vector<128x256xf32>, vector<2x256xf32> -> vector<2x256xf32>
    %579 = vector.broadcast %439 : vector<1x256xf32> to vector<2x256xf32>
    %580 = arith.addf %579, %578 : vector<2x256xf32>
    %581 = vector.extract_strided_slice %580 {offsets = [0, 0], sizes = [2, 192], strides = [1, 1]} : vector<2x256xf32> to vector<2x192xf32>
    %582 = arith.negf %581 : vector<2x192xf32>
    %583 = math.exp %582 : vector<2x192xf32>
    %cst_110 = arith.constant 1.000000e+00 : f32
    %584 = vector.broadcast %cst_110 : f32 to vector<2x192xf32>
    %585 = arith.addf %584, %583 : vector<2x192xf32>
    %586 = arith.divf %584, %585 : vector<2x192xf32>
    %587 = vector.extract_strided_slice %586 {offsets = [0, 0], sizes = [2, 64], strides = [1, 1]} : vector<2x192xf32> to vector<2x64xf32>
    %588 = vector.extract_strided_slice %586 {offsets = [0, 64], sizes = [2, 64], strides = [1, 1]} : vector<2x192xf32> to vector<2x64xf32>
    %589 = vector.extract_strided_slice %586 {offsets = [0, 128], sizes = [2, 64], strides = [1, 1]} : vector<2x192xf32> to vector<2x64xf32>
    %590 = vector.extract_strided_slice %580 {offsets = [0, 192], sizes = [2, 64], strides = [1, 1]} : vector<2x256xf32> to vector<2x64xf32>
    %591 = math.tanh %590 : vector<2x64xf32>
    %592 = arith.mulf %588, %555 : vector<2x64xf32>
    %593 = arith.mulf %587, %591 : vector<2x64xf32>
    %594 = arith.addf %592, %593 : vector<2x64xf32>
    %595 = math.tanh %594 : vector<2x64xf32>
    %596 = arith.mulf %589, %595 : vector<2x64xf32>
    %597 = vector.extract_strided_slice %436 {offsets = [8, 0], sizes = [2, 256], strides = [1, 1]} : vector<16x256xf32> to vector<2x256xf32>
    %cst_111 = arith.constant dense<0.000000e+00> : vector<2x256xf32>
    %598 = tpu.matmul %576, %437, %cst_111 {dimension_numbers = #tpu.dot_dimension_numbers<[1], [0], [0], [1], [0, 0, 1, 1], [], []>} : vector<2x64xf32>, vector<64x256xf32>, vector<2x256xf32> -> vector<2x256xf32>
    %599 = arith.addf %597, %598 : vector<2x256xf32>
    %600 = vector.extract_strided_slice %599 {offsets = [0, 0], sizes = [2, 192], strides = [1, 1]} : vector<2x256xf32> to vector<2x192xf32>
    %601 = arith.negf %600 : vector<2x192xf32>
    %602 = math.exp %601 : vector<2x192xf32>
    %cst_112 = arith.constant 1.000000e+00 : f32
    %603 = vector.broadcast %cst_112 : f32 to vector<2x192xf32>
    %604 = arith.addf %603, %602 : vector<2x192xf32>
    %605 = arith.divf %603, %604 : vector<2x192xf32>
    %606 = vector.extract_strided_slice %605 {offsets = [0, 0], sizes = [2, 64], strides = [1, 1]} : vector<2x192xf32> to vector<2x64xf32>
    %607 = vector.extract_strided_slice %605 {offsets = [0, 64], sizes = [2, 64], strides = [1, 1]} : vector<2x192xf32> to vector<2x64xf32>
    %608 = vector.extract_strided_slice %605 {offsets = [0, 128], sizes = [2, 64], strides = [1, 1]} : vector<2x192xf32> to vector<2x64xf32>
    %609 = vector.extract_strided_slice %599 {offsets = [0, 192], sizes = [2, 64], strides = [1, 1]} : vector<2x256xf32> to vector<2x64xf32>
    %610 = math.tanh %609 : vector<2x64xf32>
    %611 = arith.mulf %607, %574 : vector<2x64xf32>
    %612 = arith.mulf %606, %610 : vector<2x64xf32>
    %613 = arith.addf %611, %612 : vector<2x64xf32>
    %614 = math.tanh %613 : vector<2x64xf32>
    %615 = arith.mulf %608, %614 : vector<2x64xf32>
    %616 = tpu.concatenate %615, %596 in 1 : vector<2x64xf32>, vector<2x64xf32> -> vector<2x128xf32>
    %cst_113 = arith.constant dense<0.000000e+00> : vector<2x256xf32>
    %617 = tpu.matmul %616, %438, %cst_113 {dimension_numbers = #tpu.dot_dimension_numbers<[1], [0], [0], [1], [0, 0, 1, 1], [], []>} : vector<2x128xf32>, vector<128x256xf32>, vector<2x256xf32> -> vector<2x256xf32>
    %618 = vector.broadcast %439 : vector<1x256xf32> to vector<2x256xf32>
    %619 = arith.addf %618, %617 : vector<2x256xf32>
    %620 = vector.extract_strided_slice %619 {offsets = [0, 0], sizes = [2, 192], strides = [1, 1]} : vector<2x256xf32> to vector<2x192xf32>
    %621 = arith.negf %620 : vector<2x192xf32>
    %622 = math.exp %621 : vector<2x192xf32>
    %cst_114 = arith.constant 1.000000e+00 : f32
    %623 = vector.broadcast %cst_114 : f32 to vector<2x192xf32>
    %624 = arith.addf %623, %622 : vector<2x192xf32>
    %625 = arith.divf %623, %624 : vector<2x192xf32>
    %626 = vector.extract_strided_slice %625 {offsets = [0, 0], sizes = [2, 64], strides = [1, 1]} : vector<2x192xf32> to vector<2x64xf32>
    %627 = vector.extract_strided_slice %625 {offsets = [0, 64], sizes = [2, 64], strides = [1, 1]} : vector<2x192xf32> to vector<2x64xf32>
    %628 = vector.extract_strided_slice %625 {offsets = [0, 128], sizes = [2, 64], strides = [1, 1]} : vector<2x192xf32> to vector<2x64xf32>
    %629 = vector.extract_strided_slice %619 {offsets = [0, 192], sizes = [2, 64], strides = [1, 1]} : vector<2x256xf32> to vector<2x64xf32>
    %630 = math.tanh %629 : vector<2x64xf32>
    %631 = arith.mulf %627, %594 : vector<2x64xf32>
    %632 = arith.mulf %626, %630 : vector<2x64xf32>
    %633 = arith.addf %631, %632 : vector<2x64xf32>
    %634 = math.tanh %633 : vector<2x64xf32>
    %635 = arith.mulf %628, %634 : vector<2x64xf32>
    %636 = vector.extract_strided_slice %436 {offsets = [10, 0], sizes = [2, 256], strides = [1, 1]} : vector<16x256xf32> to vector<2x256xf32>
    %cst_115 = arith.constant dense<0.000000e+00> : vector<2x256xf32>
    %637 = tpu.matmul %615, %437, %cst_115 {dimension_numbers = #tpu.dot_dimension_numbers<[1], [0], [0], [1], [0, 0, 1, 1], [], []>} : vector<2x64xf32>, vector<64x256xf32>, vector<2x256xf32> -> vector<2x256xf32>
    %638 = arith.addf %636, %637 : vector<2x256xf32>
    %639 = vector.extract_strided_slice %638 {offsets = [0, 0], sizes = [2, 192], strides = [1, 1]} : vector<2x256xf32> to vector<2x192xf32>
    %640 = arith.negf %639 : vector<2x192xf32>
    %641 = math.exp %640 : vector<2x192xf32>
    %cst_116 = arith.constant 1.000000e+00 : f32
    %642 = vector.broadcast %cst_116 : f32 to vector<2x192xf32>
    %643 = arith.addf %642, %641 : vector<2x192xf32>
    %644 = arith.divf %642, %643 : vector<2x192xf32>
    %645 = vector.extract_strided_slice %644 {offsets = [0, 0], sizes = [2, 64], strides = [1, 1]} : vector<2x192xf32> to vector<2x64xf32>
    %646 = vector.extract_strided_slice %644 {offsets = [0, 64], sizes = [2, 64], strides = [1, 1]} : vector<2x192xf32> to vector<2x64xf32>
    %647 = vector.extract_strided_slice %644 {offsets = [0, 128], sizes = [2, 64], strides = [1, 1]} : vector<2x192xf32> to vector<2x64xf32>
    %648 = vector.extract_strided_slice %638 {offsets = [0, 192], sizes = [2, 64], strides = [1, 1]} : vector<2x256xf32> to vector<2x64xf32>
    %649 = math.tanh %648 : vector<2x64xf32>
    %650 = arith.mulf %646, %613 : vector<2x64xf32>
    %651 = arith.mulf %645, %649 : vector<2x64xf32>
    %652 = arith.addf %650, %651 : vector<2x64xf32>
    %653 = math.tanh %652 : vector<2x64xf32>
    %654 = arith.mulf %647, %653 : vector<2x64xf32>
    %655 = tpu.concatenate %654, %635 in 1 : vector<2x64xf32>, vector<2x64xf32> -> vector<2x128xf32>
    %cst_117 = arith.constant dense<0.000000e+00> : vector<2x256xf32>
    %656 = tpu.matmul %655, %438, %cst_117 {dimension_numbers = #tpu.dot_dimension_numbers<[1], [0], [0], [1], [0, 0, 1, 1], [], []>} : vector<2x128xf32>, vector<128x256xf32>, vector<2x256xf32> -> vector<2x256xf32>
    %657 = vector.broadcast %439 : vector<1x256xf32> to vector<2x256xf32>
    %658 = arith.addf %657, %656 : vector<2x256xf32>
    %659 = vector.extract_strided_slice %658 {offsets = [0, 0], sizes = [2, 192], strides = [1, 1]} : vector<2x256xf32> to vector<2x192xf32>
    %660 = arith.negf %659 : vector<2x192xf32>
    %661 = math.exp %660 : vector<2x192xf32>
    %cst_118 = arith.constant 1.000000e+00 : f32
    %662 = vector.broadcast %cst_118 : f32 to vector<2x192xf32>
    %663 = arith.addf %662, %661 : vector<2x192xf32>
    %664 = arith.divf %662, %663 : vector<2x192xf32>
    %665 = vector.extract_strided_slice %664 {offsets = [0, 0], sizes = [2, 64], strides = [1, 1]} : vector<2x192xf32> to vector<2x64xf32>
    %666 = vector.extract_strided_slice %664 {offsets = [0, 64], sizes = [2, 64], strides = [1, 1]} : vector<2x192xf32> to vector<2x64xf32>
    %667 = vector.extract_strided_slice %664 {offsets = [0, 128], sizes = [2, 64], strides = [1, 1]} : vector<2x192xf32> to vector<2x64xf32>
    %668 = vector.extract_strided_slice %658 {offsets = [0, 192], sizes = [2, 64], strides = [1, 1]} : vector<2x256xf32> to vector<2x64xf32>
    %669 = math.tanh %668 : vector<2x64xf32>
    %670 = arith.mulf %666, %633 : vector<2x64xf32>
    %671 = arith.mulf %665, %669 : vector<2x64xf32>
    %672 = arith.addf %670, %671 : vector<2x64xf32>
    %673 = math.tanh %672 : vector<2x64xf32>
    %674 = arith.mulf %667, %673 : vector<2x64xf32>
    %675 = vector.extract_strided_slice %436 {offsets = [12, 0], sizes = [2, 256], strides = [1, 1]} : vector<16x256xf32> to vector<2x256xf32>
    %cst_119 = arith.constant dense<0.000000e+00> : vector<2x256xf32>
    %676 = tpu.matmul %654, %437, %cst_119 {dimension_numbers = #tpu.dot_dimension_numbers<[1], [0], [0], [1], [0, 0, 1, 1], [], []>} : vector<2x64xf32>, vector<64x256xf32>, vector<2x256xf32> -> vector<2x256xf32>
    %677 = arith.addf %675, %676 : vector<2x256xf32>
    %678 = vector.extract_strided_slice %677 {offsets = [0, 0], sizes = [2, 192], strides = [1, 1]} : vector<2x256xf32> to vector<2x192xf32>
    %679 = arith.negf %678 : vector<2x192xf32>
    %680 = math.exp %679 : vector<2x192xf32>
    %cst_120 = arith.constant 1.000000e+00 : f32
    %681 = vector.broadcast %cst_120 : f32 to vector<2x192xf32>
    %682 = arith.addf %681, %680 : vector<2x192xf32>
    %683 = arith.divf %681, %682 : vector<2x192xf32>
    %684 = vector.extract_strided_slice %683 {offsets = [0, 0], sizes = [2, 64], strides = [1, 1]} : vector<2x192xf32> to vector<2x64xf32>
    %685 = vector.extract_strided_slice %683 {offsets = [0, 64], sizes = [2, 64], strides = [1, 1]} : vector<2x192xf32> to vector<2x64xf32>
    %686 = vector.extract_strided_slice %683 {offsets = [0, 128], sizes = [2, 64], strides = [1, 1]} : vector<2x192xf32> to vector<2x64xf32>
    %687 = vector.extract_strided_slice %677 {offsets = [0, 192], sizes = [2, 64], strides = [1, 1]} : vector<2x256xf32> to vector<2x64xf32>
    %688 = math.tanh %687 : vector<2x64xf32>
    %689 = arith.mulf %685, %652 : vector<2x64xf32>
    %690 = arith.mulf %684, %688 : vector<2x64xf32>
    %691 = arith.addf %689, %690 : vector<2x64xf32>
    %692 = math.tanh %691 : vector<2x64xf32>
    %693 = arith.mulf %686, %692 : vector<2x64xf32>
    %694 = tpu.concatenate %693, %674 in 1 : vector<2x64xf32>, vector<2x64xf32> -> vector<2x128xf32>
    %cst_121 = arith.constant dense<0.000000e+00> : vector<2x256xf32>
    %695 = tpu.matmul %694, %438, %cst_121 {dimension_numbers = #tpu.dot_dimension_numbers<[1], [0], [0], [1], [0, 0, 1, 1], [], []>} : vector<2x128xf32>, vector<128x256xf32>, vector<2x256xf32> -> vector<2x256xf32>
    %696 = vector.broadcast %439 : vector<1x256xf32> to vector<2x256xf32>
    %697 = arith.addf %696, %695 : vector<2x256xf32>
    %698 = vector.extract_strided_slice %697 {offsets = [0, 0], sizes = [2, 192], strides = [1, 1]} : vector<2x256xf32> to vector<2x192xf32>
    %699 = arith.negf %698 : vector<2x192xf32>
    %700 = math.exp %699 : vector<2x192xf32>
    %cst_122 = arith.constant 1.000000e+00 : f32
    %701 = vector.broadcast %cst_122 : f32 to vector<2x192xf32>
    %702 = arith.addf %701, %700 : vector<2x192xf32>
    %703 = arith.divf %701, %702 : vector<2x192xf32>
    %704 = vector.extract_strided_slice %703 {offsets = [0, 0], sizes = [2, 64], strides = [1, 1]} : vector<2x192xf32> to vector<2x64xf32>
    %705 = vector.extract_strided_slice %703 {offsets = [0, 64], sizes = [2, 64], strides = [1, 1]} : vector<2x192xf32> to vector<2x64xf32>
    %706 = vector.extract_strided_slice %703 {offsets = [0, 128], sizes = [2, 64], strides = [1, 1]} : vector<2x192xf32> to vector<2x64xf32>
    %707 = vector.extract_strided_slice %697 {offsets = [0, 192], sizes = [2, 64], strides = [1, 1]} : vector<2x256xf32> to vector<2x64xf32>
    %708 = math.tanh %707 : vector<2x64xf32>
    %709 = arith.mulf %705, %672 : vector<2x64xf32>
    %710 = arith.mulf %704, %708 : vector<2x64xf32>
    %711 = arith.addf %709, %710 : vector<2x64xf32>
    %712 = math.tanh %711 : vector<2x64xf32>
    %713 = arith.mulf %706, %712 : vector<2x64xf32>
    %714 = vector.extract_strided_slice %436 {offsets = [14, 0], sizes = [2, 256], strides = [1, 1]} : vector<16x256xf32> to vector<2x256xf32>
    %cst_123 = arith.constant dense<0.000000e+00> : vector<2x256xf32>
    %715 = tpu.matmul %693, %437, %cst_123 {dimension_numbers = #tpu.dot_dimension_numbers<[1], [0], [0], [1], [0, 0, 1, 1], [], []>} : vector<2x64xf32>, vector<64x256xf32>, vector<2x256xf32> -> vector<2x256xf32>
    %716 = arith.addf %714, %715 : vector<2x256xf32>
    %717 = vector.extract_strided_slice %716 {offsets = [0, 0], sizes = [2, 192], strides = [1, 1]} : vector<2x256xf32> to vector<2x192xf32>
    %718 = arith.negf %717 : vector<2x192xf32>
    %719 = math.exp %718 : vector<2x192xf32>
    %cst_124 = arith.constant 1.000000e+00 : f32
    %720 = vector.broadcast %cst_124 : f32 to vector<2x192xf32>
    %721 = arith.addf %720, %719 : vector<2x192xf32>
    %722 = arith.divf %720, %721 : vector<2x192xf32>
    %723 = vector.extract_strided_slice %722 {offsets = [0, 0], sizes = [2, 64], strides = [1, 1]} : vector<2x192xf32> to vector<2x64xf32>
    %724 = vector.extract_strided_slice %722 {offsets = [0, 64], sizes = [2, 64], strides = [1, 1]} : vector<2x192xf32> to vector<2x64xf32>
    %725 = vector.extract_strided_slice %722 {offsets = [0, 128], sizes = [2, 64], strides = [1, 1]} : vector<2x192xf32> to vector<2x64xf32>
    %726 = vector.extract_strided_slice %716 {offsets = [0, 192], sizes = [2, 64], strides = [1, 1]} : vector<2x256xf32> to vector<2x64xf32>
    %727 = math.tanh %726 : vector<2x64xf32>
    %728 = arith.mulf %724, %691 : vector<2x64xf32>
    %729 = arith.mulf %723, %727 : vector<2x64xf32>
    %730 = arith.addf %728, %729 : vector<2x64xf32>
    %731 = math.tanh %730 : vector<2x64xf32>
    %732 = arith.mulf %725, %731 : vector<2x64xf32>
    %733 = tpu.concatenate %732, %713 in 1 : vector<2x64xf32>, vector<2x64xf32> -> vector<2x128xf32>
    %cst_125 = arith.constant dense<0.000000e+00> : vector<2x256xf32>
    %734 = tpu.matmul %733, %438, %cst_125 {dimension_numbers = #tpu.dot_dimension_numbers<[1], [0], [0], [1], [0, 0, 1, 1], [], []>} : vector<2x128xf32>, vector<128x256xf32>, vector<2x256xf32> -> vector<2x256xf32>
    %735 = vector.broadcast %439 : vector<1x256xf32> to vector<2x256xf32>
    %736 = arith.addf %735, %734 : vector<2x256xf32>
    %737 = vector.extract_strided_slice %736 {offsets = [0, 0], sizes = [2, 192], strides = [1, 1]} : vector<2x256xf32> to vector<2x192xf32>
    %738 = arith.negf %737 : vector<2x192xf32>
    %739 = math.exp %738 : vector<2x192xf32>
    %cst_126 = arith.constant 1.000000e+00 : f32
    %740 = vector.broadcast %cst_126 : f32 to vector<2x192xf32>
    %741 = arith.addf %740, %739 : vector<2x192xf32>
    %742 = arith.divf %740, %741 : vector<2x192xf32>
    %743 = vector.extract_strided_slice %742 {offsets = [0, 0], sizes = [2, 64], strides = [1, 1]} : vector<2x192xf32> to vector<2x64xf32>
    %744 = vector.extract_strided_slice %742 {offsets = [0, 64], sizes = [2, 64], strides = [1, 1]} : vector<2x192xf32> to vector<2x64xf32>
    %745 = vector.extract_strided_slice %742 {offsets = [0, 128], sizes = [2, 64], strides = [1, 1]} : vector<2x192xf32> to vector<2x64xf32>
    %746 = vector.extract_strided_slice %736 {offsets = [0, 192], sizes = [2, 64], strides = [1, 1]} : vector<2x256xf32> to vector<2x64xf32>
    %747 = math.tanh %746 : vector<2x64xf32>
    %748 = arith.mulf %744, %711 : vector<2x64xf32>
    %749 = arith.mulf %743, %747 : vector<2x64xf32>
    %750 = arith.addf %748, %749 : vector<2x64xf32>
    %751 = math.tanh %750 : vector<2x64xf32>
    %752 = arith.mulf %745, %751 : vector<2x64xf32>
    %cst_127 = arith.constant 0.000000e+00 : f32
    %753 = vector.broadcast %cst_127 : f32 to vector<2x64xf32>
    %754 = arith.maximumf %752, %753 : vector<2x64xf32>
    %c0_128 = arith.constant 0 : index
    %c0_129 = arith.constant 0 : index
    %755 = vector.load %arg15[%c0_128, %c0_129] : memref<64x1xf32, #tpu.memory_space<vmem>>, vector<64x1xf32>
    %cst_130 = arith.constant dense<0.000000e+00> : vector<2x1xf32>
    %756 = tpu.matmul %754, %755, %cst_130 {dimension_numbers = #tpu.dot_dimension_numbers<[1], [0], [0], [1], [0, 0, 1, 1], [], []>} : vector<2x64xf32>, vector<64x1xf32>, vector<2x1xf32> -> vector<2x1xf32>
    %c0_131 = arith.constant 0 : index
    %c0_132 = arith.constant 0 : index
    %757 = vector.load %arg16[%c0_131, %c0_132] : memref<1x1xf32, #tpu.memory_space<vmem>>, vector<1x1xf32>
    %758 = vector.broadcast %757 : vector<1x1xf32> to vector<2x1xf32>
    %759 = arith.addf %756, %758 : vector<2x1xf32>
    %c0_133 = arith.constant 0 : index
    %c0_134 = arith.constant 0 : index
    %760 = vector.load %arg17[%c0_133, %c0_134] : memref<2x1xf32, #tpu.memory_space<vmem>>, vector<2x1xf32>
    tpu.vector_store %arg17[%c0_133, %c0_134], %759 {strides = array<i32>} : memref<2x1xf32, #tpu.memory_space<vmem>>, vector<2x1xf32>,
    return
  }
}

</mosaic_0001>

<llo_original>
// kernel: tpu_custom_call.1
$region0: #{tpu_custom_call.1}
  #allocation0 [shape = 'u32[]', space=smem, size = 0x4, offset = 0x4, fixed_abs, tag = 'smem constant byte address 0x4 - core index']
  #allocation1 [shape = 'u32[144,128]{1,0:T(1,128)}', space=vmem, size = 0x12000, scoped, tag = 'internal scratch']
  #allocation2 [shape = 'f32[1,1]{1,0:T(1,128)S(1)}', space=vmem, size = 0x200, scoped, tag = 'scoped memory for tpu_custom_call.1']
  %s0 = inlined_call_operand.vmem [shape: f32[2,32], index: 0, kind: input, shape index: {}]
  %s1 = inlined_call_operand.hbm [shape: f32[32,128], index: 1, kind: input, shape index: {}]
  %s2 = inlined_call_operand.hbm [shape: f32[32,128], index: 2, kind: input, shape index: {}]
  %s3 = inlined_call_operand.hbm [shape: f32[1,128], index: 3, kind: input, shape index: {}]
  %s4 = inlined_call_operand.vmem [shape: f32[64,128], index: 4, kind: input, shape index: {}]
  %s5 = inlined_call_operand.hbm [shape: f32[1,128], index: 5, kind: input, shape index: {}]
  %s6 = inlined_call_operand.hbm [shape: f32[32,96], index: 6, kind: input, shape index: {}]
  %s7 = inlined_call_operand.hbm [shape: f32[1,96], index: 7, kind: input, shape index: {}]
  %s8 = inlined_call_operand.vmem [shape: f32[32,32], index: 8, kind: input, shape index: {}]
  %s9 = inlined_call_operand.hbm [shape: f32[1,32], index: 9, kind: input, shape index: {}]
  %s10 = inlined_call_operand.hbm [shape: f32[32,256], index: 10, kind: input, shape index: {}]
  %s11 = inlined_call_operand.hbm [shape: f32[64,256], index: 11, kind: input, shape index: {}]
  %s12 = inlined_call_operand.vmem [shape: f32[1,256], index: 12, kind: input, shape index: {}]
  %s13 = inlined_call_operand.hbm [shape: f32[128,256], index: 13, kind: input, shape index: {}]
  %s14 = inlined_call_operand.vmem [shape: f32[1,256], index: 14, kind: input, shape index: {}]
  %s15 = inlined_call_operand.vmem [shape: f32[64,1], index: 15, kind: input, shape index: {}]
  %s16 = inlined_call_operand.<no memory space> [shape: f32[1,1], index: 16, kind: input, shape index: {}]
  %s17 = inlined_call_operand.vmem [shape: f32[2,1], index: 17, kind: output, shape index: {}]
  %s18 = sld [smem:[#allocation0]]
  $region118: #{tpu_custom_call.1} parent=0
    _
  %s20 = ssub.s32 1, %s18
  %s21 = scalar_select 0, %s20, %s18
  %v22 = vstv %s16
  %23 = vst [vmem:[#allocation2] sm:$0x1] %v22
  $region1: #{tpu_custom_call.1} parent=0
    #allocation3 [shape = 'u8[16384]{0}', space=vmem, size = 0x4000, scoped, tag = 'input window, operand 1, single buffered']
    #allocation4 [shape = 's32[1]{0}', space=sflag, size = 0x4, scoped, tag = 'scoped memory for tpu_custom_call.1']
    #allocation5 [shape = 'u8[16384]{0}', space=vmem, size = 0x4000, scoped, tag = 'input window, operand 2, single buffered']
    #allocation6 [shape = 's32[1]{0}', space=sflag, size = 0x4, scoped, tag = 'scoped memory for tpu_custom_call.1']
    #allocation7 [shape = 'u8[512]{0}', space=vmem, size = 0x400, scoped, tag = 'input window, operand 3, single buffered']
    #allocation8 [shape = 'u8[512]{0}', space=vmem, size = 0x400, scoped, tag = 'input window, operand 5, single buffered']
    #allocation9 [shape = 's32[1]{0}', space=sflag, size = 0x4, scoped, tag = 'scoped memory for tpu_custom_call.1']
    #allocation10 [shape = 'u8[16384]{0}', space=vmem, size = 0x4000, scoped, tag = 'input window, operand 6, single buffered']
    #allocation11 [shape = 'u8[512]{0}', space=vmem, size = 0x400, scoped, tag = 'input window, operand 7, single buffered']
    #allocation12 [shape = 's32[1]{0}', space=sflag, size = 0x4, scoped, tag = 'scoped memory for tpu_custom_call.1']
    #allocation13 [shape = 'u8[512]{0}', space=vmem, size = 0x400, scoped, tag = 'input window, operand 9, single buffered']
    #allocation14 [shape = 'u8[32768]{0}', space=vmem, size = 0x8000, scoped, tag = 'input window, operand 10, single buffered']
    #allocation15 [shape = 's32[1]{0}', space=sflag, size = 0x4, scoped, tag = 'scoped memory for tpu_custom_call.1']
    #allocation16 [shape = 'u8[65536]{0}', space=vmem, size = 0x10000, scoped, tag = 'input window, operand 11, single buffered']
    #allocation17 [shape = 'u8[131072]{0}', space=vmem, size = 0x20000, scoped, tag = 'input window, operand 13, single buffered']
    #allocation18 [shape = 's32[1]{0}', space=sflag, size = 0x4, scoped, tag = 'scoped memory for tpu_custom_call.1']
    %24 = vsyncpa [#allocation4], 0
    %25 = vsyncpa [#allocation6], 0
    %26 = vsyncpa [#allocation9], 0
    %27 = vsyncpa [#allocation12], 0
    %28 = vsyncpa [#allocation15], 0
    %29 = vsyncpa [#allocation18], 0
    // Predicated region
    $region2: #{tpu_custom_call.1} parent=1 // pred_check
      _
    $region3: #{tpu_custom_call.1} parent=1 // pred_check_branch
      %31 = sbr.rel (0) target = $region5
    $region4: #{tpu_custom_call.1} parent=1 // pred_region
      _
    $region5: #{tpu_custom_call.1} parent=1 // pred_fallthru
      _
    // Predicated region
    $region6: #{tpu_custom_call.1} parent=1 // pred_check
      _
    $region7: #{tpu_custom_call.1} parent=1 // pred_check_branch
      %33 = sbr.rel (0) target = $region9
    $region8: #{tpu_custom_call.1} parent=1 // pred_region
      %s35 = ssub.s32 512, 512
      %36 = vsyncadd [#allocation4], %s35
      %s37 = sshll.u32 [#allocation3], 4
      %s38 = int_to_ptr.vmem [resolvable:$true] %s37
      %43 = dma.hbm_to_vmem [thread:$0]  %s1, 512, %s38, [#allocation4], 128, 128, 8
    $region9: #{tpu_custom_call.1} parent=1 // pred_fallthru
      _
    // Predicated region
    $region10: #{tpu_custom_call.1} parent=1 // pred_check
      _
    $region11: #{tpu_custom_call.1} parent=1 // pred_check_branch
      %45 = sbr.rel (0) target = $region13
    $region12: #{tpu_custom_call.1} parent=1 // pred_region
      %s47 = ssub.s32 512, 512
      %48 = vsyncadd [#allocation6], %s47
      %s49 = sshll.u32 [#allocation5], 4
      %s50 = int_to_ptr.vmem [resolvable:$true] %s49
      %55 = dma.hbm_to_vmem [thread:$0]  %s2, 512, %s50, [#allocation6], 128, 128, 8
    $region13: #{tpu_custom_call.1} parent=1 // pred_fallthru
      _
    // Predicated region
    $region14: #{tpu_custom_call.1} parent=1 // pred_check
      _
    $region15: #{tpu_custom_call.1} parent=1 // pred_check_branch
      %57 = sbr.rel (0) target = $region17
    $region16: #{tpu_custom_call.1} parent=1 // pred_region
      %s59 = ssub.s32 16, 16
      %60 = vsyncadd [#allocation6], %s59
      %s62 = sshll.u32 [#allocation7], 4
      %s63 = int_to_ptr.vmem [resolvable:$true] %s62
      %65 = dma.hbm_to_vmem [thread:$0]  %s3, 16, %s63, [#allocation6]
    $region17: #{tpu_custom_call.1} parent=1 // pred_fallthru
      _
    // Predicated region
    $region18: #{tpu_custom_call.1} parent=1 // pred_check
      _
    $region19: #{tpu_custom_call.1} parent=1 // pred_check_branch
      %67 = sbr.rel (0) target = $region21
    $region20: #{tpu_custom_call.1} parent=1 // pred_region
      _
    $region21: #{tpu_custom_call.1} parent=1 // pred_fallthru
      _
    // Predicated region
    $region22: #{tpu_custom_call.1} parent=1 // pred_check
      _
    $region23: #{tpu_custom_call.1} parent=1 // pred_check_branch
      %69 = sbr.rel (0) target = $region25
    $region24: #{tpu_custom_call.1} parent=1 // pred_region
      %s71 = ssub.s32 16, 16
      %72 = vsyncadd [#allocation9], %s71
      %s74 = sshll.u32 [#allocation8], 4
      %s75 = int_to_ptr.vmem [resolvable:$true] %s74
      %77 = dma.hbm_to_vmem [thread:$0]  %s5, 16, %s75, [#allocation9]
    $region25: #{tpu_custom_call.1} parent=1 // pred_fallthru
      _
    // Predicated region
    $region26: #{tpu_custom_call.1} parent=1 // pred_check
      _
    $region27: #{tpu_custom_call.1} parent=1 // pred_check_branch
      %79 = sbr.rel (0) target = $region29
    $region28: #{tpu_custom_call.1} parent=1 // pred_region
      %s81 = ssub.s32 512, 512
      %82 = vsyncadd [#allocation9], %s81
      %s83 = sshll.u32 [#allocation10], 4
      %s84 = int_to_ptr.vmem [resolvable:$true] %s83
      %89 = dma.hbm_to_vmem [thread:$0]  %s6, 512, %s84, [#allocation9], 128, 128, 8
    $region29: #{tpu_custom_call.1} parent=1 // pred_fallthru
      _
    // Predicated region
    $region30: #{tpu_custom_call.1} parent=1 // pred_check
      _
    $region31: #{tpu_custom_call.1} parent=1 // pred_check_branch
      %91 = sbr.rel (0) target = $region33
    $region32: #{tpu_custom_call.1} parent=1 // pred_region
      %s93 = ssub.s32 16, 16
      %94 = vsyncadd [#allocation12], %s93
      %s96 = sshll.u32 [#allocation11], 4
      %s97 = int_to_ptr.vmem [resolvable:$true] %s96
      %99 = dma.hbm_to_vmem [thread:$0]  %s7, 16, %s97, [#allocation12]
    $region33: #{tpu_custom_call.1} parent=1 // pred_fallthru
      _
    // Predicated region
    $region34: #{tpu_custom_call.1} parent=1 // pred_check
      _
    $region35: #{tpu_custom_call.1} parent=1 // pred_check_branch
      %101 = sbr.rel (0) target = $region37
    $region36: #{tpu_custom_call.1} parent=1 // pred_region
      _
    $region37: #{tpu_custom_call.1} parent=1 // pred_fallthru
      _
    // Predicated region
    $region38: #{tpu_custom_call.1} parent=1 // pred_check
      _
    $region39: #{tpu_custom_call.1} parent=1 // pred_check_branch
      %103 = sbr.rel (0) target = $region41
    $region40: #{tpu_custom_call.1} parent=1 // pred_region
      %s105 = ssub.s32 16, 16
      %106 = vsyncadd [#allocation12], %s105
      %s108 = sshll.u32 [#allocation13], 4
      %s109 = int_to_ptr.vmem [resolvable:$true] %s108
      %111 = dma.hbm_to_vmem [thread:$0]  %s9, 16, %s109, [#allocation12]
    $region41: #{tpu_custom_call.1} parent=1 // pred_fallthru
      _
    // Predicated region
    $region42: #{tpu_custom_call.1} parent=1 // pred_check
      _
    $region43: #{tpu_custom_call.1} parent=1 // pred_check_branch
      %113 = sbr.rel (0) target = $region45
    $region44: #{tpu_custom_call.1} parent=1 // pred_region
      %s115 = ssub.s32 1024, 1024
      %116 = vsyncadd [#allocation15], %s115
      %s117 = sshll.u32 [#allocation14], 4
      %s118 = int_to_ptr.vmem [resolvable:$true] %s117
      %123 = dma.hbm_to_vmem [thread:$0]  %s10, 1024, %s118, [#allocation15], 256, 256, 16
    $region45: #{tpu_custom_call.1} parent=1 // pred_fallthru
      _
    // Predicated region
    $region46: #{tpu_custom_call.1} parent=1 // pred_check
      _
    $region47: #{tpu_custom_call.1} parent=1 // pred_check_branch
      %125 = sbr.rel (0) target = $region49
    $region48: #{tpu_custom_call.1} parent=1 // pred_region
      %s127 = ssub.s32 2048, 2048
      %128 = vsyncadd [#allocation15], %s127
      %s129 = sshll.u32 [#allocation16], 4
      %s130 = int_to_ptr.vmem [resolvable:$true] %s129
      %135 = dma.hbm_to_vmem [thread:$0]  %s11, 2048, %s130, [#allocation15], 256, 256, 16
    $region49: #{tpu_custom_call.1} parent=1 // pred_fallthru
      _
    // Predicated region
    $region50: #{tpu_custom_call.1} parent=1 // pred_check
      _
    $region51: #{tpu_custom_call.1} parent=1 // pred_check_branch
      %137 = sbr.rel (0) target = $region53
    $region52: #{tpu_custom_call.1} parent=1 // pred_region
      _
    $region53: #{tpu_custom_call.1} parent=1 // pred_fallthru
      _
    // Predicated region
    $region54: #{tpu_custom_call.1} parent=1 // pred_check
      _
    $region55: #{tpu_custom_call.1} parent=1 // pred_check_branch
      %139 = sbr.rel (0) target = $region57
    $region56: #{tpu_custom_call.1} parent=1 // pred_region
      %s141 = ssub.s32 4096, 4096
      %142 = vsyncadd [#allocation18], %s141
      %s143 = sshll.u32 [#allocation17], 4
      %s144 = int_to_ptr.vmem [resolvable:$true] %s143
      %149 = dma.hbm_to_vmem [thread:$0]  %s13, 4096, %s144, [#allocation18], 256, 256, 16
    $region57: #{tpu_custom_call.1} parent=1 // pred_fallthru
      _
    // Predicated region
    $region58: #{tpu_custom_call.1} parent=1 // pred_check
      _
    $region59: #{tpu_custom_call.1} parent=1 // pred_check_branch
      %151 = sbr.rel (0) target = $region61
    $region60: #{tpu_custom_call.1} parent=1 // pred_region
      _
    $region61: #{tpu_custom_call.1} parent=1 // pred_fallthru
      _
    // Predicated region
    $region62: #{tpu_custom_call.1} parent=1 // pred_check
      _
    $region63: #{tpu_custom_call.1} parent=1 // pred_check_branch
      %153 = sbr.rel (0) target = $region65
    $region64: #{tpu_custom_call.1} parent=1 // pred_region
      _
    $region65: #{tpu_custom_call.1} parent=1 // pred_fallthru
      _
    // Predicated region
    $region66: #{tpu_custom_call.1} parent=1 // pred_check
      _
    $region67: #{tpu_custom_call.1} parent=1 // pred_check_branch
      %155 = sbr.rel (0) target = $region69
    $region68: #{tpu_custom_call.1} parent=1 // pred_region
      _
    $region69: #{tpu_custom_call.1} parent=1 // pred_fallthru
      _
    // Predicated region
    $region70: #{tpu_custom_call.1} parent=1 // pred_check
      _
    $region71: #{tpu_custom_call.1} parent=1 // pred_check_branch
      %157 = sbr.rel (0) target = $region73
    $region72: #{tpu_custom_call.1} parent=1 // pred_region
      %158 = dma.done [#allocation4], 512
    $region73: #{tpu_custom_call.1} parent=1 // pred_fallthru
      _
    // Predicated region
    $region74: #{tpu_custom_call.1} parent=1 // pred_check
      _
    $region75: #{tpu_custom_call.1} parent=1 // pred_check_branch
      %160 = sbr.rel (0) target = $region77
    $region76: #{tpu_custom_call.1} parent=1 // pred_region
      %161 = dma.done [#allocation6], 512
    $region77: #{tpu_custom_call.1} parent=1 // pred_fallthru
      _
    // Predicated region
    $region78: #{tpu_custom_call.1} parent=1 // pred_check
      _
    $region79: #{tpu_custom_call.1} parent=1 // pred_check_branch
      %163 = sbr.rel (0) target = $region81
    $region80: #{tpu_custom_call.1} parent=1 // pred_region
      %164 = dma.done [#allocation6], 16
    $region81: #{tpu_custom_call.1} parent=1 // pred_fallthru
      _
    // Predicated region
    $region82: #{tpu_custom_call.1} parent=1 // pred_check
      _
    $region83: #{tpu_custom_call.1} parent=1 // pred_check_branch
      %166 = sbr.rel (0) target = $region85
    $region84: #{tpu_custom_call.1} parent=1 // pred_region
      %167 = dma.done [#allocation9], 16
    $region85: #{tpu_custom_call.1} parent=1 // pred_fallthru
      _
    // Predicated region
    $region86: #{tpu_custom_call.1} parent=1 // pred_check
      _
    $region87: #{tpu_custom_call.1} parent=1 // pred_check_branch
      %169 = sbr.rel (0) target = $region89
    $region88: #{tpu_custom_call.1} parent=1 // pred_region
      %170 = dma.done [#allocation9], 512
    $region89: #{tpu_custom_call.1} parent=1 // pred_fallthru
      _
    // Predicated region
    $region90: #{tpu_custom_call.1} parent=1 // pred_check
      _
    $region91: #{tpu_custom_call.1} parent=1 // pred_check_branch
      %172 = sbr.rel (0) target = $region93
    $region92: #{tpu_custom_call.1} parent=1 // pred_region
      %173 = dma.done [#allocation12], 16
    $region93: #{tpu_custom_call.1} parent=1 // pred_fallthru
      _
    // Predicated region
    $region94: #{tpu_custom_call.1} parent=1 // pred_check
      _
    $region95: #{tpu_custom_call.1} parent=1 // pred_check_branch
      %175 = sbr.rel (0) target = $region97
    $region96: #{tpu_custom_call.1} parent=1 // pred_region
      %176 = dma.done [#allocation12], 16
    $region97: #{tpu_custom_call.1} parent=1 // pred_fallthru
      _
    // Predicated region
    $region98: #{tpu_custom_call.1} parent=1 // pred_check
      _
    $region99: #{tpu_custom_call.1} parent=1 // pred_check_branch
      %178 = sbr.rel (0) target = $region101
    $region100: #{tpu_custom_call.1} parent=1 // pred_region
      %179 = dma.done [#allocation15], 1024
    $region101: #{tpu_custom_call.1} parent=1 // pred_fallthru
      _
    // Predicated region
    $region102: #{tpu_custom_call.1} parent=1 // pred_check
      _
    $region103: #{tpu_custom_call.1} parent=1 // pred_check_branch
      %181 = sbr.rel (0) target = $region105
    $region104: #{tpu_custom_call.1} parent=1 // pred_region
      %182 = dma.done [#allocation15], 2048
    $region105: #{tpu_custom_call.1} parent=1 // pred_fallthru
      _
    // Predicated region
    $region106: #{tpu_custom_call.1} parent=1 // pred_check
      _
    $region107: #{tpu_custom_call.1} parent=1 // pred_check_branch
      %184 = sbr.rel (0) target = $region109
    $region108: #{tpu_custom_call.1} parent=1 // pred_region
      %185 = dma.done [#allocation18], 4096
    $region109: #{tpu_custom_call.1} parent=1 // pred_fallthru
      _
    %v186 = vld [vmem:[%s0] sm:$0x3]
    %v187 = vld [vmem:[#allocation3] sm:$0xff]
    %v188 = vld [vmem:[#allocation3 + $0x8] sm:$0xff]
    %v189 = vld [vmem:[#allocation3 + $0x10] sm:$0xff]
    %v190 = vld [vmem:[#allocation3 + $0x18] sm:$0xff]
    %v191 = vld [vmem:[#allocation7] sm:$0x1]
    %v193 = vlaneseq
    %v194 = vshrl.u32 %v193, 7
    %v195 = vsub.s32 0, %v194
    %v196 = vrot.slane %v191, %v195
    %vm198 = vcmask 261120
    %v200 = vsel %vm198, %v186, 0
    %202 = vmatprep.subr.mxu0 0.0
    %203 = vmatpush1.msra.mxu0 %v187
    %204 = vmatprep.subr.mxu0 0.0
    %205 = vmatpush1.msra.mxu0 %v188
    %206 = vmatprep.subr.mxu0 0.0
    %207 = vmatpush1.msra.mxu0 %v189
    %208 = vmatprep.subr.mxu0 0.0
    %209 = vmatpush1.msra.mxu0 %v190
    %210 = vmatprep.subr.mxu0 0.0
    %211 = vmatpush1.msra.mxu0 0.0
    %212 = vmatprep.subr.mxu0 0.0
    %213 = vmatpush1.msra.mxu0 0.0
    %214 = vmatprep.subr.mxu0 0.0
    %215 = vmatpush1.msra.mxu0 0.0
    %216 = vmatprep.subr.mxu0 0.0
    %217 = vmatpush1.msra.mxu0 0.0
    %218 = vmatprep.subr.mxu0 0.0
    %219 = vmatpush1.msra.mxu0 0.0
    %220 = vmatprep.subr.mxu0 0.0
    %221 = vmatpush1.msra.mxu0 0.0
    %222 = vmatprep.subr.mxu0 0.0
    %223 = vmatpush1.msra.mxu0 0.0
    %224 = vmatprep.subr.mxu0 0.0
    %225 = vmatpush1.msra.mxu0 0.0
    %226 = vmatprep.subr.mxu0 0.0
    %227 = vmatpush1.msra.mxu0 0.0
    %228 = vmatprep.subr.mxu0 0.0
    %229 = vmatpush1.msra.mxu0 0.0
    %230 = vmatprep.subr.mxu0 0.0
    %231 = vmatpush1.msra.mxu0 0.0
    %232 = vmatprep.subr.mxu0 0.0
    %233 = vmatpush1.msra.mxu0 0.0
    %234 = vmatprep.subr.mxu0 0.0
    %235 = vmatpush1.msra.mxu0 0.0
    %236 = vmatprep.subr.mxu0 0.0
    %237 = vmatpush1.msra.mxu0 0.0
    %238 = vmatprep.subr.mxu0 0.0
    %239 = vmatpush1.msra.mxu0 0.0
    %240 = vmatprep.subr.mxu0 0.0
    %241 = vmatpush1.msra.mxu0 0.0
    %242 = vmatprep.subr.mxu0 0.0
    %243 = vmatpush1.msra.mxu0 0.0
    %244 = vmatprep.subr.mxu0 0.0
    %245 = vmatpush1.msra.mxu0 0.0
    %246 = vmatprep.subr.mxu0 0.0
    %247 = vmatpush1.msra.mxu0 0.0
    %248 = vmatprep.subr.mxu0 0.0
    %249 = vmatpush1.msra.mxu0 0.0
    %250 = vmatprep.subr.mxu0 0.0
    %251 = vmatpush1.msra.mxu0 0.0
    %252 = vmatprep.subr.mxu0 0.0
    %253 = vmatpush1.msra.mxu0 0.0
    %254 = vmatprep.subr.mxu0 0.0
    %255 = vmatpush1.msra.mxu0 0.0
    %256 = vmatprep.subr.mxu0 0.0
    %257 = vmatpush1.msra.mxu0 0.0
    %258 = vmatprep.subr.mxu0 0.0
    %259 = vmatpush1.msra.mxu0 0.0
    %260 = vmatprep.subr.mxu0 0.0
    %261 = vmatpush1.msra.mxu0 0.0
    %262 = vmatprep.subr.mxu0 0.0
    %263 = vmatpush1.msra.mxu0 0.0
    %264 = vmatprep.subr.mxu0 0.0
    %265 = vmatpush1.msra.mxu0 0.0
    %266 = vmatprep.mubr.f32.mxu0 0.0
    %267 = vmatmul.mubr.f32.gmra.mrb[0].mxu0 %v200
    %v268 = vpop.f32.mrb[0].mxu0
    %v269 = vadd.f32 %v196, %v268
    %v270 = vpop.f32.mrb[0].mxu0
    %271 = vdwg.mxu0
    %v272 = vld [vmem:[#allocation5] sm:$0xff]
    %v273 = vld [vmem:[#allocation5 + $0x8] sm:$0xff]
    %v274 = vld [vmem:[#allocation5 + $0x10] sm:$0xff]
    %v275 = vld [vmem:[#allocation5 + $0x18] sm:$0xff]
    %v276 = vld [vmem:[%s4] sm:$0xff]
    %v277 = vld [vmem:[%s4 + $0x8] sm:$0xff]
    %v278 = vld [vmem:[%s4 + $0x10] sm:$0xff]
    %v279 = vld [vmem:[%s4 + $0x18] sm:$0xff]
    %v280 = vld [vmem:[%s4 + $0x20] sm:$0xff]
    %v281 = vld [vmem:[%s4 + $0x28] sm:$0xff]
    %v282 = vld [vmem:[%s4 + $0x30] sm:$0xff]
    %v283 = vld [vmem:[%s4 + $0x38] sm:$0xff]
    %v284 = vld [vmem:[#allocation8] sm:$0x1]
    %v286 = vsel %vm198, 0.0, 0
    %288 = vmatprep.subr.mxu0 0.0
    %289 = vmatpush1.msra.mxu0 %v272
    %290 = vmatprep.subr.mxu0 0.0
    %291 = vmatpush1.msra.mxu0 %v273
    %292 = vmatprep.subr.mxu0 0.0
    %293 = vmatpush1.msra.mxu0 %v274
    %294 = vmatprep.subr.mxu0 0.0
    %295 = vmatpush1.msra.mxu0 %v275
    %296 = vmatprep.subr.mxu0 0.0
    %297 = vmatpush1.msra.mxu0 0.0
    %298 = vmatprep.subr.mxu0 0.0
    %299 = vmatpush1.msra.mxu0 0.0
    %300 = vmatprep.subr.mxu0 0.0
    %301 = vmatpush1.msra.mxu0 0.0
    %302 = vmatprep.subr.mxu0 0.0
    %303 = vmatpush1.msra.mxu0 0.0
    %304 = vmatprep.subr.mxu0 0.0
    %305 = vmatpush1.msra.mxu0 0.0
    %306 = vmatprep.subr.mxu0 0.0
    %307 = vmatpush1.msra.mxu0 0.0
    %308 = vmatprep.subr.mxu0 0.0
    %309 = vmatpush1.msra.mxu0 0.0
    %310 = vmatprep.subr.mxu0 0.0
    %311 = vmatpush1.msra.mxu0 0.0
    %312 = vmatprep.subr.mxu0 0.0
    %313 = vmatpush1.msra.mxu0 0.0
    %314 = vmatprep.subr.mxu0 0.0
    %315 = vmatpush1.msra.mxu0 0.0
    %316 = vmatprep.subr.mxu0 0.0
    %317 = vmatpush1.msra.mxu0 0.0
    %318 = vmatprep.subr.mxu0 0.0
    %319 = vmatpush1.msra.mxu0 0.0
    %320 = vmatprep.subr.mxu0 0.0
    %321 = vmatpush1.msra.mxu0 0.0
    %322 = vmatprep.subr.mxu0 0.0
    %323 = vmatpush1.msra.mxu0 0.0
    %324 = vmatprep.subr.mxu0 0.0
    %325 = vmatpush1.msra.mxu0 0.0
    %326 = vmatprep.subr.mxu0 0.0
    %327 = vmatpush1.msra.mxu0 0.0
    %328 = vmatprep.subr.mxu0 0.0
    %329 = vmatpush1.msra.mxu0 0.0
    %330 = vmatprep.subr.mxu0 0.0
    %331 = vmatpush1.msra.mxu0 0.0
    %332 = vmatprep.subr.mxu0 0.0
    %333 = vmatpush1.msra.mxu0 0.0
    %334 = vmatprep.subr.mxu0 0.0
    %335 = vmatpush1.msra.mxu0 0.0
    %336 = vmatprep.subr.mxu0 0.0
    %337 = vmatpush1.msra.mxu0 0.0
    %338 = vmatprep.subr.mxu0 0.0
    %339 = vmatpush1.msra.mxu0 0.0
    %340 = vmatprep.subr.mxu0 0.0
    %341 = vmatpush1.msra.mxu0 0.0
    %342 = vmatprep.subr.mxu0 0.0
    %343 = vmatpush1.msra.mxu0 0.0
    %344 = vmatprep.subr.mxu0 0.0
    %345 = vmatpush1.msra.mxu0 0.0
    %346 = vmatprep.subr.mxu0 0.0
    %347 = vmatpush1.msra.mxu0 0.0
    %348 = vmatprep.subr.mxu0 0.0
    %349 = vmatpush1.msra.mxu0 0.0
    %350 = vmatprep.subr.mxu0 0.0
    %351 = vmatpush1.msra.mxu0 0.0
    %352 = vmatprep.mubr.f32.mxu0 0.0
    %353 = vmatmul.mubr.f32.gmra.mrb[0].mxu0 %v286
    %v354 = vpop.f32.mrb[0].mxu0
    %v355 = vadd.f32 0.0, %v354
    %v356 = vpop.f32.mrb[0].mxu0
    %357 = vdwg.mxu0
    %v358 = vadd.f32 %v269, %v355
    %v359 = vxor.u32 %v358, 2147483648
    %v360 = vmul.f32 %v359, 1.442695
    %v361 = vpow.pop %v360
    %v362 = vadd.f32 %v361, 1.0
    %v363 = vrcp.pop %v362
    %v364 = vmul.f32 1.0, %v363
    %v365 = vtanh.pop %v358
    %v366 = vmul.f32 %v364, 0.0
    %368 = vrot.lane.b32.xlu0 %v365, 32
    %v369 = vpop.permute.xlu0 %368
    %v371 = vmul.f32 %v364, %v369
    %373 = vrot.lane.b32.xlu0 %v371, 32
    %v374 = vpop.permute.xlu0 %373
    %v376 = vadd.f32 %v366, %v374
    %v377 = vtanh.pop %v376
    %379 = vrot.lane.b32.xlu0 %v377, 32
    %v380 = vpop.permute.xlu0 %379
    %v382 = vmul.f32 %v364, %v380
    %384 = vrot.lane.b32.xlu0 %v382, 64
    %v385 = vpop.permute.xlu0 %384
    %v387 = vsel %vm198, %v385, 0.0
    %vm388 = vcmask 523264
    %v390 = vsel %vm388, %v387, 0
    %392 = vmatprep.subr.mxu0 0.0
    %393 = vmatpush1.msra.mxu0 %v276
    %394 = vmatprep.subr.mxu0 0.0
    %395 = vmatpush1.msra.mxu0 %v277
    %396 = vmatprep.subr.mxu0 0.0
    %397 = vmatpush1.msra.mxu0 %v278
    %398 = vmatprep.subr.mxu0 0.0
    %399 = vmatpush1.msra.mxu0 %v279
    %400 = vmatprep.subr.mxu0 0.0
    %401 = vmatpush1.msra.mxu0 %v280
    %402 = vmatprep.subr.mxu0 0.0
    %403 = vmatpush1.msra.mxu0 %v281
    %404 = vmatprep.subr.mxu0 0.0
    %405 = vmatpush1.msra.mxu0 %v282
    %406 = vmatprep.subr.mxu0 0.0
    %407 = vmatpush1.msra.mxu0 %v283
    %408 = vmatprep.subr.mxu0 0.0
    %409 = vmatpush1.msra.mxu0 0.0
    %410 = vmatprep.subr.mxu0 0.0
    %411 = vmatpush1.msra.mxu0 0.0
    %412 = vmatprep.subr.mxu0 0.0
    %413 = vmatpush1.msra.mxu0 0.0
    %414 = vmatprep.subr.mxu0 0.0
    %415 = vmatpush1.msra.mxu0 0.0
    %416 = vmatprep.subr.mxu0 0.0
    %417 = vmatpush1.msra.mxu0 0.0
    %418 = vmatprep.subr.mxu0 0.0
    %419 = vmatpush1.msra.mxu0 0.0
    %420 = vmatprep.subr.mxu0 0.0
    %421 = vmatpush1.msra.mxu0 0.0
    %422 = vmatprep.subr.mxu0 0.0
    %423 = vmatpush1.msra.mxu0 0.0
    %424 = vmatprep.subr.mxu0 0.0
    %425 = vmatpush1.msra.mxu0 0.0
    %426 = vmatprep.subr.mxu0 0.0
    %427 = vmatpush1.msra.mxu0 0.0
    %428 = vmatprep.subr.mxu0 0.0
    %429 = vmatpush1.msra.mxu0 0.0
    %430 = vmatprep.subr.mxu0 0.0
    %431 = vmatpush1.msra.mxu0 0.0
    %432 = vmatprep.subr.mxu0 0.0
    %433 = vmatpush1.msra.mxu0 0.0
    %434 = vmatprep.subr.mxu0 0.0
    %435 = vmatpush1.msra.mxu0 0.0
    %436 = vmatprep.subr.mxu0 0.0
    %437 = vmatpush1.msra.mxu0 0.0
    %438 = vmatprep.subr.mxu0 0.0
    %439 = vmatpush1.msra.mxu0 0.0
    %440 = vmatprep.subr.mxu0 0.0
    %441 = vmatpush1.msra.mxu0 0.0
    %442 = vmatprep.subr.mxu0 0.0
    %443 = vmatpush1.msra.mxu0 0.0
    %444 = vmatprep.subr.mxu0 0.0
    %445 = vmatpush1.msra.mxu0 0.0
    %446 = vmatprep.subr.mxu0 0.0
    %447 = vmatpush1.msra.mxu0 0.0
    %448 = vmatprep.subr.mxu0 0.0
    %449 = vmatpush1.msra.mxu0 0.0
    %450 = vmatprep.subr.mxu0 0.0
    %451 = vmatpush1.msra.mxu0 0.0
    %452 = vmatprep.subr.mxu0 0.0
    %453 = vmatpush1.msra.mxu0 0.0
    %454 = vmatprep.subr.mxu0 0.0
    %455 = vmatpush1.msra.mxu0 0.0
    %456 = vmatprep.mubr.f32.mxu0 0.0
    %457 = vmatmul.mubr.f32.gmra.mrb[0].mxu0 %v390
    %v458 = vpop.f32.mrb[0].mxu0
    %v459 = vadd.f32 0.0, %v458
    %v460 = vpop.f32.mrb[0].mxu0
    %461 = vdwg.mxu0
    %v463 = vlaneseq
    %v464 = vshrl.u32 %v463, 7
    %v465 = vsub.s32 0, %v464
    %v466 = vrot.slane %v284, %v465
    %v468 = vadd.f32 %v466, %v459
    %v469 = vxor.u32 %v468, 2147483648
    %v470 = vmul.f32 %v469, 1.442695
    %v471 = vpow.pop %v470
    %v472 = vadd.f32 %v471, 1.0
    %v473 = vrcp.pop %v472
    %v474 = vmul.f32 1.0, %v473
    %v475 = vtanh.pop %v468
    %v476 = vmul.f32 %v474, 0.0
    %478 = vrot.lane.b32.xlu0 %v475, 32
    %v479 = vpop.permute.xlu0 %478
    %v481 = vmul.f32 %v474, %v479
    %483 = vrot.lane.b32.xlu0 %v481, 32
    %v484 = vpop.permute.xlu0 %483
    %v486 = vadd.f32 %v476, %v484
    %v487 = vtanh.pop %v486
    %489 = vrot.lane.b32.xlu0 %v487, 32
    %v490 = vpop.permute.xlu0 %489
    %v492 = vmul.f32 %v474, %v490
    %v493 = vsel %vm198, %v385, 0
    %495 = vmatprep.subr.mxu0 0.0
    %496 = vmatpush1.msra.mxu0 %v272
    %497 = vmatprep.subr.mxu0 0.0
    %498 = vmatpush1.msra.mxu0 %v273
    %499 = vmatprep.subr.mxu0 0.0
    %500 = vmatpush1.msra.mxu0 %v274
    %501 = vmatprep.subr.mxu0 0.0
    %502 = vmatpush1.msra.mxu0 %v275
    %503 = vmatprep.subr.mxu0 0.0
    %504 = vmatpush1.msra.mxu0 0.0
    %505 = vmatprep.subr.mxu0 0.0
    %506 = vmatpush1.msra.mxu0 0.0
    %507 = vmatprep.subr.mxu0 0.0
    %508 = vmatpush1.msra.mxu0 0.0
    %509 = vmatprep.subr.mxu0 0.0
    %510 = vmatpush1.msra.mxu0 0.0
    %511 = vmatprep.subr.mxu0 0.0
    %512 = vmatpush1.msra.mxu0 0.0
    %513 = vmatprep.subr.mxu0 0.0
    %514 = vmatpush1.msra.mxu0 0.0
    %515 = vmatprep.subr.mxu0 0.0
    %516 = vmatpush1.msra.mxu0 0.0
    %517 = vmatprep.subr.mxu0 0.0
    %518 = vmatpush1.msra.mxu0 0.0
    %519 = vmatprep.subr.mxu0 0.0
    %520 = vmatpush1.msra.mxu0 0.0
    %521 = vmatprep.subr.mxu0 0.0
    %522 = vmatpush1.msra.mxu0 0.0
    %523 = vmatprep.subr.mxu0 0.0
    %524 = vmatpush1.msra.mxu0 0.0
    %525 = vmatprep.subr.mxu0 0.0
    %526 = vmatpush1.msra.mxu0 0.0
    %527 = vmatprep.subr.mxu0 0.0
    %528 = vmatpush1.msra.mxu0 0.0
    %529 = vmatprep.subr.mxu0 0.0
    %530 = vmatpush1.msra.mxu0 0.0
    %531 = vmatprep.subr.mxu0 0.0
    %532 = vmatpush1.msra.mxu0 0.0
    %533 = vmatprep.subr.mxu0 0.0
    %534 = vmatpush1.msra.mxu0 0.0
    %535 = vmatprep.subr.mxu0 0.0
    %536 = vmatpush1.msra.mxu0 0.0
    %537 = vmatprep.subr.mxu0 0.0
    %538 = vmatpush1.msra.mxu0 0.0
    %539 = vmatprep.subr.mxu0 0.0
    %540 = vmatpush1.msra.mxu0 0.0
    %541 = vmatprep.subr.mxu0 0.0
    %542 = vmatpush1.msra.mxu0 0.0
    %543 = vmatprep.subr.mxu0 0.0
    %544 = vmatpush1.msra.mxu0 0.0
    %545 = vmatprep.subr.mxu0 0.0
    %546 = vmatpush1.msra.mxu0 0.0
    %547 = vmatprep.subr.mxu0 0.0
    %548 = vmatpush1.msra.mxu0 0.0
    %549 = vmatprep.subr.mxu0 0.0
    %550 = vmatpush1.msra.mxu0 0.0
    %551 = vmatprep.subr.mxu0 0.0
    %552 = vmatpush1.msra.mxu0 0.0
    %553 = vmatprep.subr.mxu0 0.0
    %554 = vmatpush1.msra.mxu0 0.0
    %555 = vmatprep.subr.mxu0 0.0
    %556 = vmatpush1.msra.mxu0 0.0
    %557 = vmatprep.subr.mxu0 0.0
    %558 = vmatpush1.msra.mxu0 0.0
    %559 = vmatprep.mubr.f32.mxu0 0.0
    %560 = vmatmul.mubr.f32.gmra.mrb[0].mxu0 %v493
    %v561 = vpop.f32.mrb[0].mxu0
    %v562 = vadd.f32 0.0, %v561
    %v563 = vpop.f32.mrb[0].mxu0
    %564 = vdwg.mxu0
    %v565 = vadd.f32 %v269, %v562
    %v566 = vxor.u32 %v565, 2147483648
    %v567 = vmul.f32 %v566, 1.442695
    %v568 = vpow.pop %v567
    %v569 = vadd.f32 %v568, 1.0
    %v570 = vrcp.pop %v569
    %v571 = vmul.f32 1.0, %v570
    %v572 = vtanh.pop %v565
    %v573 = vmul.f32 %v571, %v376
    %575 = vrot.lane.b32.xlu0 %v572, 32
    %v576 = vpop.permute.xlu0 %575
    %v578 = vmul.f32 %v571, %v576
    %580 = vrot.lane.b32.xlu0 %v578, 32
    %v581 = vpop.permute.xlu0 %580
    %v583 = vadd.f32 %v573, %v581
    %v584 = vtanh.pop %v583
    %586 = vrot.lane.b32.xlu0 %v584, 32
    %v587 = vpop.permute.xlu0 %586
    %v589 = vmul.f32 %v571, %v587
    %591 = vrot.lane.b32.xlu0 %v589, 64
    %v592 = vpop.permute.xlu0 %591
    %595 = vrot.lane.b32.xlu0 %v492, 96
    %v596 = vpop.permute.xlu0 %595
    %v598 = vsel %vm198, %v592, %v596
    %v600 = vsel %vm388, %v598, 0
    %602 = vmatprep.subr.mxu0 0.0
    %603 = vmatpush1.msra.mxu0 %v276
    %604 = vmatprep.subr.mxu0 0.0
    %605 = vmatpush1.msra.mxu0 %v277
    %606 = vmatprep.subr.mxu0 0.0
    %607 = vmatpush1.msra.mxu0 %v278
    %608 = vmatprep.subr.mxu0 0.0
    %609 = vmatpush1.msra.mxu0 %v279
    %610 = vmatprep.subr.mxu0 0.0
    %611 = vmatpush1.msra.mxu0 %v280
    %612 = vmatprep.subr.mxu0 0.0
    %613 = vmatpush1.msra.mxu0 %v281
    %614 = vmatprep.subr.mxu0 0.0
    %615 = vmatpush1.msra.mxu0 %v282
    %616 = vmatprep.subr.mxu0 0.0
    %617 = vmatpush1.msra.mxu0 %v283
    %618 = vmatprep.subr.mxu0 0.0
    %619 = vmatpush1.msra.mxu0 0.0
    %620 = vmatprep.subr.mxu0 0.0
    %621 = vmatpush1.msra.mxu0 0.0
    %622 = vmatprep.subr.mxu0 0.0
    %623 = vmatpush1.msra.mxu0 0.0
    %624 = vmatprep.subr.mxu0 0.0
    %625 = vmatpush1.msra.mxu0 0.0
    %626 = vmatprep.subr.mxu0 0.0
    %627 = vmatpush1.msra.mxu0 0.0
    %628 = vmatprep.subr.mxu0 0.0
    %629 = vmatpush1.msra.mxu0 0.0
    %630 = vmatprep.subr.mxu0 0.0
    %631 = vmatpush1.msra.mxu0 0.0
    %632 = vmatprep.subr.mxu0 0.0
    %633 = vmatpush1.msra.mxu0 0.0
    %634 = vmatprep.subr.mxu0 0.0
    %635 = vmatpush1.msra.mxu0 0.0
    %636 = vmatprep.subr.mxu0 0.0
    %637 = vmatpush1.msra.mxu0 0.0
    %638 = vmatprep.subr.mxu0 0.0
    %639 = vmatpush1.msra.mxu0 0.0
    %640 = vmatprep.subr.mxu0 0.0
    %641 = vmatpush1.msra.mxu0 0.0
    %642 = vmatprep.subr.mxu0 0.0
    %643 = vmatpush1.msra.mxu0 0.0
    %644 = vmatprep.subr.mxu0 0.0
    %645 = vmatpush1.msra.mxu0 0.0
    %646 = vmatprep.subr.mxu0 0.0
    %647 = vmatpush1.msra.mxu0 0.0
    %648 = vmatprep.subr.mxu0 0.0
    %649 = vmatpush1.msra.mxu0 0.0
    %650 = vmatprep.subr.mxu0 0.0
    %651 = vmatpush1.msra.mxu0 0.0
    %652 = vmatprep.subr.mxu0 0.0
    %653 = vmatpush1.msra.mxu0 0.0
    %654 = vmatprep.subr.mxu0 0.0
    %655 = vmatpush1.msra.mxu0 0.0
    %656 = vmatprep.subr.mxu0 0.0
    %657 = vmatpush1.msra.mxu0 0.0
    %658 = vmatprep.subr.mxu0 0.0
    %659 = vmatpush1.msra.mxu0 0.0
    %660 = vmatprep.subr.mxu0 0.0
    %661 = vmatpush1.msra.mxu0 0.0
    %662 = vmatprep.subr.mxu0 0.0
    %663 = vmatpush1.msra.mxu0 0.0
    %664 = vmatprep.subr.mxu0 0.0
    %665 = vmatpush1.msra.mxu0 0.0
    %666 = vmatprep.mubr.f32.mxu0 0.0
    %667 = vmatmul.mubr.f32.gmra.mrb[0].mxu0 %v600
    %v668 = vpop.f32.mrb[0].mxu0
    %v669 = vadd.f32 0.0, %v668
    %v670 = vpop.f32.mrb[0].mxu0
    %671 = vdwg.mxu0
    %v672 = vadd.f32 %v466, %v669
    %v673 = vxor.u32 %v672, 2147483648
    %v674 = vmul.f32 %v673, 1.442695
    %v675 = vpow.pop %v674
    %v676 = vadd.f32 %v675, 1.0
    %v677 = vrcp.pop %v676
    %v678 = vmul.f32 1.0, %v677
    %v679 = vtanh.pop %v672
    %v680 = vmul.f32 %v678, %v486
    %682 = vrot.lane.b32.xlu0 %v679, 32
    %v683 = vpop.permute.xlu0 %682
    %v685 = vmul.f32 %v678, %v683
    %687 = vrot.lane.b32.xlu0 %v685, 32
    %v688 = vpop.permute.xlu0 %687
    %v690 = vadd.f32 %v680, %v688
    %v691 = vtanh.pop %v690
    %693 = vrot.lane.b32.xlu0 %v691, 32
    %v694 = vpop.permute.xlu0 %693
    %v696 = vmul.f32 %v678, %v694
    %v697 = vsel %vm198, %v592, 0
    %699 = vmatprep.subr.mxu0 0.0
    %700 = vmatpush1.msra.mxu0 %v272
    %701 = vmatprep.subr.mxu0 0.0
    %702 = vmatpush1.msra.mxu0 %v273
    %703 = vmatprep.subr.mxu0 0.0
    %704 = vmatpush1.msra.mxu0 %v274
    %705 = vmatprep.subr.mxu0 0.0
    %706 = vmatpush1.msra.mxu0 %v275
    %707 = vmatprep.subr.mxu0 0.0
    %708 = vmatpush1.msra.mxu0 0.0
    %709 = vmatprep.subr.mxu0 0.0
    %710 = vmatpush1.msra.mxu0 0.0
    %711 = vmatprep.subr.mxu0 0.0
    %712 = vmatpush1.msra.mxu0 0.0
    %713 = vmatprep.subr.mxu0 0.0
    %714 = vmatpush1.msra.mxu0 0.0
    %715 = vmatprep.subr.mxu0 0.0
    %716 = vmatpush1.msra.mxu0 0.0
    %717 = vmatprep.subr.mxu0 0.0
    %718 = vmatpush1.msra.mxu0 0.0
    %719 = vmatprep.subr.mxu0 0.0
    %720 = vmatpush1.msra.mxu0 0.0
    %721 = vmatprep.subr.mxu0 0.0
    %722 = vmatpush1.msra.mxu0 0.0
    %723 = vmatprep.subr.mxu0 0.0
    %724 = vmatpush1.msra.mxu0 0.0
    %725 = vmatprep.subr.mxu0 0.0
    %726 = vmatpush1.msra.mxu0 0.0
    %727 = vmatprep.subr.mxu0 0.0
    %728 = vmatpush1.msra.mxu0 0.0
    %729 = vmatprep.subr.mxu0 0.0
    %730 = vmatpush1.msra.mxu0 0.0
    %731 = vmatprep.subr.mxu0 0.0
    %732 = vmatpush1.msra.mxu0 0.0
    %733 = vmatprep.subr.mxu0 0.0
    %734 = vmatpush1.msra.mxu0 0.0
    %735 = vmatprep.subr.mxu0 0.0
    %736 = vmatpush1.msra.mxu0 0.0
    %737 = vmatprep.subr.mxu0 0.0
    %738 = vmatpush1.msra.mxu0 0.0
    %739 = vmatprep.subr.mxu0 0.0
    %740 = vmatpush1.msra.mxu0 0.0
    %741 = vmatprep.subr.mxu0 0.0
    %742 = vmatpush1.msra.mxu0 0.0
    %743 = vmatprep.subr.mxu0 0.0
    %744 = vmatpush1.msra.mxu0 0.0
    %745 = vmatprep.subr.mxu0 0.0
    %746 = vmatpush1.msra.mxu0 0.0
    %747 = vmatprep.subr.mxu0 0.0
    %748 = vmatpush1.msra.mxu0 0.0
    %749 = vmatprep.subr.mxu0 0.0
    %750 = vmatpush1.msra.mxu0 0.0
    %751 = vmatprep.subr.mxu0 0.0
    %752 = vmatpush1.msra.mxu0 0.0
    %753 = vmatprep.subr.mxu0 0.0
    %754 = vmatpush1.msra.mxu0 0.0
    %755 = vmatprep.subr.mxu0 0.0
    %756 = vmatpush1.msra.mxu0 0.0
    %757 = vmatprep.subr.mxu0 0.0
    %758 = vmatpush1.msra.mxu0 0.0
    %759 = vmatprep.subr.mxu0 0.0
    %760 = vmatpush1.msra.mxu0 0.0
    %761 = vmatprep.subr.mxu0 0.0
    %762 = vmatpush1.msra.mxu0 0.0
    %763 = vmatprep.mubr.f32.mxu0 0.0
    %764 = vmatmul.mubr.f32.gmra.mrb[0].mxu0 %v697
    %v765 = vpop.f32.mrb[0].mxu0
    %v766 = vadd.f32 0.0, %v765
    %v767 = vpop.f32.mrb[0].mxu0
    %768 = vdwg.mxu0
    %v769 = vadd.f32 %v269, %v766
    %v770 = vxor.u32 %v769, 2147483648
    %v771 = vmul.f32 %v770, 1.442695
    %v772 = vpow.pop %v771
    %v773 = vadd.f32 %v772, 1.0
    %v774 = vrcp.pop %v773
    %v775 = vmul.f32 1.0, %v774
    %v776 = vtanh.pop %v769
    %v777 = vmul.f32 %v775, %v583
    %779 = vrot.lane.b32.xlu0 %v776, 32
    %v780 = vpop.permute.xlu0 %779
    %v782 = vmul.f32 %v775, %v780
    %784 = vrot.lane.b32.xlu0 %v782, 32
    %v785 = vpop.permute.xlu0 %784
    %v787 = vadd.f32 %v777, %v785
    %v788 = vtanh.pop %v787
    %790 = vrot.lane.b32.xlu0 %v788, 32
    %v791 = vpop.permute.xlu0 %790
    %v793 = vmul.f32 %v775, %v791
    %795 = vrot.lane.b32.xlu0 %v793, 64
    %v796 = vpop.permute.xlu0 %795
    %799 = vrot.lane.b32.xlu0 %v696, 96
    %v800 = vpop.permute.xlu0 %799
    %v802 = vsel %vm198, %v796, %v800
    %v804 = vsel %vm388, %v802, 0
    %806 = vmatprep.subr.mxu0 0.0
    %807 = vmatpush1.msra.mxu0 %v276
    %808 = vmatprep.subr.mxu0 0.0
    %809 = vmatpush1.msra.mxu0 %v277
    %810 = vmatprep.subr.mxu0 0.0
    %811 = vmatpush1.msra.mxu0 %v278
    %812 = vmatprep.subr.mxu0 0.0
    %813 = vmatpush1.msra.mxu0 %v279
    %814 = vmatprep.subr.mxu0 0.0
    %815 = vmatpush1.msra.mxu0 %v280
    %816 = vmatprep.subr.mxu0 0.0
    %817 = vmatpush1.msra.mxu0 %v281
    %818 = vmatprep.subr.mxu0 0.0
    %819 = vmatpush1.msra.mxu0 %v282
    %820 = vmatprep.subr.mxu0 0.0
    %821 = vmatpush1.msra.mxu0 %v283
    %822 = vmatprep.subr.mxu0 0.0
    %823 = vmatpush1.msra.mxu0 0.0
    %824 = vmatprep.subr.mxu0 0.0
    %825 = vmatpush1.msra.mxu0 0.0
    %826 = vmatprep.subr.mxu0 0.0
    %827 = vmatpush1.msra.mxu0 0.0
    %828 = vmatprep.subr.mxu0 0.0
    %829 = vmatpush1.msra.mxu0 0.0
    %830 = vmatprep.subr.mxu0 0.0
    %831 = vmatpush1.msra.mxu0 0.0
    %832 = vmatprep.subr.mxu0 0.0
    %833 = vmatpush1.msra.mxu0 0.0
    %834 = vmatprep.subr.mxu0 0.0
    %835 = vmatpush1.msra.mxu0 0.0
    %836 = vmatprep.subr.mxu0 0.0
    %837 = vmatpush1.msra.mxu0 0.0
    %838 = vmatprep.subr.mxu0 0.0
    %839 = vmatpush1.msra.mxu0 0.0
    %840 = vmatprep.subr.mxu0 0.0
    %841 = vmatpush1.msra.mxu0 0.0
    %842 = vmatprep.subr.mxu0 0.0
    %843 = vmatpush1.msra.mxu0 0.0
    %844 = vmatprep.subr.mxu0 0.0
    %845 = vmatpush1.msra.mxu0 0.0
    %846 = vmatprep.subr.mxu0 0.0
    %847 = vmatpush1.msra.mxu0 0.0
    %848 = vmatprep.subr.mxu0 0.0
    %849 = vmatpush1.msra.mxu0 0.0
    %850 = vmatprep.subr.mxu0 0.0
    %851 = vmatpush1.msra.mxu0 0.0
    %852 = vmatprep.subr.mxu0 0.0
    %853 = vmatpush1.msra.mxu0 0.0
    %854 = vmatprep.subr.mxu0 0.0
    %855 = vmatpush1.msra.mxu0 0.0
    %856 = vmatprep.subr.mxu0 0.0
    %857 = vmatpush1.msra.mxu0 0.0
    %858 = vmatprep.subr.mxu0 0.0
    %859 = vmatpush1.msra.mxu0 0.0
    %860 = vmatprep.subr.mxu0 0.0
    %861 = vmatpush1.msra.mxu0 0.0
    %862 = vmatprep.subr.mxu0 0.0
    %863 = vmatpush1.msra.mxu0 0.0
    %864 = vmatprep.subr.mxu0 0.0
    %865 = vmatpush1.msra.mxu0 0.0
    %866 = vmatprep.subr.mxu0 0.0
    %867 = vmatpush1.msra.mxu0 0.0
    %868 = vmatprep.subr.mxu0 0.0
    %869 = vmatpush1.msra.mxu0 0.0
    %870 = vmatprep.mubr.f32.mxu0 0.0
    %871 = vmatmul.mubr.f32.gmra.mrb[0].mxu0 %v804
    %v872 = vpop.f32.mrb[0].mxu0
    %v873 = vadd.f32 0.0, %v872
    %v874 = vpop.f32.mrb[0].mxu0
    %875 = vdwg.mxu0
    %v876 = vadd.f32 %v466, %v873
    %v877 = vxor.u32 %v876, 2147483648
    %v878 = vmul.f32 %v877, 1.442695
    %v879 = vpow.pop %v878
    %v880 = vadd.f32 %v879, 1.0
    %v881 = vrcp.pop %v880
    %v882 = vmul.f32 1.0, %v881
    %v883 = vtanh.pop %v876
    %v884 = vmul.f32 %v882, %v690
    %886 = vrot.lane.b32.xlu0 %v883, 32
    %v887 = vpop.permute.xlu0 %886
    %v889 = vmul.f32 %v882, %v887
    %891 = vrot.lane.b32.xlu0 %v889, 32
    %v892 = vpop.permute.xlu0 %891
    %v894 = vadd.f32 %v884, %v892
    %v895 = vtanh.pop %v894
    %897 = vrot.lane.b32.xlu0 %v895, 32
    %v898 = vpop.permute.xlu0 %897
    %v900 = vmul.f32 %v882, %v898
    %v901 = vsel %vm198, %v796, 0
    %903 = vmatprep.subr.mxu0 0.0
    %904 = vmatpush1.msra.mxu0 %v272
    %905 = vmatprep.subr.mxu0 0.0
    %906 = vmatpush1.msra.mxu0 %v273
    %907 = vmatprep.subr.mxu0 0.0
    %908 = vmatpush1.msra.mxu0 %v274
    %909 = vmatprep.subr.mxu0 0.0
    %910 = vmatpush1.msra.mxu0 %v275
    %911 = vmatprep.subr.mxu0 0.0
    %912 = vmatpush1.msra.mxu0 0.0
    %913 = vmatprep.subr.mxu0 0.0
    %914 = vmatpush1.msra.mxu0 0.0
    %915 = vmatprep.subr.mxu0 0.0
    %916 = vmatpush1.msra.mxu0 0.0
    %917 = vmatprep.subr.mxu0 0.0
    %918 = vmatpush1.msra.mxu0 0.0
    %919 = vmatprep.subr.mxu0 0.0
    %920 = vmatpush1.msra.mxu0 0.0
    %921 = vmatprep.subr.mxu0 0.0
    %922 = vmatpush1.msra.mxu0 0.0
    %923 = vmatprep.subr.mxu0 0.0
    %924 = vmatpush1.msra.mxu0 0.0
    %925 = vmatprep.subr.mxu0 0.0
    %926 = vmatpush1.msra.mxu0 0.0
    %927 = vmatprep.subr.mxu0 0.0
    %928 = vmatpush1.msra.mxu0 0.0
    %929 = vmatprep.subr.mxu0 0.0
    %930 = vmatpush1.msra.mxu0 0.0
    %931 = vmatprep.subr.mxu0 0.0
    %932 = vmatpush1.msra.mxu0 0.0
    %933 = vmatprep.subr.mxu0 0.0
    %934 = vmatpush1.msra.mxu0 0.0
    %935 = vmatprep.subr.mxu0 0.0
    %936 = vmatpush1.msra.mxu0 0.0
    %937 = vmatprep.subr.mxu0 0.0
    %938 = vmatpush1.msra.mxu0 0.0
    %939 = vmatprep.subr.mxu0 0.0
    %940 = vmatpush1.msra.mxu0 0.0
    %941 = vmatprep.subr.mxu0 0.0
    %942 = vmatpush1.msra.mxu0 0.0
    %943 = vmatprep.subr.mxu0 0.0
    %944 = vmatpush1.msra.mxu0 0.0
    %945 = vmatprep.subr.mxu0 0.0
    %946 = vmatpush1.msra.mxu0 0.0
    %947 = vmatprep.subr.mxu0 0.0
    %948 = vmatpush1.msra.mxu0 0.0
    %949 = vmatprep.subr.mxu0 0.0
    %950 = vmatpush1.msra.mxu0 0.0
    %951 = vmatprep.subr.mxu0 0.0
    %952 = vmatpush1.msra.mxu0 0.0
    %953 = vmatprep.subr.mxu0 0.0
    %954 = vmatpush1.msra.mxu0 0.0
    %955 = vmatprep.subr.mxu0 0.0
    %956 = vmatpush1.msra.mxu0 0.0
    %957 = vmatprep.subr.mxu0 0.0
    %958 = vmatpush1.msra.mxu0 0.0
    %959 = vmatprep.subr.mxu0 0.0
    %960 = vmatpush1.msra.mxu0 0.0
    %961 = vmatprep.subr.mxu0 0.0
    %962 = vmatpush1.msra.mxu0 0.0
    %963 = vmatprep.subr.mxu0 0.0
    %964 = vmatpush1.msra.mxu0 0.0
    %965 = vmatprep.subr.mxu0 0.0
    %966 = vmatpush1.msra.mxu0 0.0
    %967 = vmatprep.mubr.f32.mxu0 0.0
    %968 = vmatmul.mubr.f32.gmra.mrb[0].mxu0 %v901
    %v969 = vpop.f32.mrb[0].mxu0
    %v970 = vadd.f32 0.0, %v969
    %v971 = vpop.f32.mrb[0].mxu0
    %972 = vdwg.mxu0
    %v973 = vadd.f32 %v269, %v970
    %v974 = vxor.u32 %v973, 2147483648
    %v975 = vmul.f32 %v974, 1.442695
    %v976 = vpow.pop %v975
    %v977 = vadd.f32 %v976, 1.0
    %v978 = vrcp.pop %v977
    %v979 = vmul.f32 1.0, %v978
    %v980 = vtanh.pop %v973
    %v981 = vmul.f32 %v979, %v787
    %983 = vrot.lane.b32.xlu0 %v980, 32
    %v984 = vpop.permute.xlu0 %983
    %v986 = vmul.f32 %v979, %v984
    %988 = vrot.lane.b32.xlu0 %v986, 32
    %v989 = vpop.permute.xlu0 %988
    %v991 = vadd.f32 %v981, %v989
    %v992 = vtanh.pop %v991
    %994 = vrot.lane.b32.xlu0 %v992, 32
    %v995 = vpop.permute.xlu0 %994
    %v997 = vmul.f32 %v979, %v995
    %999 = vrot.lane.b32.xlu0 %v997, 64
    %v1000 = vpop.permute.xlu0 %999
    %1003 = vrot.lane.b32.xlu0 %v900, 96
    %v1004 = vpop.permute.xlu0 %1003
    %v1006 = vsel %vm198, %v1000, %v1004
    %v1008 = vsel %vm388, %v1006, 0
    %1010 = vmatprep.subr.mxu0 0.0
    %1011 = vmatpush1.msra.mxu0 %v276
    %1012 = vmatprep.subr.mxu0 0.0
    %1013 = vmatpush1.msra.mxu0 %v277
    %1014 = vmatprep.subr.mxu0 0.0
    %1015 = vmatpush1.msra.mxu0 %v278
    %1016 = vmatprep.subr.mxu0 0.0
    %1017 = vmatpush1.msra.mxu0 %v279
    %1018 = vmatprep.subr.mxu0 0.0
    %1019 = vmatpush1.msra.mxu0 %v280
    %1020 = vmatprep.subr.mxu0 0.0
    %1021 = vmatpush1.msra.mxu0 %v281
    %1022 = vmatprep.subr.mxu0 0.0
    %1023 = vmatpush1.msra.mxu0 %v282
    %1024 = vmatprep.subr.mxu0 0.0
    %1025 = vmatpush1.msra.mxu0 %v283
    %1026 = vmatprep.subr.mxu0 0.0
    %1027 = vmatpush1.msra.mxu0 0.0
    %1028 = vmatprep.subr.mxu0 0.0
    %1029 = vmatpush1.msra.mxu0 0.0
    %1030 = vmatprep.subr.mxu0 0.0
    %1031 = vmatpush1.msra.mxu0 0.0
    %1032 = vmatprep.subr.mxu0 0.0
    %1033 = vmatpush1.msra.mxu0 0.0
    %1034 = vmatprep.subr.mxu0 0.0
    %1035 = vmatpush1.msra.mxu0 0.0
    %1036 = vmatprep.subr.mxu0 0.0
    %1037 = vmatpush1.msra.mxu0 0.0
    %1038 = vmatprep.subr.mxu0 0.0
    %1039 = vmatpush1.msra.mxu0 0.0
    %1040 = vmatprep.subr.mxu0 0.0
    %1041 = vmatpush1.msra.mxu0 0.0
    %1042 = vmatprep.subr.mxu0 0.0
    %1043 = vmatpush1.msra.mxu0 0.0
    %1044 = vmatprep.subr.mxu0 0.0
    %1045 = vmatpush1.msra.mxu0 0.0
    %1046 = vmatprep.subr.mxu0 0.0
    %1047 = vmatpush1.msra.mxu0 0.0
    %1048 = vmatprep.subr.mxu0 0.0
    %1049 = vmatpush1.msra.mxu0 0.0
    %1050 = vmatprep.subr.mxu0 0.0
    %1051 = vmatpush1.msra.mxu0 0.0
    %1052 = vmatprep.subr.mxu0 0.0
    %1053 = vmatpush1.msra.mxu0 0.0
    %1054 = vmatprep.subr.mxu0 0.0
    %1055 = vmatpush1.msra.mxu0 0.0
    %1056 = vmatprep.subr.mxu0 0.0
    %1057 = vmatpush1.msra.mxu0 0.0
    %1058 = vmatprep.subr.mxu0 0.0
    %1059 = vmatpush1.msra.mxu0 0.0
    %1060 = vmatprep.subr.mxu0 0.0
    %1061 = vmatpush1.msra.mxu0 0.0
    %1062 = vmatprep.subr.mxu0 0.0
    %1063 = vmatpush1.msra.mxu0 0.0
    %1064 = vmatprep.subr.mxu0 0.0
    %1065 = vmatpush1.msra.mxu0 0.0
    %1066 = vmatprep.subr.mxu0 0.0
    %1067 = vmatpush1.msra.mxu0 0.0
    %1068 = vmatprep.subr.mxu0 0.0
    %1069 = vmatpush1.msra.mxu0 0.0
    %1070 = vmatprep.subr.mxu0 0.0
    %1071 = vmatpush1.msra.mxu0 0.0
    %1072 = vmatprep.subr.mxu0 0.0
    %1073 = vmatpush1.msra.mxu0 0.0
    %1074 = vmatprep.mubr.f32.mxu0 0.0
    %1075 = vmatmul.mubr.f32.gmra.mrb[0].mxu0 %v1008
    %v1076 = vpop.f32.mrb[0].mxu0
    %v1077 = vadd.f32 0.0, %v1076
    %v1078 = vpop.f32.mrb[0].mxu0
    %1079 = vdwg.mxu0
    %v1080 = vadd.f32 %v466, %v1077
    %v1081 = vxor.u32 %v1080, 2147483648
    %v1082 = vmul.f32 %v1081, 1.442695
    %v1083 = vpow.pop %v1082
    %v1084 = vadd.f32 %v1083, 1.0
    %v1085 = vrcp.pop %v1084
    %v1086 = vmul.f32 1.0, %v1085
    %v1087 = vtanh.pop %v1080
    %v1088 = vmul.f32 %v1086, %v894
    %1090 = vrot.lane.b32.xlu0 %v1087, 32
    %v1091 = vpop.permute.xlu0 %1090
    %v1093 = vmul.f32 %v1086, %v1091
    %1095 = vrot.lane.b32.xlu0 %v1093, 32
    %v1096 = vpop.permute.xlu0 %1095
    %v1098 = vadd.f32 %v1088, %v1096
    %v1099 = vtanh.pop %v1098
    %1101 = vrot.lane.b32.xlu0 %v1099, 32
    %v1102 = vpop.permute.xlu0 %1101
    %v1104 = vmul.f32 %v1086, %v1102
    %v1105 = vsel %vm198, %v1000, 0
    %1107 = vmatprep.subr.mxu0 0.0
    %1108 = vmatpush1.msra.mxu0 %v272
    %1109 = vmatprep.subr.mxu0 0.0
    %1110 = vmatpush1.msra.mxu0 %v273
    %1111 = vmatprep.subr.mxu0 0.0
    %1112 = vmatpush1.msra.mxu0 %v274
    %1113 = vmatprep.subr.mxu0 0.0
    %1114 = vmatpush1.msra.mxu0 %v275
    %1115 = vmatprep.subr.mxu0 0.0
    %1116 = vmatpush1.msra.mxu0 0.0
    %1117 = vmatprep.subr.mxu0 0.0
    %1118 = vmatpush1.msra.mxu0 0.0
    %1119 = vmatprep.subr.mxu0 0.0
    %1120 = vmatpush1.msra.mxu0 0.0
    %1121 = vmatprep.subr.mxu0 0.0
    %1122 = vmatpush1.msra.mxu0 0.0
    %1123 = vmatprep.subr.mxu0 0.0
    %1124 = vmatpush1.msra.mxu0 0.0
    %1125 = vmatprep.subr.mxu0 0.0
    %1126 = vmatpush1.msra.mxu0 0.0
    %1127 = vmatprep.subr.mxu0 0.0
    %1128 = vmatpush1.msra.mxu0 0.0
    %1129 = vmatprep.subr.mxu0 0.0
    %1130 = vmatpush1.msra.mxu0 0.0
    %1131 = vmatprep.subr.mxu0 0.0
    %1132 = vmatpush1.msra.mxu0 0.0
    %1133 = vmatprep.subr.mxu0 0.0
    %1134 = vmatpush1.msra.mxu0 0.0
    %1135 = vmatprep.subr.mxu0 0.0
    %1136 = vmatpush1.msra.mxu0 0.0
    %1137 = vmatprep.subr.mxu0 0.0
    %1138 = vmatpush1.msra.mxu0 0.0
    %1139 = vmatprep.subr.mxu0 0.0
    %1140 = vmatpush1.msra.mxu0 0.0
    %1141 = vmatprep.subr.mxu0 0.0
    %1142 = vmatpush1.msra.mxu0 0.0
    %1143 = vmatprep.subr.mxu0 0.0
    %1144 = vmatpush1.msra.mxu0 0.0
    %1145 = vmatprep.subr.mxu0 0.0
    %1146 = vmatpush1.msra.mxu0 0.0
    %1147 = vmatprep.subr.mxu0 0.0
    %1148 = vmatpush1.msra.mxu0 0.0
    %1149 = vmatprep.subr.mxu0 0.0
    %1150 = vmatpush1.msra.mxu0 0.0
    %1151 = vmatprep.subr.mxu0 0.0
    %1152 = vmatpush1.msra.mxu0 0.0
    %1153 = vmatprep.subr.mxu0 0.0
    %1154 = vmatpush1.msra.mxu0 0.0
    %1155 = vmatprep.subr.mxu0 0.0
    %1156 = vmatpush1.msra.mxu0 0.0
    %1157 = vmatprep.subr.mxu0 0.0
    %1158 = vmatpush1.msra.mxu0 0.0
    %1159 = vmatprep.subr.mxu0 0.0
    %1160 = vmatpush1.msra.mxu0 0.0
    %1161 = vmatprep.subr.mxu0 0.0
    %1162 = vmatpush1.msra.mxu0 0.0
    %1163 = vmatprep.subr.mxu0 0.0
    %1164 = vmatpush1.msra.mxu0 0.0
    %1165 = vmatprep.subr.mxu0 0.0
    %1166 = vmatpush1.msra.mxu0 0.0
    %1167 = vmatprep.subr.mxu0 0.0
    %1168 = vmatpush1.msra.mxu0 0.0
    %1169 = vmatprep.subr.mxu0 0.0
    %1170 = vmatpush1.msra.mxu0 0.0
    %1171 = vmatprep.mubr.f32.mxu0 0.0
    %1172 = vmatmul.mubr.f32.gmra.mrb[0].mxu0 %v1105
    %v1173 = vpop.f32.mrb[0].mxu0
    %v1174 = vadd.f32 0.0, %v1173
    %v1175 = vpop.f32.mrb[0].mxu0
    %1176 = vdwg.mxu0
    %v1177 = vadd.f32 %v269, %v1174
    %v1178 = vxor.u32 %v1177, 2147483648
    %v1179 = vmul.f32 %v1178, 1.442695
    %v1180 = vpow.pop %v1179
    %v1181 = vadd.f32 %v1180, 1.0
    %v1182 = vrcp.pop %v1181
    %v1183 = vmul.f32 1.0, %v1182
    %v1184 = vtanh.pop %v1177
    %v1185 = vmul.f32 %v1183, %v991
    %1187 = vrot.lane.b32.xlu0 %v1184, 32
    %v1188 = vpop.permute.xlu0 %1187
    %v1190 = vmul.f32 %v1183, %v1188
    %1192 = vrot.lane.b32.xlu0 %v1190, 32
    %v1193 = vpop.permute.xlu0 %1192
    %v1195 = vadd.f32 %v1185, %v1193
    %v1196 = vtanh.pop %v1195
    %1198 = vrot.lane.b32.xlu0 %v1196, 32
    %v1199 = vpop.permute.xlu0 %1198
    %v1201 = vmul.f32 %v1183, %v1199
    %1203 = vrot.lane.b32.xlu0 %v1201, 64
    %v1204 = vpop.permute.xlu0 %1203
    %1207 = vrot.lane.b32.xlu0 %v1104, 96
    %v1208 = vpop.permute.xlu0 %1207
    %v1210 = vsel %vm198, %v1204, %v1208
    %v1212 = vsel %vm388, %v1210, 0
    %1214 = vmatprep.subr.mxu0 0.0
    %1215 = vmatpush1.msra.mxu0 %v276
    %1216 = vmatprep.subr.mxu0 0.0
    %1217 = vmatpush1.msra.mxu0 %v277
    %1218 = vmatprep.subr.mxu0 0.0
    %1219 = vmatpush1.msra.mxu0 %v278
    %1220 = vmatprep.subr.mxu0 0.0
    %1221 = vmatpush1.msra.mxu0 %v279
    %1222 = vmatprep.subr.mxu0 0.0
    %1223 = vmatpush1.msra.mxu0 %v280
    %1224 = vmatprep.subr.mxu0 0.0
    %1225 = vmatpush1.msra.mxu0 %v281
    %1226 = vmatprep.subr.mxu0 0.0
    %1227 = vmatpush1.msra.mxu0 %v282
    %1228 = vmatprep.subr.mxu0 0.0
    %1229 = vmatpush1.msra.mxu0 %v283
    %1230 = vmatprep.subr.mxu0 0.0
    %1231 = vmatpush1.msra.mxu0 0.0
    %1232 = vmatprep.subr.mxu0 0.0
    %1233 = vmatpush1.msra.mxu0 0.0
    %1234 = vmatprep.subr.mxu0 0.0
    %1235 = vmatpush1.msra.mxu0 0.0
    %1236 = vmatprep.subr.mxu0 0.0
    %1237 = vmatpush1.msra.mxu0 0.0
    %1238 = vmatprep.subr.mxu0 0.0
    %1239 = vmatpush1.msra.mxu0 0.0
    %1240 = vmatprep.subr.mxu0 0.0
    %1241 = vmatpush1.msra.mxu0 0.0
    %1242 = vmatprep.subr.mxu0 0.0
    %1243 = vmatpush1.msra.mxu0 0.0
    %1244 = vmatprep.subr.mxu0 0.0
    %1245 = vmatpush1.msra.mxu0 0.0
    %1246 = vmatprep.subr.mxu0 0.0
    %1247 = vmatpush1.msra.mxu0 0.0
    %1248 = vmatprep.subr.mxu0 0.0
    %1249 = vmatpush1.msra.mxu0 0.0
    %1250 = vmatprep.subr.mxu0 0.0
    %1251 = vmatpush1.msra.mxu0 0.0
    %1252 = vmatprep.subr.mxu0 0.0
    %1253 = vmatpush1.msra.mxu0 0.0
    %1254 = vmatprep.subr.mxu0 0.0
    %1255 = vmatpush1.msra.mxu0 0.0
    %1256 = vmatprep.subr.mxu0 0.0
    %1257 = vmatpush1.msra.mxu0 0.0
    %1258 = vmatprep.subr.mxu0 0.0
    %1259 = vmatpush1.msra.mxu0 0.0
    %1260 = vmatprep.subr.mxu0 0.0
    %1261 = vmatpush1.msra.mxu0 0.0
    %1262 = vmatprep.subr.mxu0 0.0
    %1263 = vmatpush1.msra.mxu0 0.0
    %1264 = vmatprep.subr.mxu0 0.0
    %1265 = vmatpush1.msra.mxu0 0.0
    %1266 = vmatprep.subr.mxu0 0.0
    %1267 = vmatpush1.msra.mxu0 0.0
    %1268 = vmatprep.subr.mxu0 0.0
    %1269 = vmatpush1.msra.mxu0 0.0
    %1270 = vmatprep.subr.mxu0 0.0
    %1271 = vmatpush1.msra.mxu0 0.0
    %1272 = vmatprep.subr.mxu0 0.0
    %1273 = vmatpush1.msra.mxu0 0.0
    %1274 = vmatprep.subr.mxu0 0.0
    %1275 = vmatpush1.msra.mxu0 0.0
    %1276 = vmatprep.subr.mxu0 0.0
    %1277 = vmatpush1.msra.mxu0 0.0
    %1278 = vmatprep.mubr.f32.mxu0 0.0
    %1279 = vmatmul.mubr.f32.gmra.mrb[0].mxu0 %v1212
    %v1280 = vpop.f32.mrb[0].mxu0
    %v1281 = vadd.f32 0.0, %v1280
    %v1282 = vpop.f32.mrb[0].mxu0
    %1283 = vdwg.mxu0
    %v1284 = vadd.f32 %v466, %v1281
    %v1285 = vxor.u32 %v1284, 2147483648
    %v1286 = vmul.f32 %v1285, 1.442695
    %v1287 = vpow.pop %v1286
    %v1288 = vadd.f32 %v1287, 1.0
    %v1289 = vrcp.pop %v1288
    %v1290 = vmul.f32 1.0, %v1289
    %v1291 = vtanh.pop %v1284
    %v1292 = vmul.f32 %v1290, %v1098
    %1294 = vrot.lane.b32.xlu0 %v1291, 32
    %v1295 = vpop.permute.xlu0 %1294
    %v1297 = vmul.f32 %v1290, %v1295
    %1299 = vrot.lane.b32.xlu0 %v1297, 32
    %v1300 = vpop.permute.xlu0 %1299
    %v1302 = vadd.f32 %v1292, %v1300
    %v1303 = vtanh.pop %v1302
    %1305 = vrot.lane.b32.xlu0 %v1303, 32
    %v1306 = vpop.permute.xlu0 %1305
    %v1308 = vmul.f32 %v1290, %v1306
    %v1309 = vsel %vm198, %v1204, 0
    %1311 = vmatprep.subr.mxu0 0.0
    %1312 = vmatpush1.msra.mxu0 %v272
    %1313 = vmatprep.subr.mxu0 0.0
    %1314 = vmatpush1.msra.mxu0 %v273
    %1315 = vmatprep.subr.mxu0 0.0
    %1316 = vmatpush1.msra.mxu0 %v274
    %1317 = vmatprep.subr.mxu0 0.0
    %1318 = vmatpush1.msra.mxu0 %v275
    %1319 = vmatprep.subr.mxu0 0.0
    %1320 = vmatpush1.msra.mxu0 0.0
    %1321 = vmatprep.subr.mxu0 0.0
    %1322 = vmatpush1.msra.mxu0 0.0
    %1323 = vmatprep.subr.mxu0 0.0
    %1324 = vmatpush1.msra.mxu0 0.0
    %1325 = vmatprep.subr.mxu0 0.0
    %1326 = vmatpush1.msra.mxu0 0.0
    %1327 = vmatprep.subr.mxu0 0.0
    %1328 = vmatpush1.msra.mxu0 0.0
    %1329 = vmatprep.subr.mxu0 0.0
    %1330 = vmatpush1.msra.mxu0 0.0
    %1331 = vmatprep.subr.mxu0 0.0
    %1332 = vmatpush1.msra.mxu0 0.0
    %1333 = vmatprep.subr.mxu0 0.0
    %1334 = vmatpush1.msra.mxu0 0.0
    %1335 = vmatprep.subr.mxu0 0.0
    %1336 = vmatpush1.msra.mxu0 0.0
    %1337 = vmatprep.subr.mxu0 0.0
    %1338 = vmatpush1.msra.mxu0 0.0
    %1339 = vmatprep.subr.mxu0 0.0
    %1340 = vmatpush1.msra.mxu0 0.0
    %1341 = vmatprep.subr.mxu0 0.0
    %1342 = vmatpush1.msra.mxu0 0.0
    %1343 = vmatprep.subr.mxu0 0.0
    %1344 = vmatpush1.msra.mxu0 0.0
    %1345 = vmatprep.subr.mxu0 0.0
    %1346 = vmatpush1.msra.mxu0 0.0
    %1347 = vmatprep.subr.mxu0 0.0
    %1348 = vmatpush1.msra.mxu0 0.0
    %1349 = vmatprep.subr.mxu0 0.0
    %1350 = vmatpush1.msra.mxu0 0.0
    %1351 = vmatprep.subr.mxu0 0.0
    %1352 = vmatpush1.msra.mxu0 0.0
    %1353 = vmatprep.subr.mxu0 0.0
    %1354 = vmatpush1.msra.mxu0 0.0
    %1355 = vmatprep.subr.mxu0 0.0
    %1356 = vmatpush1.msra.mxu0 0.0
    %1357 = vmatprep.subr.mxu0 0.0
    %1358 = vmatpush1.msra.mxu0 0.0
    %1359 = vmatprep.subr.mxu0 0.0
    %1360 = vmatpush1.msra.mxu0 0.0
    %1361 = vmatprep.subr.mxu0 0.0
    %1362 = vmatpush1.msra.mxu0 0.0
    %1363 = vmatprep.subr.mxu0 0.0
    %1364 = vmatpush1.msra.mxu0 0.0
    %1365 = vmatprep.subr.mxu0 0.0
    %1366 = vmatpush1.msra.mxu0 0.0
    %1367 = vmatprep.subr.mxu0 0.0
    %1368 = vmatpush1.msra.mxu0 0.0
    %1369 = vmatprep.subr.mxu0 0.0
    %1370 = vmatpush1.msra.mxu0 0.0
    %1371 = vmatprep.subr.mxu0 0.0
    %1372 = vmatpush1.msra.mxu0 0.0
    %1373 = vmatprep.subr.mxu0 0.0
    %1374 = vmatpush1.msra.mxu0 0.0
    %1375 = vmatprep.mubr.f32.mxu0 0.0
    %1376 = vmatmul.mubr.f32.gmra.mrb[0].mxu0 %v1309
    %v1377 = vpop.f32.mrb[0].mxu0
    %v1378 = vadd.f32 0.0, %v1377
    %v1379 = vpop.f32.mrb[0].mxu0
    %1380 = vdwg.mxu0
    %v1381 = vadd.f32 %v269, %v1378
    %v1382 = vxor.u32 %v1381, 2147483648
    %v1383 = vmul.f32 %v1382, 1.442695
    %v1384 = vpow.pop %v1383
    %v1385 = vadd.f32 %v1384, 1.0
    %v1386 = vrcp.pop %v1385
    %v1387 = vmul.f32 1.0, %v1386
    %v1388 = vtanh.pop %v1381
    %v1389 = vmul.f32 %v1387, %v1195
    %1391 = vrot.lane.b32.xlu0 %v1388, 32
    %v1392 = vpop.permute.xlu0 %1391
    %v1394 = vmul.f32 %v1387, %v1392
    %1396 = vrot.lane.b32.xlu0 %v1394, 32
    %v1397 = vpop.permute.xlu0 %1396
    %v1399 = vadd.f32 %v1389, %v1397
    %v1400 = vtanh.pop %v1399
    %1402 = vrot.lane.b32.xlu0 %v1400, 32
    %v1403 = vpop.permute.xlu0 %1402
    %v1405 = vmul.f32 %v1387, %v1403
    %1407 = vrot.lane.b32.xlu0 %v1405, 64
    %v1408 = vpop.permute.xlu0 %1407
    %1411 = vrot.lane.b32.xlu0 %v1308, 96
    %v1412 = vpop.permute.xlu0 %1411
    %v1414 = vsel %vm198, %v1408, %v1412
    %v1416 = vsel %vm388, %v1414, 0
    %1418 = vmatprep.subr.mxu0 0.0
    %1419 = vmatpush1.msra.mxu0 %v276
    %1420 = vmatprep.subr.mxu0 0.0
    %1421 = vmatpush1.msra.mxu0 %v277
    %1422 = vmatprep.subr.mxu0 0.0
    %1423 = vmatpush1.msra.mxu0 %v278
    %1424 = vmatprep.subr.mxu0 0.0
    %1425 = vmatpush1.msra.mxu0 %v279
    %1426 = vmatprep.subr.mxu0 0.0
    %1427 = vmatpush1.msra.mxu0 %v280
    %1428 = vmatprep.subr.mxu0 0.0
    %1429 = vmatpush1.msra.mxu0 %v281
    %1430 = vmatprep.subr.mxu0 0.0
    %1431 = vmatpush1.msra.mxu0 %v282
    %1432 = vmatprep.subr.mxu0 0.0
    %1433 = vmatpush1.msra.mxu0 %v283
    %1434 = vmatprep.subr.mxu0 0.0
    %1435 = vmatpush1.msra.mxu0 0.0
    %1436 = vmatprep.subr.mxu0 0.0
    %1437 = vmatpush1.msra.mxu0 0.0
    %1438 = vmatprep.subr.mxu0 0.0
    %1439 = vmatpush1.msra.mxu0 0.0
    %1440 = vmatprep.subr.mxu0 0.0
    %1441 = vmatpush1.msra.mxu0 0.0
    %1442 = vmatprep.subr.mxu0 0.0
    %1443 = vmatpush1.msra.mxu0 0.0
    %1444 = vmatprep.subr.mxu0 0.0
    %1445 = vmatpush1.msra.mxu0 0.0
    %1446 = vmatprep.subr.mxu0 0.0
    %1447 = vmatpush1.msra.mxu0 0.0
    %1448 = vmatprep.subr.mxu0 0.0
    %1449 = vmatpush1.msra.mxu0 0.0
    %1450 = vmatprep.subr.mxu0 0.0
    %1451 = vmatpush1.msra.mxu0 0.0
    %1452 = vmatprep.subr.mxu0 0.0
    %1453 = vmatpush1.msra.mxu0 0.0
    %1454 = vmatprep.subr.mxu0 0.0
    %1455 = vmatpush1.msra.mxu0 0.0
    %1456 = vmatprep.subr.mxu0 0.0
    %1457 = vmatpush1.msra.mxu0 0.0
    %1458 = vmatprep.subr.mxu0 0.0
    %1459 = vmatpush1.msra.mxu0 0.0
    %1460 = vmatprep.subr.mxu0 0.0
    %1461 = vmatpush1.msra.mxu0 0.0
    %1462 = vmatprep.subr.mxu0 0.0
    %1463 = vmatpush1.msra.mxu0 0.0
    %1464 = vmatprep.subr.mxu0 0.0
    %1465 = vmatpush1.msra.mxu0 0.0
    %1466 = vmatprep.subr.mxu0 0.0
    %1467 = vmatpush1.msra.mxu0 0.0
    %1468 = vmatprep.subr.mxu0 0.0
    %1469 = vmatpush1.msra.mxu0 0.0
    %1470 = vmatprep.subr.mxu0 0.0
    %1471 = vmatpush1.msra.mxu0 0.0
    %1472 = vmatprep.subr.mxu0 0.0
    %1473 = vmatpush1.msra.mxu0 0.0
    %1474 = vmatprep.subr.mxu0 0.0
    %1475 = vmatpush1.msra.mxu0 0.0
    %1476 = vmatprep.subr.mxu0 0.0
    %1477 = vmatpush1.msra.mxu0 0.0
    %1478 = vmatprep.subr.mxu0 0.0
    %1479 = vmatpush1.msra.mxu0 0.0
    %1480 = vmatprep.subr.mxu0 0.0
    %1481 = vmatpush1.msra.mxu0 0.0
    %1482 = vmatprep.mubr.f32.mxu0 0.0
    %1483 = vmatmul.mubr.f32.gmra.mrb[0].mxu0 %v1416
    %v1484 = vpop.f32.mrb[0].mxu0
    %v1485 = vadd.f32 0.0, %v1484
    %v1486 = vpop.f32.mrb[0].mxu0
    %1487 = vdwg.mxu0
    %v1488 = vadd.f32 %v466, %v1485
    %v1489 = vxor.u32 %v1488, 2147483648
    %v1490 = vmul.f32 %v1489, 1.442695
    %v1491 = vpow.pop %v1490
    %v1492 = vadd.f32 %v1491, 1.0
    %v1493 = vrcp.pop %v1492
    %v1494 = vmul.f32 1.0, %v1493
    %v1495 = vtanh.pop %v1488
    %v1496 = vmul.f32 %v1494, %v1302
    %1498 = vrot.lane.b32.xlu0 %v1495, 32
    %v1499 = vpop.permute.xlu0 %1498
    %v1501 = vmul.f32 %v1494, %v1499
    %1503 = vrot.lane.b32.xlu0 %v1501, 32
    %v1504 = vpop.permute.xlu0 %1503
    %v1506 = vadd.f32 %v1496, %v1504
    %v1507 = vtanh.pop %v1506
    %1509 = vrot.lane.b32.xlu0 %v1507, 32
    %v1510 = vpop.permute.xlu0 %1509
    %v1512 = vmul.f32 %v1494, %v1510
    %v1513 = vsel %vm198, %v1408, 0
    %1515 = vmatprep.subr.mxu0 0.0
    %1516 = vmatpush1.msra.mxu0 %v272
    %1517 = vmatprep.subr.mxu0 0.0
    %1518 = vmatpush1.msra.mxu0 %v273
    %1519 = vmatprep.subr.mxu0 0.0
    %1520 = vmatpush1.msra.mxu0 %v274
    %1521 = vmatprep.subr.mxu0 0.0
    %1522 = vmatpush1.msra.mxu0 %v275
    %1523 = vmatprep.subr.mxu0 0.0
    %1524 = vmatpush1.msra.mxu0 0.0
    %1525 = vmatprep.subr.mxu0 0.0
    %1526 = vmatpush1.msra.mxu0 0.0
    %1527 = vmatprep.subr.mxu0 0.0
    %1528 = vmatpush1.msra.mxu0 0.0
    %1529 = vmatprep.subr.mxu0 0.0
    %1530 = vmatpush1.msra.mxu0 0.0
    %1531 = vmatprep.subr.mxu0 0.0
    %1532 = vmatpush1.msra.mxu0 0.0
    %1533 = vmatprep.subr.mxu0 0.0
    %1534 = vmatpush1.msra.mxu0 0.0
    %1535 = vmatprep.subr.mxu0 0.0
    %1536 = vmatpush1.msra.mxu0 0.0
    %1537 = vmatprep.subr.mxu0 0.0
    %1538 = vmatpush1.msra.mxu0 0.0
    %1539 = vmatprep.subr.mxu0 0.0
    %1540 = vmatpush1.msra.mxu0 0.0
    %1541 = vmatprep.subr.mxu0 0.0
    %1542 = vmatpush1.msra.mxu0 0.0
    %1543 = vmatprep.subr.mxu0 0.0
    %1544 = vmatpush1.msra.mxu0 0.0
    %1545 = vmatprep.subr.mxu0 0.0
    %1546 = vmatpush1.msra.mxu0 0.0
    %1547 = vmatprep.subr.mxu0 0.0
    %1548 = vmatpush1.msra.mxu0 0.0
    %1549 = vmatprep.subr.mxu0 0.0
    %1550 = vmatpush1.msra.mxu0 0.0
    %1551 = vmatprep.subr.mxu0 0.0
    %1552 = vmatpush1.msra.mxu0 0.0
    %1553 = vmatprep.subr.mxu0 0.0
    %1554 = vmatpush1.msra.mxu0 0.0
    %1555 = vmatprep.subr.mxu0 0.0
    %1556 = vmatpush1.msra.mxu0 0.0
    %1557 = vmatprep.subr.mxu0 0.0
    %1558 = vmatpush1.msra.mxu0 0.0
    %1559 = vmatprep.subr.mxu0 0.0
    %1560 = vmatpush1.msra.mxu0 0.0
    %1561 = vmatprep.subr.mxu0 0.0
    %1562 = vmatpush1.msra.mxu0 0.0
    %1563 = vmatprep.subr.mxu0 0.0
    %1564 = vmatpush1.msra.mxu0 0.0
    %1565 = vmatprep.subr.mxu0 0.0
    %1566 = vmatpush1.msra.mxu0 0.0
    %1567 = vmatprep.subr.mxu0 0.0
    %1568 = vmatpush1.msra.mxu0 0.0
    %1569 = vmatprep.subr.mxu0 0.0
    %1570 = vmatpush1.msra.mxu0 0.0
    %1571 = vmatprep.subr.mxu0 0.0
    %1572 = vmatpush1.msra.mxu0 0.0
    %1573 = vmatprep.subr.mxu0 0.0
    %1574 = vmatpush1.msra.mxu0 0.0
    %1575 = vmatprep.subr.mxu0 0.0
    %1576 = vmatpush1.msra.mxu0 0.0
    %1577 = vmatprep.subr.mxu0 0.0
    %1578 = vmatpush1.msra.mxu0 0.0
    %1579 = vmatprep.mubr.f32.mxu0 0.0
    %1580 = vmatmul.mubr.f32.gmra.mrb[0].mxu0 %v1513
    %v1581 = vpop.f32.mrb[0].mxu0
    %v1582 = vadd.f32 0.0, %v1581
    %v1583 = vpop.f32.mrb[0].mxu0
    %1584 = vdwg.mxu0
    %v1585 = vadd.f32 %v269, %v1582
    %v1586 = vxor.u32 %v1585, 2147483648
    %v1587 = vmul.f32 %v1586, 1.442695
    %v1588 = vpow.pop %v1587
    %v1589 = vadd.f32 %v1588, 1.0
    %v1590 = vrcp.pop %v1589
    %v1591 = vmul.f32 1.0, %v1590
    %v1592 = vtanh.pop %v1585
    %v1593 = vmul.f32 %v1591, %v1399
    %1595 = vrot.lane.b32.xlu0 %v1592, 32
    %v1596 = vpop.permute.xlu0 %1595
    %v1598 = vmul.f32 %v1591, %v1596
    %1600 = vrot.lane.b32.xlu0 %v1598, 32
    %v1601 = vpop.permute.xlu0 %1600
    %v1603 = vadd.f32 %v1593, %v1601
    %v1604 = vtanh.pop %v1603
    %1606 = vrot.lane.b32.xlu0 %v1604, 32
    %v1607 = vpop.permute.xlu0 %1606
    %v1609 = vmul.f32 %v1591, %v1607
    %1611 = vrot.lane.b32.xlu0 %v1609, 64
    %v1612 = vpop.permute.xlu0 %1611
    %1615 = vrot.lane.b32.xlu0 %v1512, 96
    %v1616 = vpop.permute.xlu0 %1615
    %v1618 = vsel %vm198, %v1612, %v1616
    %v1620 = vsel %vm388, %v1618, 0
    %1622 = vmatprep.subr.mxu0 0.0
    %1623 = vmatpush1.msra.mxu0 %v276
    %1624 = vmatprep.subr.mxu0 0.0
    %1625 = vmatpush1.msra.mxu0 %v277
    %1626 = vmatprep.subr.mxu0 0.0
    %1627 = vmatpush1.msra.mxu0 %v278
    %1628 = vmatprep.subr.mxu0 0.0
    %1629 = vmatpush1.msra.mxu0 %v279
    %1630 = vmatprep.subr.mxu0 0.0
    %1631 = vmatpush1.msra.mxu0 %v280
    %1632 = vmatprep.subr.mxu0 0.0
    %1633 = vmatpush1.msra.mxu0 %v281
    %1634 = vmatprep.subr.mxu0 0.0
    %1635 = vmatpush1.msra.mxu0 %v282
    %1636 = vmatprep.subr.mxu0 0.0
    %1637 = vmatpush1.msra.mxu0 %v283
    %1638 = vmatprep.subr.mxu0 0.0
    %1639 = vmatpush1.msra.mxu0 0.0
    %1640 = vmatprep.subr.mxu0 0.0
    %1641 = vmatpush1.msra.mxu0 0.0
    %1642 = vmatprep.subr.mxu0 0.0
    %1643 = vmatpush1.msra.mxu0 0.0
    %1644 = vmatprep.subr.mxu0 0.0
    %1645 = vmatpush1.msra.mxu0 0.0
    %1646 = vmatprep.subr.mxu0 0.0
    %1647 = vmatpush1.msra.mxu0 0.0
    %1648 = vmatprep.subr.mxu0 0.0
    %1649 = vmatpush1.msra.mxu0 0.0
    %1650 = vmatprep.subr.mxu0 0.0
    %1651 = vmatpush1.msra.mxu0 0.0
    %1652 = vmatprep.subr.mxu0 0.0
    %1653 = vmatpush1.msra.mxu0 0.0
    %1654 = vmatprep.subr.mxu0 0.0
    %1655 = vmatpush1.msra.mxu0 0.0
    %1656 = vmatprep.subr.mxu0 0.0
    %1657 = vmatpush1.msra.mxu0 0.0
    %1658 = vmatprep.subr.mxu0 0.0
    %1659 = vmatpush1.msra.mxu0 0.0
    %1660 = vmatprep.subr.mxu0 0.0
    %1661 = vmatpush1.msra.mxu0 0.0
    %1662 = vmatprep.subr.mxu0 0.0
    %1663 = vmatpush1.msra.mxu0 0.0
    %1664 = vmatprep.subr.mxu0 0.0
    %1665 = vmatpush1.msra.mxu0 0.0
    %1666 = vmatprep.subr.mxu0 0.0
    %1667 = vmatpush1.msra.mxu0 0.0
    %1668 = vmatprep.subr.mxu0 0.0
    %1669 = vmatpush1.msra.mxu0 0.0
    %1670 = vmatprep.subr.mxu0 0.0
    %1671 = vmatpush1.msra.mxu0 0.0
    %1672 = vmatprep.subr.mxu0 0.0
    %1673 = vmatpush1.msra.mxu0 0.0
    %1674 = vmatprep.subr.mxu0 0.0
    %1675 = vmatpush1.msra.mxu0 0.0
    %1676 = vmatprep.subr.mxu0 0.0
    %1677 = vmatpush1.msra.mxu0 0.0
    %1678 = vmatprep.subr.mxu0 0.0
    %1679 = vmatpush1.msra.mxu0 0.0
    %1680 = vmatprep.subr.mxu0 0.0
    %1681 = vmatpush1.msra.mxu0 0.0
    %1682 = vmatprep.subr.mxu0 0.0
    %1683 = vmatpush1.msra.mxu0 0.0
    %1684 = vmatprep.subr.mxu0 0.0
    %1685 = vmatpush1.msra.mxu0 0.0
    %1686 = vmatprep.mubr.f32.mxu0 0.0
    %1687 = vmatmul.mubr.f32.gmra.mrb[0].mxu0 %v1620
    %v1688 = vpop.f32.mrb[0].mxu0
    %v1689 = vadd.f32 0.0, %v1688
    %v1690 = vpop.f32.mrb[0].mxu0
    %1691 = vdwg.mxu0
    %v1692 = vadd.f32 %v466, %v1689
    %v1693 = vxor.u32 %v1692, 2147483648
    %v1694 = vmul.f32 %v1693, 1.442695
    %v1695 = vpow.pop %v1694
    %v1696 = vadd.f32 %v1695, 1.0
    %v1697 = vrcp.pop %v1696
    %v1698 = vmul.f32 1.0, %v1697
    %v1699 = vtanh.pop %v1692
    %v1700 = vmul.f32 %v1698, %v1506
    %1702 = vrot.lane.b32.xlu0 %v1699, 32
    %v1703 = vpop.permute.xlu0 %1702
    %v1705 = vmul.f32 %v1698, %v1703
    %1707 = vrot.lane.b32.xlu0 %v1705, 32
    %v1708 = vpop.permute.xlu0 %1707
    %v1710 = vadd.f32 %v1700, %v1708
    %v1711 = vtanh.pop %v1710
    %1713 = vrot.lane.b32.xlu0 %v1711, 32
    %v1714 = vpop.permute.xlu0 %1713
    %v1716 = vmul.f32 %v1698, %v1714
    %v1717 = vsel %vm198, %v1612, 0
    %1719 = vmatprep.subr.mxu0 0.0
    %1720 = vmatpush1.msra.mxu0 %v272
    %1721 = vmatprep.subr.mxu0 0.0
    %1722 = vmatpush1.msra.mxu0 %v273
    %1723 = vmatprep.subr.mxu0 0.0
    %1724 = vmatpush1.msra.mxu0 %v274
    %1725 = vmatprep.subr.mxu0 0.0
    %1726 = vmatpush1.msra.mxu0 %v275
    %1727 = vmatprep.subr.mxu0 0.0
    %1728 = vmatpush1.msra.mxu0 0.0
    %1729 = vmatprep.subr.mxu0 0.0
    %1730 = vmatpush1.msra.mxu0 0.0
    %1731 = vmatprep.subr.mxu0 0.0
    %1732 = vmatpush1.msra.mxu0 0.0
    %1733 = vmatprep.subr.mxu0 0.0
    %1734 = vmatpush1.msra.mxu0 0.0
    %1735 = vmatprep.subr.mxu0 0.0
    %1736 = vmatpush1.msra.mxu0 0.0
    %1737 = vmatprep.subr.mxu0 0.0
    %1738 = vmatpush1.msra.mxu0 0.0
    %1739 = vmatprep.subr.mxu0 0.0
    %1740 = vmatpush1.msra.mxu0 0.0
    %1741 = vmatprep.subr.mxu0 0.0
    %1742 = vmatpush1.msra.mxu0 0.0
    %1743 = vmatprep.subr.mxu0 0.0
    %1744 = vmatpush1.msra.mxu0 0.0
    %1745 = vmatprep.subr.mxu0 0.0
    %1746 = vmatpush1.msra.mxu0 0.0
    %1747 = vmatprep.subr.mxu0 0.0
    %1748 = vmatpush1.msra.mxu0 0.0
    %1749 = vmatprep.subr.mxu0 0.0
    %1750 = vmatpush1.msra.mxu0 0.0
    %1751 = vmatprep.subr.mxu0 0.0
    %1752 = vmatpush1.msra.mxu0 0.0
    %1753 = vmatprep.subr.mxu0 0.0
    %1754 = vmatpush1.msra.mxu0 0.0
    %1755 = vmatprep.subr.mxu0 0.0
    %1756 = vmatpush1.msra.mxu0 0.0
    %1757 = vmatprep.subr.mxu0 0.0
    %1758 = vmatpush1.msra.mxu0 0.0
    %1759 = vmatprep.subr.mxu0 0.0
    %1760 = vmatpush1.msra.mxu0 0.0
    %1761 = vmatprep.subr.mxu0 0.0
    %1762 = vmatpush1.msra.mxu0 0.0
    %1763 = vmatprep.subr.mxu0 0.0
    %1764 = vmatpush1.msra.mxu0 0.0
    %1765 = vmatprep.subr.mxu0 0.0
    %1766 = vmatpush1.msra.mxu0 0.0
    %1767 = vmatprep.subr.mxu0 0.0
    %1768 = vmatpush1.msra.mxu0 0.0
    %1769 = vmatprep.subr.mxu0 0.0
    %1770 = vmatpush1.msra.mxu0 0.0
    %1771 = vmatprep.subr.mxu0 0.0
    %1772 = vmatpush1.msra.mxu0 0.0
    %1773 = vmatprep.subr.mxu0 0.0
    %1774 = vmatpush1.msra.mxu0 0.0
    %1775 = vmatprep.subr.mxu0 0.0
    %1776 = vmatpush1.msra.mxu0 0.0
    %1777 = vmatprep.subr.mxu0 0.0
    %1778 = vmatpush1.msra.mxu0 0.0
    %1779 = vmatprep.subr.mxu0 0.0
    %1780 = vmatpush1.msra.mxu0 0.0
    %1781 = vmatprep.subr.mxu0 0.0
    %1782 = vmatpush1.msra.mxu0 0.0
    %1783 = vmatprep.mubr.f32.mxu0 0.0
    %1784 = vmatmul.mubr.f32.gmra.mrb[0].mxu0 %v1717
    %v1785 = vpop.f32.mrb[0].mxu0
    %v1786 = vadd.f32 0.0, %v1785
    %v1787 = vpop.f32.mrb[0].mxu0
    %1788 = vdwg.mxu0
    %v1789 = vadd.f32 %v269, %v1786
    %v1790 = vxor.u32 %v1789, 2147483648
    %v1791 = vmul.f32 %v1790, 1.442695
    %v1792 = vpow.pop %v1791
    %v1793 = vadd.f32 %v1792, 1.0
    %v1794 = vrcp.pop %v1793
    %v1795 = vmul.f32 1.0, %v1794
    %v1796 = vtanh.pop %v1789
    %v1797 = vmul.f32 %v1795, %v1603
    %1799 = vrot.lane.b32.xlu0 %v1796, 32
    %v1800 = vpop.permute.xlu0 %1799
    %v1802 = vmul.f32 %v1795, %v1800
    %1804 = vrot.lane.b32.xlu0 %v1802, 32
    %v1805 = vpop.permute.xlu0 %1804
    %v1807 = vadd.f32 %v1797, %v1805
    %v1808 = vtanh.pop %v1807
    %1810 = vrot.lane.b32.xlu0 %v1808, 32
    %v1811 = vpop.permute.xlu0 %1810
    %v1813 = vmul.f32 %v1795, %v1811
    %1815 = vrot.lane.b32.xlu0 %v1813, 64
    %v1816 = vpop.permute.xlu0 %1815
    %1819 = vrot.lane.b32.xlu0 %v1716, 96
    %v1820 = vpop.permute.xlu0 %1819
    %v1822 = vsel %vm198, %v1816, %v1820
    %v1824 = vsel %vm388, %v1822, 0
    %1826 = vmatprep.subr.mxu0 0.0
    %1827 = vmatpush1.msra.mxu0 %v276
    %1828 = vmatprep.subr.mxu0 0.0
    %1829 = vmatpush1.msra.mxu0 %v277
    %1830 = vmatprep.subr.mxu0 0.0
    %1831 = vmatpush1.msra.mxu0 %v278
    %1832 = vmatprep.subr.mxu0 0.0
    %1833 = vmatpush1.msra.mxu0 %v279
    %1834 = vmatprep.subr.mxu0 0.0
    %1835 = vmatpush1.msra.mxu0 %v280
    %1836 = vmatprep.subr.mxu0 0.0
    %1837 = vmatpush1.msra.mxu0 %v281
    %1838 = vmatprep.subr.mxu0 0.0
    %1839 = vmatpush1.msra.mxu0 %v282
    %1840 = vmatprep.subr.mxu0 0.0
    %1841 = vmatpush1.msra.mxu0 %v283
    %1842 = vmatprep.subr.mxu0 0.0
    %1843 = vmatpush1.msra.mxu0 0.0
    %1844 = vmatprep.subr.mxu0 0.0
    %1845 = vmatpush1.msra.mxu0 0.0
    %1846 = vmatprep.subr.mxu0 0.0
    %1847 = vmatpush1.msra.mxu0 0.0
    %1848 = vmatprep.subr.mxu0 0.0
    %1849 = vmatpush1.msra.mxu0 0.0
    %1850 = vmatprep.subr.mxu0 0.0
    %1851 = vmatpush1.msra.mxu0 0.0
    %1852 = vmatprep.subr.mxu0 0.0
    %1853 = vmatpush1.msra.mxu0 0.0
    %1854 = vmatprep.subr.mxu0 0.0
    %1855 = vmatpush1.msra.mxu0 0.0
    %1856 = vmatprep.subr.mxu0 0.0
    %1857 = vmatpush1.msra.mxu0 0.0
    %1858 = vmatprep.subr.mxu0 0.0
    %1859 = vmatpush1.msra.mxu0 0.0
    %1860 = vmatprep.subr.mxu0 0.0
    %1861 = vmatpush1.msra.mxu0 0.0
    %1862 = vmatprep.subr.mxu0 0.0
    %1863 = vmatpush1.msra.mxu0 0.0
    %1864 = vmatprep.subr.mxu0 0.0
    %1865 = vmatpush1.msra.mxu0 0.0
    %1866 = vmatprep.subr.mxu0 0.0
    %1867 = vmatpush1.msra.mxu0 0.0
    %1868 = vmatprep.subr.mxu0 0.0
    %1869 = vmatpush1.msra.mxu0 0.0
    %1870 = vmatprep.subr.mxu0 0.0
    %1871 = vmatpush1.msra.mxu0 0.0
    %1872 = vmatprep.subr.mxu0 0.0
    %1873 = vmatpush1.msra.mxu0 0.0
    %1874 = vmatprep.subr.mxu0 0.0
    %1875 = vmatpush1.msra.mxu0 0.0
    %1876 = vmatprep.subr.mxu0 0.0
    %1877 = vmatpush1.msra.mxu0 0.0
    %1878 = vmatprep.subr.mxu0 0.0
    %1879 = vmatpush1.msra.mxu0 0.0
    %1880 = vmatprep.subr.mxu0 0.0
    %1881 = vmatpush1.msra.mxu0 0.0
    %1882 = vmatprep.subr.mxu0 0.0
    %1883 = vmatpush1.msra.mxu0 0.0
    %1884 = vmatprep.subr.mxu0 0.0
    %1885 = vmatpush1.msra.mxu0 0.0
    %1886 = vmatprep.subr.mxu0 0.0
    %1887 = vmatpush1.msra.mxu0 0.0
    %1888 = vmatprep.subr.mxu0 0.0
    %1889 = vmatpush1.msra.mxu0 0.0
    %1890 = vmatprep.mubr.f32.mxu0 0.0
    %1891 = vmatmul.mubr.f32.gmra.mrb[0].mxu0 %v1824
    %v1892 = vpop.f32.mrb[0].mxu0
    %v1893 = vadd.f32 0.0, %v1892
    %v1894 = vpop.f32.mrb[0].mxu0
    %1895 = vdwg.mxu0
    %v1896 = vadd.f32 %v466, %v1893
    %v1897 = vxor.u32 %v1896, 2147483648
    %v1898 = vmul.f32 %v1897, 1.442695
    %v1899 = vpow.pop %v1898
    %v1900 = vadd.f32 %v1899, 1.0
    %v1901 = vrcp.pop %v1900
    %v1902 = vmul.f32 1.0, %v1901
    %v1903 = vtanh.pop %v1896
    %v1904 = vmul.f32 %v1902, %v1710
    %1906 = vrot.lane.b32.xlu0 %v1903, 32
    %v1907 = vpop.permute.xlu0 %1906
    %v1909 = vmul.f32 %v1902, %v1907
    %1911 = vrot.lane.b32.xlu0 %v1909, 32
    %v1912 = vpop.permute.xlu0 %1911
    %v1914 = vadd.f32 %v1904, %v1912
    %v1915 = vtanh.pop %v1914
    %1917 = vrot.lane.b32.xlu0 %v1915, 32
    %v1918 = vpop.permute.xlu0 %1917
    %v1920 = vmul.f32 %v1902, %v1918
    %v1921 = vrot.slane %v696, 6
    %v1923 = vrot.slane %v900, 4
    %v1925 = vrot.slane %v1104, 2
    %v1927 = vrot.slane %v1512, 6
    %v1929 = vrot.slane %v1716, 4
    %v1932 = vrot.slane %v1920, 2
    %vm1934 = vcmask 1041408
    %v1935 = vsel %vm1934, %v492, %v1921
    %vm1936 = vcmask 1043456
    %v1937 = vsel %vm1936, %v1935, %v1923
    %vm1938 = vcmask 1045504
    %v1939 = vsel %vm1938, %v1937, %v1925
    %v1940 = vsel %vm1934, %v1308, %v1927
    %v1941 = vsel %vm1936, %v1940, %v1929
    %v1942 = vsel %vm1938, %v1941, %v1932
    %v1943 = vmax.f32 %v1939, 0.0
    %v1944 = vmax.f32 %v1942, 0.0
    %v1945 = vld [vmem:[#allocation10] sm:$0xff]
    %v1946 = vld [vmem:[#allocation10 + $0x8] sm:$0xff]
    %v1947 = vld [vmem:[#allocation10 + $0x10] sm:$0xff]
    %v1948 = vld [vmem:[#allocation10 + $0x18] sm:$0xff]
    %v1949 = vld [vmem:[#allocation11] sm:$0x1]
    %v1951 = vlaneseq
    %v1952 = vshrl.u32 %v1951, 7
    %v1953 = vsub.s32 0, %v1952
    %v1954 = vrot.slane %v1949, %v1953
    %1958 = vrot.lane.b32.xlu0 %v1943, 64
    %v1959 = vpop.permute.xlu0 %1958
    %1960 = vrot.lane.b32.xlu0 %v1944, 64
    %v1961 = vpop.permute.xlu0 %1960
    %v1962 = vsel %vm198, %v1959, 0
    %v1964 = vsel %vm198, %v1961, 0
    %1966 = vmatprep.subr.mxu0 0.0
    %1967 = vmatpush1.msra.mxu0 %v1945
    %1968 = vmatprep.subr.mxu0 0.0
    %1969 = vmatpush1.msra.mxu0 %v1946
    %1970 = vmatprep.subr.mxu0 0.0
    %1971 = vmatpush1.msra.mxu0 %v1947
    %1972 = vmatprep.subr.mxu0 0.0
    %1973 = vmatpush1.msra.mxu0 %v1948
    %1974 = vmatprep.subr.mxu0 0.0
    %1975 = vmatpush1.msra.mxu0 0.0
    %1976 = vmatprep.subr.mxu0 0.0
    %1977 = vmatpush1.msra.mxu0 0.0
    %1978 = vmatprep.subr.mxu0 0.0
    %1979 = vmatpush1.msra.mxu0 0.0
    %1980 = vmatprep.subr.mxu0 0.0
    %1981 = vmatpush1.msra.mxu0 0.0
    %1982 = vmatprep.subr.mxu0 0.0
    %1983 = vmatpush1.msra.mxu0 0.0
    %1984 = vmatprep.subr.mxu0 0.0
    %1985 = vmatpush1.msra.mxu0 0.0
    %1986 = vmatprep.subr.mxu0 0.0
    %1987 = vmatpush1.msra.mxu0 0.0
    %1988 = vmatprep.subr.mxu0 0.0
    %1989 = vmatpush1.msra.mxu0 0.0
    %1990 = vmatprep.subr.mxu0 0.0
    %1991 = vmatpush1.msra.mxu0 0.0
    %1992 = vmatprep.subr.mxu0 0.0
    %1993 = vmatpush1.msra.mxu0 0.0
    %1994 = vmatprep.subr.mxu0 0.0
    %1995 = vmatpush1.msra.mxu0 0.0
    %1996 = vmatprep.subr.mxu0 0.0
    %1997 = vmatpush1.msra.mxu0 0.0
    %1998 = vmatprep.subr.mxu0 0.0
    %1999 = vmatpush1.msra.mxu0 0.0
    %2000 = vmatprep.subr.mxu0 0.0
    %2001 = vmatpush1.msra.mxu0 0.0
    %2002 = vmatprep.subr.mxu0 0.0
    %2003 = vmatpush1.msra.mxu0 0.0
    %2004 = vmatprep.subr.mxu0 0.0
    %2005 = vmatpush1.msra.mxu0 0.0
    %2006 = vmatprep.subr.mxu0 0.0
    %2007 = vmatpush1.msra.mxu0 0.0
    %2008 = vmatprep.subr.mxu0 0.0
    %2009 = vmatpush1.msra.mxu0 0.0
    %2010 = vmatprep.subr.mxu0 0.0
    %2011 = vmatpush1.msra.mxu0 0.0
    %2012 = vmatprep.subr.mxu0 0.0
    %2013 = vmatpush1.msra.mxu0 0.0
    %2014 = vmatprep.subr.mxu0 0.0
    %2015 = vmatpush1.msra.mxu0 0.0
    %2016 = vmatprep.subr.mxu0 0.0
    %2017 = vmatpush1.msra.mxu0 0.0
    %2018 = vmatprep.subr.mxu0 0.0
    %2019 = vmatpush1.msra.mxu0 0.0
    %2020 = vmatprep.subr.mxu0 0.0
    %2021 = vmatpush1.msra.mxu0 0.0
    %2022 = vmatprep.subr.mxu0 0.0
    %2023 = vmatpush1.msra.mxu0 0.0
    %2024 = vmatprep.subr.mxu0 0.0
    %2025 = vmatpush1.msra.mxu0 0.0
    %2026 = vmatprep.subr.mxu0 0.0
    %2027 = vmatpush1.msra.mxu0 0.0
    %2028 = vmatprep.subr.mxu0 0.0
    %2029 = vmatpush1.msra.mxu0 0.0
    %2030 = vmatprep.mubr.f32.mxu0 0.0
    %2031 = vmatmul.mubr.f32.gmra.mrb[0].mxu0 %v1962
    %v2032 = vpop.f32.mrb[0].mxu0
    %v2033 = vadd.f32 %v1954, %v2032
    %v2034 = vpop.f32.mrb[0].mxu0
    %2035 = vmatprep.mubr.f32.mxu0 0.0
    %2036 = vmatmul.mubr.f32.gmra.mrb[0].mxu0 %v1964
    %v2037 = vpop.f32.mrb[0].mxu0
    %v2038 = vadd.f32 %v1954, %v2037
    %v2039 = vpop.f32.mrb[0].mxu0
    %2040 = vdwg.mxu0
    %v2041 = vlaneseq
    %v2042 = vshrl.u32 %v2041, 7
    %v2043 = vadd.s32 %v2042, 8
    %v2044 = vlaneseq
    %v2045 = vand.u32 %v2044, 127
    %vm2046 = vcmp.lt.s32.totalorder %v2042, 0
    %v2047 = vsub.s32 0, %v2042
    %v2048 = vsel %vm2046, %v2047, %v2042
    %v2049 = vshrl.u32 %v2048, 1
    %v2050 = vand.u32 %v2048, 1
    %v2051 = vsub.s32 0, %v2050
    %v2052 = vsel %vm2046, %v2051, %v2050
    %vm2053 = vcmp.lt.s32.totalorder %v2043, 0
    %v2054 = vsub.s32 0, %v2043
    %v2055 = vsel %vm2053, %v2054, %v2043
    %v2056 = vshrl.u32 %v2055, 1
    %v2057 = vand.u32 %v2055, 1
    %v2058 = vsub.s32 0, %v2057
    %v2059 = vsel %vm2053, %v2058, %v2057
    %vm2060 = vcmp.ne.s32.totalorder %v2052, 0
    %vm2061 = vcmp.ne.s32.totalorder %v2059, 0
    %vm2062 = vcmp.lt.s32.totalorder %v2052, 0
    %vm2063 = vcmp.lt.s32.totalorder %v2059, 0
    %vm2064 = vmand %vm2062, %vm2060
    %vm2065 = vmand %vm2063, %vm2061
    %v2066 = vadd.s32 %v2052, 2
    %v2067 = vadd.s32 %v2059, 2
    %v2068 = vsel %vm2064, %v2066, %v2052
    %v2069 = vsel %vm2065, %v2067, %v2059
    %vm2070 = vcmp.lt.s32.totalorder %v2045, 0
    %v2071 = vsub.s32 0, %v2045
    %v2072 = vsel %vm2070, %v2071, %v2045
    %v2073 = vshrl.u32 %v2072, 1
    %v2074 = vand.u32 %v2072, 1
    %v2075 = vsub.s32 0, %v2074
    %v2076 = vsel %vm2070, %v2075, %v2074
    %vm2077 = vcmp.ne.s32.totalorder %v2076, 0
    %vm2078 = vcmp.lt.s32.totalorder %v2076, 0
    %vm2079 = vmand %vm2078, %vm2077
    %v2080 = vadd.s32 %v2076, 2
    %v2081 = vsel %vm2079, %v2080, %v2076
    %vm2082 = vcmp.eq.s32.totalorder %v2068, %v2081
    %vm2083 = vcmp.eq.s32.totalorder %v2069, %v2081
    %v2084 = vsel %vm2082, 0.0, -1e+30
    %v2085 = vsel %vm2083, 0.0, -1e+30
    %2088 = vrot.lane.b32.xlu0 %v2033, 96
    %v2089 = vpop.permute.xlu0 %2088
    %2090 = vrot.lane.b32.xlu0 %v2038, 96
    %v2091 = vpop.permute.xlu0 %2090
    %vm2092 = vcmask 64512
    %v2093 = vsel %vm2092, %v2033, 0
    %v2095 = vsel %vm2092, %v2038, 0
    %v2097 = vsel %vm2092, %v2089, 0
    %v2099 = vsel %vm2092, %v2091, 0
    %2101 = vmatprep.subr.mxu0 0.0
    %2102 = vmatpush1.xpose.msra.mxu0 %v2097
    %2103 = vmatprep.subr.mxu0 0.0
    %2104 = vmatpush1.xpose.msra.mxu0 %v2099
    %2105 = vmatprep.subr.mxu0 0.0
    %2106 = vmatpush1.xpose.msra.mxu0 0.0
    %2107 = vmatprep.subr.mxu0 0.0
    %2108 = vmatpush1.xpose.msra.mxu0 0.0
    %2109 = vmatprep.subr.mxu0 0.0
    %2110 = vmatpush1.xpose.msra.mxu0 0.0
    %2111 = vmatprep.subr.mxu0 0.0
    %2112 = vmatpush1.xpose.msra.mxu0 0.0
    %2113 = vmatprep.subr.mxu0 0.0
    %2114 = vmatpush1.xpose.msra.mxu0 0.0
    %2115 = vmatprep.subr.mxu0 0.0
    %2116 = vmatpush1.xpose.msra.mxu0 0.0
    %2117 = vmatprep.subr.mxu0 0.0
    %2118 = vmatpush1.xpose.msra.mxu0 0.0
    %2119 = vmatprep.subr.mxu0 0.0
    %2120 = vmatpush1.xpose.msra.mxu0 0.0
    %2121 = vmatprep.subr.mxu0 0.0
    %2122 = vmatpush1.xpose.msra.mxu0 0.0
    %2123 = vmatprep.subr.mxu0 0.0
    %2124 = vmatpush1.xpose.msra.mxu0 0.0
    %2125 = vmatprep.subr.mxu0 0.0
    %2126 = vmatpush1.xpose.msra.mxu0 0.0
    %2127 = vmatprep.subr.mxu0 0.0
    %2128 = vmatpush1.xpose.msra.mxu0 0.0
    %2129 = vmatprep.subr.mxu0 0.0
    %2130 = vmatpush1.xpose.msra.mxu0 0.0
    %2131 = vmatprep.subr.mxu0 0.0
    %2132 = vmatpush1.xpose.msra.mxu0 0.0
    %2133 = vmatprep.subr.mxu0 0.0
    %2134 = vmatpush1.xpose.msra.mxu0 0.0
    %2135 = vmatprep.subr.mxu0 0.0
    %2136 = vmatpush1.xpose.msra.mxu0 0.0
    %2137 = vmatprep.subr.mxu0 0.0
    %2138 = vmatpush1.xpose.msra.mxu0 0.0
    %2139 = vmatprep.subr.mxu0 0.0
    %2140 = vmatpush1.xpose.msra.mxu0 0.0
    %2141 = vmatprep.subr.mxu0 0.0
    %2142 = vmatpush1.xpose.msra.mxu0 0.0
    %2143 = vmatprep.subr.mxu0 0.0
    %2144 = vmatpush1.xpose.msra.mxu0 0.0
    %2145 = vmatprep.subr.mxu0 0.0
    %2146 = vmatpush1.xpose.msra.mxu0 0.0
    %2147 = vmatprep.subr.mxu0 0.0
    %2148 = vmatpush1.xpose.msra.mxu0 0.0
    %2149 = vmatprep.subr.mxu0 0.0
    %2150 = vmatpush1.xpose.msra.mxu0 0.0
    %2151 = vmatprep.subr.mxu0 0.0
    %2152 = vmatpush1.xpose.msra.mxu0 0.0
    %2153 = vmatprep.subr.mxu0 0.0
    %2154 = vmatpush1.xpose.msra.mxu0 0.0
    %2155 = vmatprep.subr.mxu0 0.0
    %2156 = vmatpush1.xpose.msra.mxu0 0.0
    %2157 = vmatprep.subr.mxu0 0.0
    %2158 = vmatpush1.xpose.msra.mxu0 0.0
    %2159 = vmatprep.subr.mxu0 0.0
    %2160 = vmatpush1.xpose.msra.mxu0 0.0
    %2161 = vmatprep.subr.mxu0 0.0
    %2162 = vmatpush1.xpose.msra.mxu0 0.0
    %2163 = vmatprep.subr.mxu0 0.0
    %2164 = vmatpush1.xpose.msra.mxu0 0.0
    %2165 = vmatprep.mubr.f32.mxu0 0.0
    %2166 = vmatmul.mubr.f32.gmra.mrb[0].mxu0 %v2093
    %v2167 = vpop.f32.mrb[0].mxu0
    %v2168 = vadd.f32 %v2084, %v2167
    %v2169 = vpop.f32.mrb[0].mxu0
    %2170 = vmatprep.mubr.f32.mxu0 0.0
    %2171 = vmatmul.mubr.f32.gmra.mrb[0].mxu0 %v2095
    %v2172 = vpop.f32.mrb[0].mxu0
    %v2173 = vadd.f32 %v2085, %v2172
    %v2174 = vpop.f32.mrb[0].mxu0
    %2175 = vdwg.mxu0
    %vm2176 = vcmask 130048
    %v2177 = vsel %vm2176, %v2168, -inf
    %2178 = vmax.xlane.f32.xlu0 %v2177
    %v2179 = vpop.xlane.xlu0 %2178
    %v2180 = vsel %vm2176, %v2173, -inf
    %2181 = vmax.xlane.f32.xlu0 %v2180
    %v2182 = vpop.xlane.xlu0 %2181
    %v2183 = vsub.f32 %v2168, %v2179
    %v2184 = vsub.f32 %v2173, %v2182
    %v2185 = vmul.f32 %v2183, 1.442695
    %v2186 = vpow.pop %v2185
    %v2187 = vmul.f32 %v2184, 1.442695
    %v2188 = vpow.pop %v2187
    %v2189 = vsel %vm2176, %v2186, 0.0
    %2190 = vadd.xlane.f32.xlu0 %v2189
    %v2191 = vpop.xlane.xlu0 %2190
    %v2192 = vsel %vm2176, %v2188, 0.0
    %2193 = vadd.xlane.f32.xlu0 %v2192
    %v2194 = vpop.xlane.xlu0 %2193
    %v2195 = vrcp.pop %v2191
    %v2196 = vrcp.pop %v2194
    %v2197 = vmul.f32 %v2186, %v2195
    %v2198 = vmul.f32 %v2188, %v2196
    %2199 = vrot.lane.b32.xlu0 %v2033, 64
    %v2200 = vpop.permute.xlu0 %2199
    %2201 = vrot.lane.b32.xlu0 %v2038, 64
    %v2202 = vpop.permute.xlu0 %2201
    %v2206 = vsel %vm2176, %v2197, 0
    %v2209 = vsel %vm2176, %v2198, 0
    %2211 = vmatprep.subr.mxu0 0.0
    %2212 = vmatpush1.msra.mxu0 %v2200
    %2213 = vmatprep.subr.mxu0 0.0
    %2214 = vmatpush1.msra.mxu0 %v2202
    %2215 = vmatprep.subr.mxu0 0.0
    %2216 = vmatpush1.msra.mxu0 0.0
    %2217 = vmatprep.subr.mxu0 0.0
    %2218 = vmatpush1.msra.mxu0 0.0
    %2219 = vmatprep.subr.mxu0 0.0
    %2220 = vmatpush1.msra.mxu0 0.0
    %2221 = vmatprep.subr.mxu0 0.0
    %2222 = vmatpush1.msra.mxu0 0.0
    %2223 = vmatprep.subr.mxu0 0.0
    %2224 = vmatpush1.msra.mxu0 0.0
    %2225 = vmatprep.subr.mxu0 0.0
    %2226 = vmatpush1.msra.mxu0 0.0
    %2227 = vmatprep.subr.mxu0 0.0
    %2228 = vmatpush1.msra.mxu0 0.0
    %2229 = vmatprep.subr.mxu0 0.0
    %2230 = vmatpush1.msra.mxu0 0.0
    %2231 = vmatprep.subr.mxu0 0.0
    %2232 = vmatpush1.msra.mxu0 0.0
    %2233 = vmatprep.subr.mxu0 0.0
    %2234 = vmatpush1.msra.mxu0 0.0
    %2235 = vmatprep.subr.mxu0 0.0
    %2236 = vmatpush1.msra.mxu0 0.0
    %2237 = vmatprep.subr.mxu0 0.0
    %2238 = vmatpush1.msra.mxu0 0.0
    %2239 = vmatprep.subr.mxu0 0.0
    %2240 = vmatpush1.msra.mxu0 0.0
    %2241 = vmatprep.subr.mxu0 0.0
    %2242 = vmatpush1.msra.mxu0 0.0
    %2243 = vmatprep.subr.mxu0 0.0
    %2244 = vmatpush1.msra.mxu0 0.0
    %2245 = vmatprep.subr.mxu0 0.0
    %2246 = vmatpush1.msra.mxu0 0.0
    %2247 = vmatprep.subr.mxu0 0.0
    %2248 = vmatpush1.msra.mxu0 0.0
    %2249 = vmatprep.subr.mxu0 0.0
    %2250 = vmatpush1.msra.mxu0 0.0
    %2251 = vmatprep.subr.mxu0 0.0
    %2252 = vmatpush1.msra.mxu0 0.0
    %2253 = vmatprep.subr.mxu0 0.0
    %2254 = vmatpush1.msra.mxu0 0.0
    %2255 = vmatprep.subr.mxu0 0.0
    %2256 = vmatpush1.msra.mxu0 0.0
    %2257 = vmatprep.subr.mxu0 0.0
    %2258 = vmatpush1.msra.mxu0 0.0
    %2259 = vmatprep.subr.mxu0 0.0
    %2260 = vmatpush1.msra.mxu0 0.0
    %2261 = vmatprep.subr.mxu0 0.0
    %2262 = vmatpush1.msra.mxu0 0.0
    %2263 = vmatprep.subr.mxu0 0.0
    %2264 = vmatpush1.msra.mxu0 0.0
    %2265 = vmatprep.subr.mxu0 0.0
    %2266 = vmatpush1.msra.mxu0 0.0
    %2267 = vmatprep.subr.mxu0 0.0
    %2268 = vmatpush1.msra.mxu0 0.0
    %2269 = vmatprep.subr.mxu0 0.0
    %2270 = vmatpush1.msra.mxu0 0.0
    %2271 = vmatprep.subr.mxu0 0.0
    %2272 = vmatpush1.msra.mxu0 0.0
    %2273 = vmatprep.subr.mxu0 0.0
    %2274 = vmatpush1.msra.mxu0 0.0
    %2275 = vmatprep.mubr.f32.mxu0 0.0
    %2276 = vmatmul.mubr.f32.gmra.mrb[0].mxu0 %v2206
    %v2277 = vpop.f32.mrb[0].mxu0
    %v2278 = vadd.f32 0.0, %v2277
    %v2279 = vpop.f32.mrb[0].mxu0
    %2280 = vmatprep.mubr.f32.mxu0 0.0
    %2281 = vmatmul.mubr.f32.gmra.mrb[0].mxu0 %v2209
    %v2282 = vpop.f32.mrb[0].mxu0
    %v2283 = vadd.f32 0.0, %v2282
    %v2284 = vpop.f32.mrb[0].mxu0
    %2285 = vdwg.mxu0
    %2286 = vrot.lane.b32.xlu0 %v2033, 120
    %v2287 = vpop.permute.xlu0 %2286
    %2288 = vrot.lane.b32.xlu0 %v2038, 120
    %v2289 = vpop.permute.xlu0 %2288
    %2290 = vrot.lane.b32.xlu0 %v2033, 88
    %v2291 = vpop.permute.xlu0 %2290
    %2292 = vrot.lane.b32.xlu0 %v2038, 88
    %v2293 = vpop.permute.xlu0 %2292
    %v2294 = vsel %vm2092, %v2287, 0
    %v2296 = vsel %vm2092, %v2289, 0
    %v2298 = vsel %vm2092, %v2291, 0
    %v2300 = vsel %vm2092, %v2293, 0
    %2302 = vmatprep.subr.mxu0 0.0
    %2303 = vmatpush1.xpose.msra.mxu0 %v2298
    %2304 = vmatprep.subr.mxu0 0.0
    %2305 = vmatpush1.xpose.msra.mxu0 %v2300
    %2306 = vmatprep.subr.mxu0 0.0
    %2307 = vmatpush1.xpose.msra.mxu0 0.0
    %2308 = vmatprep.subr.mxu0 0.0
    %2309 = vmatpush1.xpose.msra.mxu0 0.0
    %2310 = vmatprep.subr.mxu0 0.0
    %2311 = vmatpush1.xpose.msra.mxu0 0.0
    %2312 = vmatprep.subr.mxu0 0.0
    %2313 = vmatpush1.xpose.msra.mxu0 0.0
    %2314 = vmatprep.subr.mxu0 0.0
    %2315 = vmatpush1.xpose.msra.mxu0 0.0
    %2316 = vmatprep.subr.mxu0 0.0
    %2317 = vmatpush1.xpose.msra.mxu0 0.0
    %2318 = vmatprep.subr.mxu0 0.0
    %2319 = vmatpush1.xpose.msra.mxu0 0.0
    %2320 = vmatprep.subr.mxu0 0.0
    %2321 = vmatpush1.xpose.msra.mxu0 0.0
    %2322 = vmatprep.subr.mxu0 0.0
    %2323 = vmatpush1.xpose.msra.mxu0 0.0
    %2324 = vmatprep.subr.mxu0 0.0
    %2325 = vmatpush1.xpose.msra.mxu0 0.0
    %2326 = vmatprep.subr.mxu0 0.0
    %2327 = vmatpush1.xpose.msra.mxu0 0.0
    %2328 = vmatprep.subr.mxu0 0.0
    %2329 = vmatpush1.xpose.msra.mxu0 0.0
    %2330 = vmatprep.subr.mxu0 0.0
    %2331 = vmatpush1.xpose.msra.mxu0 0.0
    %2332 = vmatprep.subr.mxu0 0.0
    %2333 = vmatpush1.xpose.msra.mxu0 0.0
    %2334 = vmatprep.subr.mxu0 0.0
    %2335 = vmatpush1.xpose.msra.mxu0 0.0
    %2336 = vmatprep.subr.mxu0 0.0
    %2337 = vmatpush1.xpose.msra.mxu0 0.0
    %2338 = vmatprep.subr.mxu0 0.0
    %2339 = vmatpush1.xpose.msra.mxu0 0.0
    %2340 = vmatprep.subr.mxu0 0.0
    %2341 = vmatpush1.xpose.msra.mxu0 0.0
    %2342 = vmatprep.subr.mxu0 0.0
    %2343 = vmatpush1.xpose.msra.mxu0 0.0
    %2344 = vmatprep.subr.mxu0 0.0
    %2345 = vmatpush1.xpose.msra.mxu0 0.0
    %2346 = vmatprep.subr.mxu0 0.0
    %2347 = vmatpush1.xpose.msra.mxu0 0.0
    %2348 = vmatprep.subr.mxu0 0.0
    %2349 = vmatpush1.xpose.msra.mxu0 0.0
    %2350 = vmatprep.subr.mxu0 0.0
    %2351 = vmatpush1.xpose.msra.mxu0 0.0
    %2352 = vmatprep.subr.mxu0 0.0
    %2353 = vmatpush1.xpose.msra.mxu0 0.0
    %2354 = vmatprep.subr.mxu0 0.0
    %2355 = vmatpush1.xpose.msra.mxu0 0.0
    %2356 = vmatprep.subr.mxu0 0.0
    %2357 = vmatpush1.xpose.msra.mxu0 0.0
    %2358 = vmatprep.subr.mxu0 0.0
    %2359 = vmatpush1.xpose.msra.mxu0 0.0
    %2360 = vmatprep.subr.mxu0 0.0
    %2361 = vmatpush1.xpose.msra.mxu0 0.0
    %2362 = vmatprep.subr.mxu0 0.0
    %2363 = vmatpush1.xpose.msra.mxu0 0.0
    %2364 = vmatprep.subr.mxu0 0.0
    %2365 = vmatpush1.xpose.msra.mxu0 0.0
    %2366 = vmatprep.mubr.f32.mxu0 0.0
    %2367 = vmatmul.mubr.f32.gmra.mrb[0].mxu0 %v2294
    %v2368 = vpop.f32.mrb[0].mxu0
    %v2369 = vadd.f32 %v2084, %v2368
    %v2370 = vpop.f32.mrb[0].mxu0
    %2371 = vmatprep.mubr.f32.mxu0 0.0
    %2372 = vmatmul.mubr.f32.gmra.mrb[0].mxu0 %v2296
    %v2373 = vpop.f32.mrb[0].mxu0
    %v2374 = vadd.f32 %v2085, %v2373
    %v2375 = vpop.f32.mrb[0].mxu0
    %2376 = vdwg.mxu0
    %v2377 = vsel %vm2176, %v2369, -inf
    %2378 = vmax.xlane.f32.xlu0 %v2377
    %v2379 = vpop.xlane.xlu0 %2378
    %v2380 = vsel %vm2176, %v2374, -inf
    %2381 = vmax.xlane.f32.xlu0 %v2380
    %v2382 = vpop.xlane.xlu0 %2381
    %v2383 = vsub.f32 %v2369, %v2379
    %v2384 = vsub.f32 %v2374, %v2382
    %v2385 = vmul.f32 %v2383, 1.442695
    %v2386 = vpow.pop %v2385
    %v2387 = vmul.f32 %v2384, 1.442695
    %v2388 = vpow.pop %v2387
    %v2389 = vsel %vm2176, %v2386, 0.0
    %2390 = vadd.xlane.f32.xlu0 %v2389
    %v2391 = vpop.xlane.xlu0 %2390
    %v2392 = vsel %vm2176, %v2388, 0.0
    %2393 = vadd.xlane.f32.xlu0 %v2392
    %v2394 = vpop.xlane.xlu0 %2393
    %v2395 = vrcp.pop %v2391
    %v2396 = vrcp.pop %v2394
    %v2397 = vmul.f32 %v2386, %v2395
    %v2398 = vmul.f32 %v2388, %v2396
    %2399 = vrot.lane.b32.xlu0 %v2033, 56
    %v2400 = vpop.permute.xlu0 %2399
    %2401 = vrot.lane.b32.xlu0 %v2038, 56
    %v2402 = vpop.permute.xlu0 %2401
    %v2406 = vsel %vm2176, %v2397, 0
    %v2409 = vsel %vm2176, %v2398, 0
    %2411 = vmatprep.subr.mxu0 0.0
    %2412 = vmatpush1.msra.mxu0 %v2400
    %2413 = vmatprep.subr.mxu0 0.0
    %2414 = vmatpush1.msra.mxu0 %v2402
    %2415 = vmatprep.subr.mxu0 0.0
    %2416 = vmatpush1.msra.mxu0 0.0
    %2417 = vmatprep.subr.mxu0 0.0
    %2418 = vmatpush1.msra.mxu0 0.0
    %2419 = vmatprep.subr.mxu0 0.0
    %2420 = vmatpush1.msra.mxu0 0.0
    %2421 = vmatprep.subr.mxu0 0.0
    %2422 = vmatpush1.msra.mxu0 0.0
    %2423 = vmatprep.subr.mxu0 0.0
    %2424 = vmatpush1.msra.mxu0 0.0
    %2425 = vmatprep.subr.mxu0 0.0
    %2426 = vmatpush1.msra.mxu0 0.0
    %2427 = vmatprep.subr.mxu0 0.0
    %2428 = vmatpush1.msra.mxu0 0.0
    %2429 = vmatprep.subr.mxu0 0.0
    %2430 = vmatpush1.msra.mxu0 0.0
    %2431 = vmatprep.subr.mxu0 0.0
    %2432 = vmatpush1.msra.mxu0 0.0
    %2433 = vmatprep.subr.mxu0 0.0
    %2434 = vmatpush1.msra.mxu0 0.0
    %2435 = vmatprep.subr.mxu0 0.0
    %2436 = vmatpush1.msra.mxu0 0.0
    %2437 = vmatprep.subr.mxu0 0.0
    %2438 = vmatpush1.msra.mxu0 0.0
    %2439 = vmatprep.subr.mxu0 0.0
    %2440 = vmatpush1.msra.mxu0 0.0
    %2441 = vmatprep.subr.mxu0 0.0
    %2442 = vmatpush1.msra.mxu0 0.0
    %2443 = vmatprep.subr.mxu0 0.0
    %2444 = vmatpush1.msra.mxu0 0.0
    %2445 = vmatprep.subr.mxu0 0.0
    %2446 = vmatpush1.msra.mxu0 0.0
    %2447 = vmatprep.subr.mxu0 0.0
    %2448 = vmatpush1.msra.mxu0 0.0
    %2449 = vmatprep.subr.mxu0 0.0
    %2450 = vmatpush1.msra.mxu0 0.0
    %2451 = vmatprep.subr.mxu0 0.0
    %2452 = vmatpush1.msra.mxu0 0.0
    %2453 = vmatprep.subr.mxu0 0.0
    %2454 = vmatpush1.msra.mxu0 0.0
    %2455 = vmatprep.subr.mxu0 0.0
    %2456 = vmatpush1.msra.mxu0 0.0
    %2457 = vmatprep.subr.mxu0 0.0
    %2458 = vmatpush1.msra.mxu0 0.0
    %2459 = vmatprep.subr.mxu0 0.0
    %2460 = vmatpush1.msra.mxu0 0.0
    %2461 = vmatprep.subr.mxu0 0.0
    %2462 = vmatpush1.msra.mxu0 0.0
    %2463 = vmatprep.subr.mxu0 0.0
    %2464 = vmatpush1.msra.mxu0 0.0
    %2465 = vmatprep.subr.mxu0 0.0
    %2466 = vmatpush1.msra.mxu0 0.0
    %2467 = vmatprep.subr.mxu0 0.0
    %2468 = vmatpush1.msra.mxu0 0.0
    %2469 = vmatprep.subr.mxu0 0.0
    %2470 = vmatpush1.msra.mxu0 0.0
    %2471 = vmatprep.subr.mxu0 0.0
    %2472 = vmatpush1.msra.mxu0 0.0
    %2473 = vmatprep.subr.mxu0 0.0
    %2474 = vmatpush1.msra.mxu0 0.0
    %2475 = vmatprep.mubr.f32.mxu0 0.0
    %2476 = vmatmul.mubr.f32.gmra.mrb[0].mxu0 %v2406
    %v2477 = vpop.f32.mrb[0].mxu0
    %v2478 = vadd.f32 0.0, %v2477
    %v2479 = vpop.f32.mrb[0].mxu0
    %2480 = vmatprep.mubr.f32.mxu0 0.0
    %2481 = vmatmul.mubr.f32.gmra.mrb[0].mxu0 %v2409
    %v2482 = vpop.f32.mrb[0].mxu0
    %v2483 = vadd.f32 0.0, %v2482
    %v2484 = vpop.f32.mrb[0].mxu0
    %2485 = vdwg.mxu0
    %2486 = vrot.lane.b32.xlu0 %v2033, 112
    %v2487 = vpop.permute.xlu0 %2486
    %2488 = vrot.lane.b32.xlu0 %v2038, 112
    %v2489 = vpop.permute.xlu0 %2488
    %2490 = vrot.lane.b32.xlu0 %v2033, 80
    %v2491 = vpop.permute.xlu0 %2490
    %2492 = vrot.lane.b32.xlu0 %v2038, 80
    %v2493 = vpop.permute.xlu0 %2492
    %v2494 = vsel %vm2092, %v2487, 0
    %v2496 = vsel %vm2092, %v2489, 0
    %v2498 = vsel %vm2092, %v2491, 0
    %v2500 = vsel %vm2092, %v2493, 0
    %2502 = vmatprep.subr.mxu0 0.0
    %2503 = vmatpush1.xpose.msra.mxu0 %v2498
    %2504 = vmatprep.subr.mxu0 0.0
    %2505 = vmatpush1.xpose.msra.mxu0 %v2500
    %2506 = vmatprep.subr.mxu0 0.0
    %2507 = vmatpush1.xpose.msra.mxu0 0.0
    %2508 = vmatprep.subr.mxu0 0.0
    %2509 = vmatpush1.xpose.msra.mxu0 0.0
    %2510 = vmatprep.subr.mxu0 0.0
    %2511 = vmatpush1.xpose.msra.mxu0 0.0
    %2512 = vmatprep.subr.mxu0 0.0
    %2513 = vmatpush1.xpose.msra.mxu0 0.0
    %2514 = vmatprep.subr.mxu0 0.0
    %2515 = vmatpush1.xpose.msra.mxu0 0.0
    %2516 = vmatprep.subr.mxu0 0.0
    %2517 = vmatpush1.xpose.msra.mxu0 0.0
    %2518 = vmatprep.subr.mxu0 0.0
    %2519 = vmatpush1.xpose.msra.mxu0 0.0
    %2520 = vmatprep.subr.mxu0 0.0
    %2521 = vmatpush1.xpose.msra.mxu0 0.0
    %2522 = vmatprep.subr.mxu0 0.0
    %2523 = vmatpush1.xpose.msra.mxu0 0.0
    %2524 = vmatprep.subr.mxu0 0.0
    %2525 = vmatpush1.xpose.msra.mxu0 0.0
    %2526 = vmatprep.subr.mxu0 0.0
    %2527 = vmatpush1.xpose.msra.mxu0 0.0
    %2528 = vmatprep.subr.mxu0 0.0
    %2529 = vmatpush1.xpose.msra.mxu0 0.0
    %2530 = vmatprep.subr.mxu0 0.0
    %2531 = vmatpush1.xpose.msra.mxu0 0.0
    %2532 = vmatprep.subr.mxu0 0.0
    %2533 = vmatpush1.xpose.msra.mxu0 0.0
    %2534 = vmatprep.subr.mxu0 0.0
    %2535 = vmatpush1.xpose.msra.mxu0 0.0
    %2536 = vmatprep.subr.mxu0 0.0
    %2537 = vmatpush1.xpose.msra.mxu0 0.0
    %2538 = vmatprep.subr.mxu0 0.0
    %2539 = vmatpush1.xpose.msra.mxu0 0.0
    %2540 = vmatprep.subr.mxu0 0.0
    %2541 = vmatpush1.xpose.msra.mxu0 0.0
    %2542 = vmatprep.subr.mxu0 0.0
    %2543 = vmatpush1.xpose.msra.mxu0 0.0
    %2544 = vmatprep.subr.mxu0 0.0
    %2545 = vmatpush1.xpose.msra.mxu0 0.0
    %2546 = vmatprep.subr.mxu0 0.0
    %2547 = vmatpush1.xpose.msra.mxu0 0.0
    %2548 = vmatprep.subr.mxu0 0.0
    %2549 = vmatpush1.xpose.msra.mxu0 0.0
    %2550 = vmatprep.subr.mxu0 0.0
    %2551 = vmatpush1.xpose.msra.mxu0 0.0
    %2552 = vmatprep.subr.mxu0 0.0
    %2553 = vmatpush1.xpose.msra.mxu0 0.0
    %2554 = vmatprep.subr.mxu0 0.0
    %2555 = vmatpush1.xpose.msra.mxu0 0.0
    %2556 = vmatprep.subr.mxu0 0.0
    %2557 = vmatpush1.xpose.msra.mxu0 0.0
    %2558 = vmatprep.subr.mxu0 0.0
    %2559 = vmatpush1.xpose.msra.mxu0 0.0
    %2560 = vmatprep.subr.mxu0 0.0
    %2561 = vmatpush1.xpose.msra.mxu0 0.0
    %2562 = vmatprep.subr.mxu0 0.0
    %2563 = vmatpush1.xpose.msra.mxu0 0.0
    %2564 = vmatprep.subr.mxu0 0.0
    %2565 = vmatpush1.xpose.msra.mxu0 0.0
    %2566 = vmatprep.mubr.f32.mxu0 0.0
    %2567 = vmatmul.mubr.f32.gmra.mrb[0].mxu0 %v2494
    %v2568 = vpop.f32.mrb[0].mxu0
    %v2569 = vadd.f32 %v2084, %v2568
    %v2570 = vpop.f32.mrb[0].mxu0
    %2571 = vmatprep.mubr.f32.mxu0 0.0
    %2572 = vmatmul.mubr.f32.gmra.mrb[0].mxu0 %v2496
    %v2573 = vpop.f32.mrb[0].mxu0
    %v2574 = vadd.f32 %v2085, %v2573
    %v2575 = vpop.f32.mrb[0].mxu0
    %2576 = vdwg.mxu0
    %v2577 = vsel %vm2176, %v2569, -inf
    %2578 = vmax.xlane.f32.xlu0 %v2577
    %v2579 = vpop.xlane.xlu0 %2578
    %v2580 = vsel %vm2176, %v2574, -inf
    %2581 = vmax.xlane.f32.xlu0 %v2580
    %v2582 = vpop.xlane.xlu0 %2581
    %v2583 = vsub.f32 %v2569, %v2579
    %v2584 = vsub.f32 %v2574, %v2582
    %v2585 = vmul.f32 %v2583, 1.442695
    %v2586 = vpow.pop %v2585
    %v2587 = vmul.f32 %v2584, 1.442695
    %v2588 = vpow.pop %v2587
    %v2589 = vsel %vm2176, %v2586, 0.0
    %2590 = vadd.xlane.f32.xlu0 %v2589
    %v2591 = vpop.xlane.xlu0 %2590
    %v2592 = vsel %vm2176, %v2588, 0.0
    %2593 = vadd.xlane.f32.xlu0 %v2592
    %v2594 = vpop.xlane.xlu0 %2593
    %v2595 = vrcp.pop %v2591
    %v2596 = vrcp.pop %v2594
    %v2597 = vmul.f32 %v2586, %v2595
    %v2598 = vmul.f32 %v2588, %v2596
    %2599 = vrot.lane.b32.xlu0 %v2033, 48
    %v2600 = vpop.permute.xlu0 %2599
    %2601 = vrot.lane.b32.xlu0 %v2038, 48
    %v2602 = vpop.permute.xlu0 %2601
    %v2606 = vsel %vm2176, %v2597, 0
    %v2609 = vsel %vm2176, %v2598, 0
    %2611 = vmatprep.subr.mxu0 0.0
    %2612 = vmatpush1.msra.mxu0 %v2600
    %2613 = vmatprep.subr.mxu0 0.0
    %2614 = vmatpush1.msra.mxu0 %v2602
    %2615 = vmatprep.subr.mxu0 0.0
    %2616 = vmatpush1.msra.mxu0 0.0
    %2617 = vmatprep.subr.mxu0 0.0
    %2618 = vmatpush1.msra.mxu0 0.0
    %2619 = vmatprep.subr.mxu0 0.0
    %2620 = vmatpush1.msra.mxu0 0.0
    %2621 = vmatprep.subr.mxu0 0.0
    %2622 = vmatpush1.msra.mxu0 0.0
    %2623 = vmatprep.subr.mxu0 0.0
    %2624 = vmatpush1.msra.mxu0 0.0
    %2625 = vmatprep.subr.mxu0 0.0
    %2626 = vmatpush1.msra.mxu0 0.0
    %2627 = vmatprep.subr.mxu0 0.0
    %2628 = vmatpush1.msra.mxu0 0.0
    %2629 = vmatprep.subr.mxu0 0.0
    %2630 = vmatpush1.msra.mxu0 0.0
    %2631 = vmatprep.subr.mxu0 0.0
    %2632 = vmatpush1.msra.mxu0 0.0
    %2633 = vmatprep.subr.mxu0 0.0
    %2634 = vmatpush1.msra.mxu0 0.0
    %2635 = vmatprep.subr.mxu0 0.0
    %2636 = vmatpush1.msra.mxu0 0.0
    %2637 = vmatprep.subr.mxu0 0.0
    %2638 = vmatpush1.msra.mxu0 0.0
    %2639 = vmatprep.subr.mxu0 0.0
    %2640 = vmatpush1.msra.mxu0 0.0
    %2641 = vmatprep.subr.mxu0 0.0
    %2642 = vmatpush1.msra.mxu0 0.0
    %2643 = vmatprep.subr.mxu0 0.0
    %2644 = vmatpush1.msra.mxu0 0.0
    %2645 = vmatprep.subr.mxu0 0.0
    %2646 = vmatpush1.msra.mxu0 0.0
    %2647 = vmatprep.subr.mxu0 0.0
    %2648 = vmatpush1.msra.mxu0 0.0
    %2649 = vmatprep.subr.mxu0 0.0
    %2650 = vmatpush1.msra.mxu0 0.0
    %2651 = vmatprep.subr.mxu0 0.0
    %2652 = vmatpush1.msra.mxu0 0.0
    %2653 = vmatprep.subr.mxu0 0.0
    %2654 = vmatpush1.msra.mxu0 0.0
    %2655 = vmatprep.subr.mxu0 0.0
    %2656 = vmatpush1.msra.mxu0 0.0
    %2657 = vmatprep.subr.mxu0 0.0
    %2658 = vmatpush1.msra.mxu0 0.0
    %2659 = vmatprep.subr.mxu0 0.0
    %2660 = vmatpush1.msra.mxu0 0.0
    %2661 = vmatprep.subr.mxu0 0.0
    %2662 = vmatpush1.msra.mxu0 0.0
    %2663 = vmatprep.subr.mxu0 0.0
    %2664 = vmatpush1.msra.mxu0 0.0
    %2665 = vmatprep.subr.mxu0 0.0
    %2666 = vmatpush1.msra.mxu0 0.0
    %2667 = vmatprep.subr.mxu0 0.0
    %2668 = vmatpush1.msra.mxu0 0.0
    %2669 = vmatprep.subr.mxu0 0.0
    %2670 = vmatpush1.msra.mxu0 0.0
    %2671 = vmatprep.subr.mxu0 0.0
    %2672 = vmatpush1.msra.mxu0 0.0
    %2673 = vmatprep.subr.mxu0 0.0
    %2674 = vmatpush1.msra.mxu0 0.0
    %2675 = vmatprep.mubr.f32.mxu0 0.0
    %2676 = vmatmul.mubr.f32.gmra.mrb[0].mxu0 %v2606
    %v2677 = vpop.f32.mrb[0].mxu0
    %v2678 = vadd.f32 0.0, %v2677
    %v2679 = vpop.f32.mrb[0].mxu0
    %2680 = vmatprep.mubr.f32.mxu0 0.0
    %2681 = vmatmul.mubr.f32.gmra.mrb[0].mxu0 %v2609
    %v2682 = vpop.f32.mrb[0].mxu0
    %v2683 = vadd.f32 0.0, %v2682
    %v2684 = vpop.f32.mrb[0].mxu0
    %2685 = vdwg.mxu0
    %2686 = vrot.lane.b32.xlu0 %v2033, 104
    %v2687 = vpop.permute.xlu0 %2686
    %2688 = vrot.lane.b32.xlu0 %v2038, 104
    %v2689 = vpop.permute.xlu0 %2688
    %2690 = vrot.lane.b32.xlu0 %v2033, 72
    %v2691 = vpop.permute.xlu0 %2690
    %2692 = vrot.lane.b32.xlu0 %v2038, 72
    %v2693 = vpop.permute.xlu0 %2692
    %v2694 = vsel %vm2092, %v2687, 0
    %v2696 = vsel %vm2092, %v2689, 0
    %v2698 = vsel %vm2092, %v2691, 0
    %v2700 = vsel %vm2092, %v2693, 0
    %2702 = vmatprep.subr.mxu0 0.0
    %2703 = vmatpush1.xpose.msra.mxu0 %v2698
    %2704 = vmatprep.subr.mxu0 0.0
    %2705 = vmatpush1.xpose.msra.mxu0 %v2700
    %2706 = vmatprep.subr.mxu0 0.0
    %2707 = vmatpush1.xpose.msra.mxu0 0.0
    %2708 = vmatprep.subr.mxu0 0.0
    %2709 = vmatpush1.xpose.msra.mxu0 0.0
    %2710 = vmatprep.subr.mxu0 0.0
    %2711 = vmatpush1.xpose.msra.mxu0 0.0
    %2712 = vmatprep.subr.mxu0 0.0
    %2713 = vmatpush1.xpose.msra.mxu0 0.0
    %2714 = vmatprep.subr.mxu0 0.0
    %2715 = vmatpush1.xpose.msra.mxu0 0.0
    %2716 = vmatprep.subr.mxu0 0.0
    %2717 = vmatpush1.xpose.msra.mxu0 0.0
    %2718 = vmatprep.subr.mxu0 0.0
    %2719 = vmatpush1.xpose.msra.mxu0 0.0
    %2720 = vmatprep.subr.mxu0 0.0
    %2721 = vmatpush1.xpose.msra.mxu0 0.0
    %2722 = vmatprep.subr.mxu0 0.0
    %2723 = vmatpush1.xpose.msra.mxu0 0.0
    %2724 = vmatprep.subr.mxu0 0.0
    %2725 = vmatpush1.xpose.msra.mxu0 0.0
    %2726 = vmatprep.subr.mxu0 0.0
    %2727 = vmatpush1.xpose.msra.mxu0 0.0
    %2728 = vmatprep.subr.mxu0 0.0
    %2729 = vmatpush1.xpose.msra.mxu0 0.0
    %2730 = vmatprep.subr.mxu0 0.0
    %2731 = vmatpush1.xpose.msra.mxu0 0.0
    %2732 = vmatprep.subr.mxu0 0.0
    %2733 = vmatpush1.xpose.msra.mxu0 0.0
    %2734 = vmatprep.subr.mxu0 0.0
    %2735 = vmatpush1.xpose.msra.mxu0 0.0
    %2736 = vmatprep.subr.mxu0 0.0
    %2737 = vmatpush1.xpose.msra.mxu0 0.0
    %2738 = vmatprep.subr.mxu0 0.0
    %2739 = vmatpush1.xpose.msra.mxu0 0.0
    %2740 = vmatprep.subr.mxu0 0.0
    %2741 = vmatpush1.xpose.msra.mxu0 0.0
    %2742 = vmatprep.subr.mxu0 0.0
    %2743 = vmatpush1.xpose.msra.mxu0 0.0
    %2744 = vmatprep.subr.mxu0 0.0
    %2745 = vmatpush1.xpose.msra.mxu0 0.0
    %2746 = vmatprep.subr.mxu0 0.0
    %2747 = vmatpush1.xpose.msra.mxu0 0.0
    %2748 = vmatprep.subr.mxu0 0.0
    %2749 = vmatpush1.xpose.msra.mxu0 0.0
    %2750 = vmatprep.subr.mxu0 0.0
    %2751 = vmatpush1.xpose.msra.mxu0 0.0
    %2752 = vmatprep.subr.mxu0 0.0
    %2753 = vmatpush1.xpose.msra.mxu0 0.0
    %2754 = vmatprep.subr.mxu0 0.0
    %2755 = vmatpush1.xpose.msra.mxu0 0.0
    %2756 = vmatprep.subr.mxu0 0.0
    %2757 = vmatpush1.xpose.msra.mxu0 0.0
    %2758 = vmatprep.subr.mxu0 0.0
    %2759 = vmatpush1.xpose.msra.mxu0 0.0
    %2760 = vmatprep.subr.mxu0 0.0
    %2761 = vmatpush1.xpose.msra.mxu0 0.0
    %2762 = vmatprep.subr.mxu0 0.0
    %2763 = vmatpush1.xpose.msra.mxu0 0.0
    %2764 = vmatprep.subr.mxu0 0.0
    %2765 = vmatpush1.xpose.msra.mxu0 0.0
    %2766 = vmatprep.mubr.f32.mxu0 0.0
    %2767 = vmatmul.mubr.f32.gmra.mrb[0].mxu0 %v2694
    %v2768 = vpop.f32.mrb[0].mxu0
    %v2769 = vadd.f32 %v2084, %v2768
    %v2770 = vpop.f32.mrb[0].mxu0
    %2771 = vmatprep.mubr.f32.mxu0 0.0
    %2772 = vmatmul.mubr.f32.gmra.mrb[0].mxu0 %v2696
    %v2773 = vpop.f32.mrb[0].mxu0
    %v2774 = vadd.f32 %v2085, %v2773
    %v2775 = vpop.f32.mrb[0].mxu0
    %2776 = vdwg.mxu0
    %v2777 = vsel %vm2176, %v2769, -inf
    %2778 = vmax.xlane.f32.xlu0 %v2777
    %v2779 = vpop.xlane.xlu0 %2778
    %v2780 = vsel %vm2176, %v2774, -inf
    %2781 = vmax.xlane.f32.xlu0 %v2780
    %v2782 = vpop.xlane.xlu0 %2781
    %v2783 = vsub.f32 %v2769, %v2779
    %v2784 = vsub.f32 %v2774, %v2782
    %v2785 = vmul.f32 %v2783, 1.442695
    %v2786 = vpow.pop %v2785
    %v2787 = vmul.f32 %v2784, 1.442695
    %v2788 = vpow.pop %v2787
    %v2789 = vsel %vm2176, %v2786, 0.0
    %2790 = vadd.xlane.f32.xlu0 %v2789
    %v2791 = vpop.xlane.xlu0 %2790
    %v2792 = vsel %vm2176, %v2788, 0.0
    %2793 = vadd.xlane.f32.xlu0 %v2792
    %v2794 = vpop.xlane.xlu0 %2793
    %v2795 = vrcp.pop %v2791
    %v2796 = vrcp.pop %v2794
    %v2797 = vmul.f32 %v2786, %v2795
    %v2798 = vmul.f32 %v2788, %v2796
    %2799 = vrot.lane.b32.xlu0 %v2033, 40
    %v2800 = vpop.permute.xlu0 %2799
    %2801 = vrot.lane.b32.xlu0 %v2038, 40
    %v2802 = vpop.permute.xlu0 %2801
    %v2806 = vsel %vm2176, %v2797, 0
    %v2809 = vsel %vm2176, %v2798, 0
    %2811 = vmatprep.subr.mxu0 0.0
    %2812 = vmatpush1.msra.mxu0 %v2800
    %2813 = vmatprep.subr.mxu0 0.0
    %2814 = vmatpush1.msra.mxu0 %v2802
    %2815 = vmatprep.subr.mxu0 0.0
    %2816 = vmatpush1.msra.mxu0 0.0
    %2817 = vmatprep.subr.mxu0 0.0
    %2818 = vmatpush1.msra.mxu0 0.0
    %2819 = vmatprep.subr.mxu0 0.0
    %2820 = vmatpush1.msra.mxu0 0.0
    %2821 = vmatprep.subr.mxu0 0.0
    %2822 = vmatpush1.msra.mxu0 0.0
    %2823 = vmatprep.subr.mxu0 0.0
    %2824 = vmatpush1.msra.mxu0 0.0
    %2825 = vmatprep.subr.mxu0 0.0
    %2826 = vmatpush1.msra.mxu0 0.0
    %2827 = vmatprep.subr.mxu0 0.0
    %2828 = vmatpush1.msra.mxu0 0.0
    %2829 = vmatprep.subr.mxu0 0.0
    %2830 = vmatpush1.msra.mxu0 0.0
    %2831 = vmatprep.subr.mxu0 0.0
    %2832 = vmatpush1.msra.mxu0 0.0
    %2833 = vmatprep.subr.mxu0 0.0
    %2834 = vmatpush1.msra.mxu0 0.0
    %2835 = vmatprep.subr.mxu0 0.0
    %2836 = vmatpush1.msra.mxu0 0.0
    %2837 = vmatprep.subr.mxu0 0.0
    %2838 = vmatpush1.msra.mxu0 0.0
    %2839 = vmatprep.subr.mxu0 0.0
    %2840 = vmatpush1.msra.mxu0 0.0
    %2841 = vmatprep.subr.mxu0 0.0
    %2842 = vmatpush1.msra.mxu0 0.0
    %2843 = vmatprep.subr.mxu0 0.0
    %2844 = vmatpush1.msra.mxu0 0.0
    %2845 = vmatprep.subr.mxu0 0.0
    %2846 = vmatpush1.msra.mxu0 0.0
    %2847 = vmatprep.subr.mxu0 0.0
    %2848 = vmatpush1.msra.mxu0 0.0
    %2849 = vmatprep.subr.mxu0 0.0
    %2850 = vmatpush1.msra.mxu0 0.0
    %2851 = vmatprep.subr.mxu0 0.0
    %2852 = vmatpush1.msra.mxu0 0.0
    %2853 = vmatprep.subr.mxu0 0.0
    %2854 = vmatpush1.msra.mxu0 0.0
    %2855 = vmatprep.subr.mxu0 0.0
    %2856 = vmatpush1.msra.mxu0 0.0
    %2857 = vmatprep.subr.mxu0 0.0
    %2858 = vmatpush1.msra.mxu0 0.0
    %2859 = vmatprep.subr.mxu0 0.0
    %2860 = vmatpush1.msra.mxu0 0.0
    %2861 = vmatprep.subr.mxu0 0.0
    %2862 = vmatpush1.msra.mxu0 0.0
    %2863 = vmatprep.subr.mxu0 0.0
    %2864 = vmatpush1.msra.mxu0 0.0
    %2865 = vmatprep.subr.mxu0 0.0
    %2866 = vmatpush1.msra.mxu0 0.0
    %2867 = vmatprep.subr.mxu0 0.0
    %2868 = vmatpush1.msra.mxu0 0.0
    %2869 = vmatprep.subr.mxu0 0.0
    %2870 = vmatpush1.msra.mxu0 0.0
    %2871 = vmatprep.subr.mxu0 0.0
    %2872 = vmatpush1.msra.mxu0 0.0
    %2873 = vmatprep.subr.mxu0 0.0
    %2874 = vmatpush1.msra.mxu0 0.0
    %2875 = vmatprep.mubr.f32.mxu0 0.0
    %2876 = vmatmul.mubr.f32.gmra.mrb[0].mxu0 %v2806
    %v2877 = vpop.f32.mrb[0].mxu0
    %v2878 = vadd.f32 0.0, %v2877
    %v2879 = vpop.f32.mrb[0].mxu0
    %2880 = vmatprep.mubr.f32.mxu0 0.0
    %2881 = vmatmul.mubr.f32.gmra.mrb[0].mxu0 %v2809
    %v2882 = vpop.f32.mrb[0].mxu0
    %v2883 = vadd.f32 0.0, %v2882
    %v2884 = vpop.f32.mrb[0].mxu0
    %2885 = vdwg.mxu0
    %2888 = vrot.lane.b32.xlu0 %v2478, 8
    %v2889 = vpop.permute.xlu0 %2888
    %2890 = vrot.lane.b32.xlu0 %v2483, 8
    %v2891 = vpop.permute.xlu0 %2890
    %2896 = vrot.lane.b32.xlu0 %v2678, 16
    %v2897 = vpop.permute.xlu0 %2896
    %2898 = vrot.lane.b32.xlu0 %v2683, 16
    %v2899 = vpop.permute.xlu0 %2898
    %2904 = vrot.lane.b32.xlu0 %v2878, 24
    %v2905 = vpop.permute.xlu0 %2904
    %2906 = vrot.lane.b32.xlu0 %v2883, 24
    %v2907 = vpop.permute.xlu0 %2906
    %v2910 = vsel %vm2092, %v2278, %v2889
    %v2911 = vsel %vm2092, %v2283, %v2891
    %v2912 = vsel %vm2176, %v2910, %v2897
    %v2913 = vsel %vm2176, %v2911, %v2899
    %vm2914 = vcmask 195584
    %v2915 = vsel %vm2914, %v2912, %v2905
    %v2916 = vsel %vm2914, %v2913, %v2907
    %v2917 = vld [vmem:[%s8] sm:$0xff]
    %v2918 = vld [vmem:[%s8 + $0x8] sm:$0xff]
    %v2919 = vld [vmem:[%s8 + $0x10] sm:$0xff]
    %v2920 = vld [vmem:[%s8 + $0x18] sm:$0xff]
    %v2921 = vld [vmem:[#allocation13] sm:$0x1]
    %v2923 = vlaneseq
    %v2924 = vshrl.u32 %v2923, 7
    %v2925 = vsub.s32 0, %v2924
    %v2926 = vrot.slane %v2921, %v2925
    %v2929 = vsel %vm198, %v2915, 0
    %v2932 = vsel %vm198, %v2916, 0
    %2934 = vmatprep.subr.mxu0 0.0
    %2935 = vmatpush1.msra.mxu0 %v2917
    %2936 = vmatprep.subr.mxu0 0.0
    %2937 = vmatpush1.msra.mxu0 %v2918
    %2938 = vmatprep.subr.mxu0 0.0
    %2939 = vmatpush1.msra.mxu0 %v2919
    %2940 = vmatprep.subr.mxu0 0.0
    %2941 = vmatpush1.msra.mxu0 %v2920
    %2942 = vmatprep.subr.mxu0 0.0
    %2943 = vmatpush1.msra.mxu0 0.0
    %2944 = vmatprep.subr.mxu0 0.0
    %2945 = vmatpush1.msra.mxu0 0.0
    %2946 = vmatprep.subr.mxu0 0.0
    %2947 = vmatpush1.msra.mxu0 0.0
    %2948 = vmatprep.subr.mxu0 0.0
    %2949 = vmatpush1.msra.mxu0 0.0
    %2950 = vmatprep.subr.mxu0 0.0
    %2951 = vmatpush1.msra.mxu0 0.0
    %2952 = vmatprep.subr.mxu0 0.0
    %2953 = vmatpush1.msra.mxu0 0.0
    %2954 = vmatprep.subr.mxu0 0.0
    %2955 = vmatpush1.msra.mxu0 0.0
    %2956 = vmatprep.subr.mxu0 0.0
    %2957 = vmatpush1.msra.mxu0 0.0
    %2958 = vmatprep.subr.mxu0 0.0
    %2959 = vmatpush1.msra.mxu0 0.0
    %2960 = vmatprep.subr.mxu0 0.0
    %2961 = vmatpush1.msra.mxu0 0.0
    %2962 = vmatprep.subr.mxu0 0.0
    %2963 = vmatpush1.msra.mxu0 0.0
    %2964 = vmatprep.subr.mxu0 0.0
    %2965 = vmatpush1.msra.mxu0 0.0
    %2966 = vmatprep.subr.mxu0 0.0
    %2967 = vmatpush1.msra.mxu0 0.0
    %2968 = vmatprep.subr.mxu0 0.0
    %2969 = vmatpush1.msra.mxu0 0.0
    %2970 = vmatprep.subr.mxu0 0.0
    %2971 = vmatpush1.msra.mxu0 0.0
    %2972 = vmatprep.subr.mxu0 0.0
    %2973 = vmatpush1.msra.mxu0 0.0
    %2974 = vmatprep.subr.mxu0 0.0
    %2975 = vmatpush1.msra.mxu0 0.0
    %2976 = vmatprep.subr.mxu0 0.0
    %2977 = vmatpush1.msra.mxu0 0.0
    %2978 = vmatprep.subr.mxu0 0.0
    %2979 = vmatpush1.msra.mxu0 0.0
    %2980 = vmatprep.subr.mxu0 0.0
    %2981 = vmatpush1.msra.mxu0 0.0
    %2982 = vmatprep.subr.mxu0 0.0
    %2983 = vmatpush1.msra.mxu0 0.0
    %2984 = vmatprep.subr.mxu0 0.0
    %2985 = vmatpush1.msra.mxu0 0.0
    %2986 = vmatprep.subr.mxu0 0.0
    %2987 = vmatpush1.msra.mxu0 0.0
    %2988 = vmatprep.subr.mxu0 0.0
    %2989 = vmatpush1.msra.mxu0 0.0
    %2990 = vmatprep.subr.mxu0 0.0
    %2991 = vmatpush1.msra.mxu0 0.0
    %2992 = vmatprep.subr.mxu0 0.0
    %2993 = vmatpush1.msra.mxu0 0.0
    %2994 = vmatprep.subr.mxu0 0.0
    %2995 = vmatpush1.msra.mxu0 0.0
    %2996 = vmatprep.subr.mxu0 0.0
    %2997 = vmatpush1.msra.mxu0 0.0
    %2998 = vmatprep.mubr.f32.mxu0 0.0
    %2999 = vmatmul.mubr.f32.gmra.mrb[0].mxu0 %v2929
    %v3000 = vpop.f32.mrb[0].mxu0
    %v3001 = vadd.f32 %v2926, %v3000
    %v3002 = vpop.f32.mrb[0].mxu0
    %3003 = vmatprep.mubr.f32.mxu0 0.0
    %3004 = vmatmul.mubr.f32.gmra.mrb[0].mxu0 %v2932
    %v3005 = vpop.f32.mrb[0].mxu0
    %v3006 = vadd.f32 %v2926, %v3005
    %v3007 = vpop.f32.mrb[0].mxu0
    %3008 = vdwg.mxu0
    %v3009 = vmax.f32 %v3001, 0.0
    %v3010 = vmax.f32 %v3006, 0.0
    %v3011 = vld [vmem:[#allocation14] sm:$0xff]
    %v3012 = vld [vmem:[#allocation14 + $0x8] sm:$0xff]
    %v3013 = vld [vmem:[#allocation14 + $0x10] sm:$0xff]
    %v3014 = vld [vmem:[#allocation14 + $0x18] sm:$0xff]
    %v3015 = vld [vmem:[#allocation14 + $0x20] sm:$0xff]
    %v3016 = vld [vmem:[#allocation14 + $0x28] sm:$0xff]
    %v3017 = vld [vmem:[#allocation14 + $0x30] sm:$0xff]
    %v3018 = vld [vmem:[#allocation14 + $0x38] sm:$0xff]
    %v3019 = vld [vmem:[%s12] sm:$0x3]
    %v3021 = vlaneseq
    %v3022 = vshrl.u32 %v3021, 7
    %v3023 = vsub.s32 0, %v3022
    %v3024 = vrot.slane %v3019, %v3023
    %v3025 = vlaneseq
    %v3026 = vshrl.u32 %v3025, 7
    %v3027 = vsub.s32 1, %v3026
    %v3028 = vrot.slane %v3019, %v3027
    %v3032 = vsel %vm198, %v3009, 0
    %v3035 = vsel %vm198, %v3010, 0
    %3037 = vmatprep.subr.mxu0 %v3012
    %3038 = vmatpush1.msra.mxu0 %v3011
    %3039 = vmatprep.subr.mxu0 %v3014
    %3040 = vmatpush1.msra.mxu0 %v3013
    %3041 = vmatprep.subr.mxu0 %v3016
    %3042 = vmatpush1.msra.mxu0 %v3015
    %3043 = vmatprep.subr.mxu0 %v3018
    %3044 = vmatpush1.msra.mxu0 %v3017
    %3045 = vmatprep.subr.mxu0 0.0
    %3046 = vmatpush1.msra.mxu0 0.0
    %3047 = vmatprep.subr.mxu0 0.0
    %3048 = vmatpush1.msra.mxu0 0.0
    %3049 = vmatprep.subr.mxu0 0.0
    %3050 = vmatpush1.msra.mxu0 0.0
    %3051 = vmatprep.subr.mxu0 0.0
    %3052 = vmatpush1.msra.mxu0 0.0
    %3053 = vmatprep.subr.mxu0 0.0
    %3054 = vmatpush1.msra.mxu0 0.0
    %3055 = vmatprep.subr.mxu0 0.0
    %3056 = vmatpush1.msra.mxu0 0.0
    %3057 = vmatprep.subr.mxu0 0.0
    %3058 = vmatpush1.msra.mxu0 0.0
    %3059 = vmatprep.subr.mxu0 0.0
    %3060 = vmatpush1.msra.mxu0 0.0
    %3061 = vmatprep.subr.mxu0 0.0
    %3062 = vmatpush1.msra.mxu0 0.0
    %3063 = vmatprep.subr.mxu0 0.0
    %3064 = vmatpush1.msra.mxu0 0.0
    %3065 = vmatprep.subr.mxu0 0.0
    %3066 = vmatpush1.msra.mxu0 0.0
    %3067 = vmatprep.subr.mxu0 0.0
    %3068 = vmatpush1.msra.mxu0 0.0
    %3069 = vmatprep.subr.mxu0 0.0
    %3070 = vmatpush1.msra.mxu0 0.0
    %3071 = vmatprep.subr.mxu0 0.0
    %3072 = vmatpush1.msra.mxu0 0.0
    %3073 = vmatprep.subr.mxu0 0.0
    %3074 = vmatpush1.msra.mxu0 0.0
    %3075 = vmatprep.subr.mxu0 0.0
    %3076 = vmatpush1.msra.mxu0 0.0
    %3077 = vmatprep.subr.mxu0 0.0
    %3078 = vmatpush1.msra.mxu0 0.0
    %3079 = vmatprep.subr.mxu0 0.0
    %3080 = vmatpush1.msra.mxu0 0.0
    %3081 = vmatprep.subr.mxu0 0.0
    %3082 = vmatpush1.msra.mxu0 0.0
    %3083 = vmatprep.subr.mxu0 0.0
    %3084 = vmatpush1.msra.mxu0 0.0
    %3085 = vmatprep.subr.mxu0 0.0
    %3086 = vmatpush1.msra.mxu0 0.0
    %3087 = vmatprep.subr.mxu0 0.0
    %3088 = vmatpush1.msra.mxu0 0.0
    %3089 = vmatprep.subr.mxu0 0.0
    %3090 = vmatpush1.msra.mxu0 0.0
    %3091 = vmatprep.subr.mxu0 0.0
    %3092 = vmatpush1.msra.mxu0 0.0
    %3093 = vmatprep.subr.mxu0 0.0
    %3094 = vmatpush1.msra.mxu0 0.0
    %3095 = vmatprep.subr.mxu0 0.0
    %3096 = vmatpush1.msra.mxu0 0.0
    %3097 = vmatprep.subr.mxu0 0.0
    %3098 = vmatpush1.msra.mxu0 0.0
    %3099 = vmatprep.subr.mxu0 0.0
    %3100 = vmatpush1.msra.mxu0 0.0
    %3101 = vmatprep.mubr.f32.mxu0 0.0
    %3102 = vmatmul.mubr.f32.gmra.mrb[0].mxu0 %v3032
    %v3103 = vpop.f32.mrb[0].mxu0
    %v3104 = vadd.f32 %v3024, %v3103
    %v3105 = vpop.f32.mrb[0].mxu0
    %v3106 = vadd.f32 %v3028, %v3105
    %3107 = vmatprep.mubr.f32.mxu0 0.0
    %3108 = vmatmul.mubr.f32.gmra.mrb[0].mxu0 %v3035
    %v3109 = vpop.f32.mrb[0].mxu0
    %v3110 = vadd.f32 %v3024, %v3109
    %v3111 = vpop.f32.mrb[0].mxu0
    %v3112 = vadd.f32 %v3028, %v3111
    %3113 = vdwg.mxu0
    %v3114 = vld [vmem:[#allocation16] sm:$0xff]
    %v3115 = vld [vmem:[#allocation16 + $0x8] sm:$0xff]
    %v3116 = vld [vmem:[#allocation16 + $0x10] sm:$0xff]
    %v3117 = vld [vmem:[#allocation16 + $0x18] sm:$0xff]
    %v3118 = vld [vmem:[#allocation16 + $0x20] sm:$0xff]
    %v3119 = vld [vmem:[#allocation16 + $0x28] sm:$0xff]
    %v3120 = vld [vmem:[#allocation16 + $0x30] sm:$0xff]
    %v3121 = vld [vmem:[#allocation16 + $0x38] sm:$0xff]
    %v3122 = vld [vmem:[#allocation16 + $0x40] sm:$0xff]
    %v3123 = vld [vmem:[#allocation16 + $0x48] sm:$0xff]
    %v3124 = vld [vmem:[#allocation16 + $0x50] sm:$0xff]
    %v3125 = vld [vmem:[#allocation16 + $0x58] sm:$0xff]
    %v3126 = vld [vmem:[#allocation16 + $0x60] sm:$0xff]
    %v3127 = vld [vmem:[#allocation16 + $0x68] sm:$0xff]
    %v3128 = vld [vmem:[#allocation16 + $0x70] sm:$0xff]
    %v3129 = vld [vmem:[#allocation16 + $0x78] sm:$0xff]
    %v3130 = vld [vmem:[#allocation17] sm:$0xff]
    %v3131 = vld [vmem:[#allocation17 + $0x8] sm:$0xff]
    %v3132 = vld [vmem:[#allocation17 + $0x10] sm:$0xff]
    %v3133 = vld [vmem:[#allocation17 + $0x18] sm:$0xff]
    %v3134 = vld [vmem:[#allocation17 + $0x20] sm:$0xff]
    %v3135 = vld [vmem:[#allocation17 + $0x28] sm:$0xff]
    %v3136 = vld [vmem:[#allocation17 + $0x30] sm:$0xff]
    %v3137 = vld [vmem:[#allocation17 + $0x38] sm:$0xff]
    %v3138 = vld [vmem:[#allocation17 + $0x40] sm:$0xff]
    %v3139 = vld [vmem:[#allocation17 + $0x48] sm:$0xff]
    %v3140 = vld [vmem:[#allocation17 + $0x50] sm:$0xff]
    %v3141 = vld [vmem:[#allocation17 + $0x58] sm:$0xff]
    %v3142 = vld [vmem:[#allocation17 + $0x60] sm:$0xff]
    %v3143 = vld [vmem:[#allocation17 + $0x68] sm:$0xff]
    %v3144 = vld [vmem:[#allocation17 + $0x70] sm:$0xff]
    %v3145 = vld [vmem:[#allocation17 + $0x78] sm:$0xff]
    %v3146 = vld [vmem:[#allocation17 + $0x80] sm:$0xff]
    %v3147 = vld [vmem:[#allocation17 + $0x88] sm:$0xff]
    %v3148 = vld [vmem:[#allocation17 + $0x90] sm:$0xff]
    %v3149 = vld [vmem:[#allocation17 + $0x98] sm:$0xff]
    %v3150 = vld [vmem:[#allocation17 + $0xa0] sm:$0xff]
    %v3151 = vld [vmem:[#allocation17 + $0xa8] sm:$0xff]
    %v3152 = vld [vmem:[#allocation17 + $0xb0] sm:$0xff]
    %v3153 = vld [vmem:[#allocation17 + $0xb8] sm:$0xff]
    %v3154 = vld [vmem:[#allocation17 + $0xc0] sm:$0xff]
    %v3155 = vld [vmem:[#allocation17 + $0xc8] sm:$0xff]
    %v3156 = vld [vmem:[#allocation17 + $0xd0] sm:$0xff]
    %v3157 = vld [vmem:[#allocation17 + $0xd8] sm:$0xff]
    %v3158 = vld [vmem:[#allocation17 + $0xe0] sm:$0xff]
    %v3159 = vld [vmem:[#allocation17 + $0xe8] sm:$0xff]
    %v3160 = vld [vmem:[#allocation17 + $0xf0] sm:$0xff]
    %v3161 = vld [vmem:[#allocation17 + $0xf8] sm:$0xff]
    %v3162 = vld [vmem:[%s14] sm:$0x3]
    %v3163 = vsel %vm388, 0.0, 0
    %3165 = vmatprep.subr.mxu0 %v3115
    %3166 = vmatpush1.msra.mxu0 %v3114
    %3167 = vmatprep.subr.mxu0 %v3117
    %3168 = vmatpush1.msra.mxu0 %v3116
    %3169 = vmatprep.subr.mxu0 %v3119
    %3170 = vmatpush1.msra.mxu0 %v3118
    %3171 = vmatprep.subr.mxu0 %v3121
    %3172 = vmatpush1.msra.mxu0 %v3120
    %3173 = vmatprep.subr.mxu0 %v3123
    %3174 = vmatpush1.msra.mxu0 %v3122
    %3175 = vmatprep.subr.mxu0 %v3125
    %3176 = vmatpush1.msra.mxu0 %v3124
    %3177 = vmatprep.subr.mxu0 %v3127
    %3178 = vmatpush1.msra.mxu0 %v3126
    %3179 = vmatprep.subr.mxu0 %v3129
    %3180 = vmatpush1.msra.mxu0 %v3128
    %3181 = vmatprep.subr.mxu0 0.0
    %3182 = vmatpush1.msra.mxu0 0.0
    %3183 = vmatprep.subr.mxu0 0.0
    %3184 = vmatpush1.msra.mxu0 0.0
    %3185 = vmatprep.subr.mxu0 0.0
    %3186 = vmatpush1.msra.mxu0 0.0
    %3187 = vmatprep.subr.mxu0 0.0
    %3188 = vmatpush1.msra.mxu0 0.0
    %3189 = vmatprep.subr.mxu0 0.0
    %3190 = vmatpush1.msra.mxu0 0.0
    %3191 = vmatprep.subr.mxu0 0.0
    %3192 = vmatpush1.msra.mxu0 0.0
    %3193 = vmatprep.subr.mxu0 0.0
    %3194 = vmatpush1.msra.mxu0 0.0
    %3195 = vmatprep.subr.mxu0 0.0
    %3196 = vmatpush1.msra.mxu0 0.0
    %3197 = vmatprep.subr.mxu0 0.0
    %3198 = vmatpush1.msra.mxu0 0.0
    %3199 = vmatprep.subr.mxu0 0.0
    %3200 = vmatpush1.msra.mxu0 0.0
    %3201 = vmatprep.subr.mxu0 0.0
    %3202 = vmatpush1.msra.mxu0 0.0
    %3203 = vmatprep.subr.mxu0 0.0
    %3204 = vmatpush1.msra.mxu0 0.0
    %3205 = vmatprep.subr.mxu0 0.0
    %3206 = vmatpush1.msra.mxu0 0.0
    %3207 = vmatprep.subr.mxu0 0.0
    %3208 = vmatpush1.msra.mxu0 0.0
    %3209 = vmatprep.subr.mxu0 0.0
    %3210 = vmatpush1.msra.mxu0 0.0
    %3211 = vmatprep.subr.mxu0 0.0
    %3212 = vmatpush1.msra.mxu0 0.0
    %3213 = vmatprep.subr.mxu0 0.0
    %3214 = vmatpush1.msra.mxu0 0.0
    %3215 = vmatprep.subr.mxu0 0.0
    %3216 = vmatpush1.msra.mxu0 0.0
    %3217 = vmatprep.subr.mxu0 0.0
    %3218 = vmatpush1.msra.mxu0 0.0
    %3219 = vmatprep.subr.mxu0 0.0
    %3220 = vmatpush1.msra.mxu0 0.0
    %3221 = vmatprep.subr.mxu0 0.0
    %3222 = vmatpush1.msra.mxu0 0.0
    %3223 = vmatprep.subr.mxu0 0.0
    %3224 = vmatpush1.msra.mxu0 0.0
    %3225 = vmatprep.subr.mxu0 0.0
    %3226 = vmatpush1.msra.mxu0 0.0
    %3227 = vmatprep.subr.mxu0 0.0
    %3228 = vmatpush1.msra.mxu0 0.0
    %3229 = vmatprep.mubr.f32.mxu0 0.0
    %3230 = vmatmul.mubr.f32.gmra.mrb[0].mxu0 %v3163
    %v3231 = vpop.f32.mrb[0].mxu0
    %v3232 = vadd.f32 0.0, %v3231
    %v3233 = vpop.f32.mrb[0].mxu0
    %v3234 = vadd.f32 0.0, %v3233
    %3235 = vdwg.mxu0
    %v3236 = vadd.f32 %v3104, %v3232
    %v3237 = vadd.f32 %v3106, %v3234
    %v3238 = vxor.u32 %v3236, 2147483648
    %v3239 = vxor.u32 %v3237, 2147483648
    %v3240 = vmul.f32 %v3238, 1.442695
    %v3241 = vpow.pop %v3240
    %v3242 = vmul.f32 %v3239, 1.442695
    %v3243 = vpow.pop %v3242
    %v3244 = vadd.f32 %v3241, 1.0
    %v3245 = vadd.f32 %v3243, 1.0
    %v3246 = vrcp.pop %v3244
    %v3247 = vmul.f32 1.0, %v3246
    %v3248 = vrcp.pop %v3245
    %v3249 = vmul.f32 1.0, %v3248
    %v3250 = vtanh.pop %v3237
    %v3251 = vmul.f32 %v3247, 0.0
    %3253 = vrot.lane.b32.xlu0 %v3250, 64
    %v3254 = vpop.permute.xlu0 %3253
    %v3256 = vmul.f32 %v3247, %v3254
    %3258 = vrot.lane.b32.xlu0 %v3256, 64
    %v3259 = vpop.permute.xlu0 %3258
    %v3261 = vadd.f32 %v3251, %v3259
    %v3262 = vtanh.pop %v3261
    %3264 = vrot.lane.b32.xlu0 %v3262, 64
    %v3265 = vpop.permute.xlu0 %3264
    %v3267 = vmul.f32 %v3249, %v3265
    %v3268 = vsel %vm388, %v3267, 0.0
    %3269 = vmatprep.subr.mxu0 %v3131
    %3270 = vmatpush1.msra.mxu0 %v3130
    %3271 = vmatprep.subr.mxu0 %v3133
    %3272 = vmatpush1.msra.mxu0 %v3132
    %3273 = vmatprep.subr.mxu0 %v3135
    %3274 = vmatpush1.msra.mxu0 %v3134
    %3275 = vmatprep.subr.mxu0 %v3137
    %3276 = vmatpush1.msra.mxu0 %v3136
    %3277 = vmatprep.subr.mxu0 %v3139
    %3278 = vmatpush1.msra.mxu0 %v3138
    %3279 = vmatprep.subr.mxu0 %v3141
    %3280 = vmatpush1.msra.mxu0 %v3140
    %3281 = vmatprep.subr.mxu0 %v3143
    %3282 = vmatpush1.msra.mxu0 %v3142
    %3283 = vmatprep.subr.mxu0 %v3145
    %3284 = vmatpush1.msra.mxu0 %v3144
    %3285 = vmatprep.subr.mxu0 %v3147
    %3286 = vmatpush1.msra.mxu0 %v3146
    %3287 = vmatprep.subr.mxu0 %v3149
    %3288 = vmatpush1.msra.mxu0 %v3148
    %3289 = vmatprep.subr.mxu0 %v3151
    %3290 = vmatpush1.msra.mxu0 %v3150
    %3291 = vmatprep.subr.mxu0 %v3153
    %3292 = vmatpush1.msra.mxu0 %v3152
    %3293 = vmatprep.subr.mxu0 %v3155
    %3294 = vmatpush1.msra.mxu0 %v3154
    %3295 = vmatprep.subr.mxu0 %v3157
    %3296 = vmatpush1.msra.mxu0 %v3156
    %3297 = vmatprep.subr.mxu0 %v3159
    %3298 = vmatpush1.msra.mxu0 %v3158
    %3299 = vmatprep.subr.mxu0 %v3161
    %3300 = vmatpush1.msra.mxu0 %v3160
    %3301 = vmatprep.subr.mxu0 0.0
    %3302 = vmatpush1.msra.mxu0 0.0
    %3303 = vmatprep.subr.mxu0 0.0
    %3304 = vmatpush1.msra.mxu0 0.0
    %3305 = vmatprep.subr.mxu0 0.0
    %3306 = vmatpush1.msra.mxu0 0.0
    %3307 = vmatprep.subr.mxu0 0.0
    %3308 = vmatpush1.msra.mxu0 0.0
    %3309 = vmatprep.subr.mxu0 0.0
    %3310 = vmatpush1.msra.mxu0 0.0
    %3311 = vmatprep.subr.mxu0 0.0
    %3312 = vmatpush1.msra.mxu0 0.0
    %3313 = vmatprep.subr.mxu0 0.0
    %3314 = vmatpush1.msra.mxu0 0.0
    %3315 = vmatprep.subr.mxu0 0.0
    %3316 = vmatpush1.msra.mxu0 0.0
    %3317 = vmatprep.subr.mxu0 0.0
    %3318 = vmatpush1.msra.mxu0 0.0
    %3319 = vmatprep.subr.mxu0 0.0
    %3320 = vmatpush1.msra.mxu0 0.0
    %3321 = vmatprep.subr.mxu0 0.0
    %3322 = vmatpush1.msra.mxu0 0.0
    %3323 = vmatprep.subr.mxu0 0.0
    %3324 = vmatpush1.msra.mxu0 0.0
    %3325 = vmatprep.subr.mxu0 0.0
    %3326 = vmatpush1.msra.mxu0 0.0
    %3327 = vmatprep.subr.mxu0 0.0
    %3328 = vmatpush1.msra.mxu0 0.0
    %3329 = vmatprep.subr.mxu0 0.0
    %3330 = vmatpush1.msra.mxu0 0.0
    %3331 = vmatprep.subr.mxu0 0.0
    %3332 = vmatpush1.msra.mxu0 0.0
    %3333 = vmatprep.mubr.f32.mxu0 0.0
    %3334 = vmatmul.mubr.f32.gmra.mrb[0].mxu0 %v3268
    %v3335 = vpop.f32.mrb[0].mxu0
    %v3336 = vadd.f32 0.0, %v3335
    %v3337 = vpop.f32.mrb[0].mxu0
    %v3338 = vadd.f32 0.0, %v3337
    %3339 = vdwg.mxu0
    %v3341 = vlaneseq
    %v3342 = vshrl.u32 %v3341, 7
    %v3343 = vsub.s32 0, %v3342
    %v3344 = vrot.slane %v3162, %v3343
    %v3345 = vlaneseq
    %v3346 = vshrl.u32 %v3345, 7
    %v3347 = vsub.s32 1, %v3346
    %v3348 = vrot.slane %v3162, %v3347
    %v3351 = vadd.f32 %v3344, %v3336
    %v3352 = vadd.f32 %v3348, %v3338
    %v3353 = vxor.u32 %v3351, 2147483648
    %v3354 = vxor.u32 %v3352, 2147483648
    %v3355 = vmul.f32 %v3353, 1.442695
    %v3356 = vpow.pop %v3355
    %v3357 = vmul.f32 %v3354, 1.442695
    %v3358 = vpow.pop %v3357
    %v3359 = vadd.f32 %v3356, 1.0
    %v3360 = vadd.f32 %v3358, 1.0
    %v3361 = vrcp.pop %v3359
    %v3362 = vmul.f32 1.0, %v3361
    %v3363 = vrcp.pop %v3360
    %v3364 = vmul.f32 1.0, %v3363
    %v3365 = vtanh.pop %v3352
    %v3366 = vmul.f32 %v3362, 0.0
    %3368 = vrot.lane.b32.xlu0 %v3365, 64
    %v3369 = vpop.permute.xlu0 %3368
    %v3371 = vmul.f32 %v3362, %v3369
    %3373 = vrot.lane.b32.xlu0 %v3371, 64
    %v3374 = vpop.permute.xlu0 %3373
    %v3376 = vadd.f32 %v3366, %v3374
    %v3377 = vtanh.pop %v3376
    %3379 = vrot.lane.b32.xlu0 %v3377, 64
    %v3380 = vpop.permute.xlu0 %3379
    %v3382 = vmul.f32 %v3364, %v3380
    %v3384 = vsel %vm388, %v3267, 0
    %3386 = vmatprep.subr.mxu0 %v3115
    %3387 = vmatpush1.msra.mxu0 %v3114
    %3388 = vmatprep.subr.mxu0 %v3117
    %3389 = vmatpush1.msra.mxu0 %v3116
    %3390 = vmatprep.subr.mxu0 %v3119
    %3391 = vmatpush1.msra.mxu0 %v3118
    %3392 = vmatprep.subr.mxu0 %v3121
    %3393 = vmatpush1.msra.mxu0 %v3120
    %3394 = vmatprep.subr.mxu0 %v3123
    %3395 = vmatpush1.msra.mxu0 %v3122
    %3396 = vmatprep.subr.mxu0 %v3125
    %3397 = vmatpush1.msra.mxu0 %v3124
    %3398 = vmatprep.subr.mxu0 %v3127
    %3399 = vmatpush1.msra.mxu0 %v3126
    %3400 = vmatprep.subr.mxu0 %v3129
    %3401 = vmatpush1.msra.mxu0 %v3128
    %3402 = vmatprep.subr.mxu0 0.0
    %3403 = vmatpush1.msra.mxu0 0.0
    %3404 = vmatprep.subr.mxu0 0.0
    %3405 = vmatpush1.msra.mxu0 0.0
    %3406 = vmatprep.subr.mxu0 0.0
    %3407 = vmatpush1.msra.mxu0 0.0
    %3408 = vmatprep.subr.mxu0 0.0
    %3409 = vmatpush1.msra.mxu0 0.0
    %3410 = vmatprep.subr.mxu0 0.0
    %3411 = vmatpush1.msra.mxu0 0.0
    %3412 = vmatprep.subr.mxu0 0.0
    %3413 = vmatpush1.msra.mxu0 0.0
    %3414 = vmatprep.subr.mxu0 0.0
    %3415 = vmatpush1.msra.mxu0 0.0
    %3416 = vmatprep.subr.mxu0 0.0
    %3417 = vmatpush1.msra.mxu0 0.0
    %3418 = vmatprep.subr.mxu0 0.0
    %3419 = vmatpush1.msra.mxu0 0.0
    %3420 = vmatprep.subr.mxu0 0.0
    %3421 = vmatpush1.msra.mxu0 0.0
    %3422 = vmatprep.subr.mxu0 0.0
    %3423 = vmatpush1.msra.mxu0 0.0
    %3424 = vmatprep.subr.mxu0 0.0
    %3425 = vmatpush1.msra.mxu0 0.0
    %3426 = vmatprep.subr.mxu0 0.0
    %3427 = vmatpush1.msra.mxu0 0.0
    %3428 = vmatprep.subr.mxu0 0.0
    %3429 = vmatpush1.msra.mxu0 0.0
    %3430 = vmatprep.subr.mxu0 0.0
    %3431 = vmatpush1.msra.mxu0 0.0
    %3432 = vmatprep.subr.mxu0 0.0
    %3433 = vmatpush1.msra.mxu0 0.0
    %3434 = vmatprep.subr.mxu0 0.0
    %3435 = vmatpush1.msra.mxu0 0.0
    %3436 = vmatprep.subr.mxu0 0.0
    %3437 = vmatpush1.msra.mxu0 0.0
    %3438 = vmatprep.subr.mxu0 0.0
    %3439 = vmatpush1.msra.mxu0 0.0
    %3440 = vmatprep.subr.mxu0 0.0
    %3441 = vmatpush1.msra.mxu0 0.0
    %3442 = vmatprep.subr.mxu0 0.0
    %3443 = vmatpush1.msra.mxu0 0.0
    %3444 = vmatprep.subr.mxu0 0.0
    %3445 = vmatpush1.msra.mxu0 0.0
    %3446 = vmatprep.subr.mxu0 0.0
    %3447 = vmatpush1.msra.mxu0 0.0
    %3448 = vmatprep.subr.mxu0 0.0
    %3449 = vmatpush1.msra.mxu0 0.0
    %3450 = vmatprep.mubr.f32.mxu0 0.0
    %3451 = vmatmul.mubr.f32.gmra.mrb[0].mxu0 %v3384
    %v3452 = vpop.f32.mrb[0].mxu0
    %v3453 = vadd.f32 0.0, %v3452
    %v3454 = vpop.f32.mrb[0].mxu0
    %v3455 = vadd.f32 0.0, %v3454
    %3456 = vdwg.mxu0
    %v3459 = vrot.slane %v3453, 6
    %v3460 = vrot.slane %v3455, 6
    %v3463 = vadd.f32 %v3104, %v3459
    %v3464 = vadd.f32 %v3106, %v3460
    %v3465 = vxor.u32 %v3463, 2147483648
    %v3466 = vxor.u32 %v3464, 2147483648
    %v3467 = vmul.f32 %v3465, 1.442695
    %v3468 = vpow.pop %v3467
    %v3469 = vmul.f32 %v3466, 1.442695
    %v3470 = vpow.pop %v3469
    %v3471 = vadd.f32 %v3468, 1.0
    %v3472 = vadd.f32 %v3470, 1.0
    %v3473 = vrcp.pop %v3471
    %v3474 = vmul.f32 1.0, %v3473
    %v3475 = vrcp.pop %v3472
    %v3476 = vmul.f32 1.0, %v3475
    %v3477 = vtanh.pop %v3464
    %v3479 = vrot.slane %v3261, 6
    %v3481 = vmul.f32 %v3474, %v3479
    %3483 = vrot.lane.b32.xlu0 %v3477, 64
    %v3484 = vpop.permute.xlu0 %3483
    %v3486 = vmul.f32 %v3474, %v3484
    %3488 = vrot.lane.b32.xlu0 %v3486, 64
    %v3489 = vpop.permute.xlu0 %3488
    %v3491 = vadd.f32 %v3481, %v3489
    %v3492 = vtanh.pop %v3491
    %3494 = vrot.lane.b32.xlu0 %v3492, 64
    %v3495 = vpop.permute.xlu0 %3494
    %v3497 = vmul.f32 %v3476, %v3495
    %v3499 = vrot.slane %v3382, 6
    %3500 = vrot.lane.b32.xlu0 %v3499, 64
    %v3501 = vpop.permute.xlu0 %3500
    %v3503 = vsel %vm388, %v3497, %v3501
    %v3505 = vrot.slane %v3503, 2
    %3507 = vmatprep.subr.mxu0 %v3131
    %3508 = vmatpush1.msra.mxu0 %v3130
    %3509 = vmatprep.subr.mxu0 %v3133
    %3510 = vmatpush1.msra.mxu0 %v3132
    %3511 = vmatprep.subr.mxu0 %v3135
    %3512 = vmatpush1.msra.mxu0 %v3134
    %3513 = vmatprep.subr.mxu0 %v3137
    %3514 = vmatpush1.msra.mxu0 %v3136
    %3515 = vmatprep.subr.mxu0 %v3139
    %3516 = vmatpush1.msra.mxu0 %v3138
    %3517 = vmatprep.subr.mxu0 %v3141
    %3518 = vmatpush1.msra.mxu0 %v3140
    %3519 = vmatprep.subr.mxu0 %v3143
    %3520 = vmatpush1.msra.mxu0 %v3142
    %3521 = vmatprep.subr.mxu0 %v3145
    %3522 = vmatpush1.msra.mxu0 %v3144
    %3523 = vmatprep.subr.mxu0 %v3147
    %3524 = vmatpush1.msra.mxu0 %v3146
    %3525 = vmatprep.subr.mxu0 %v3149
    %3526 = vmatpush1.msra.mxu0 %v3148
    %3527 = vmatprep.subr.mxu0 %v3151
    %3528 = vmatpush1.msra.mxu0 %v3150
    %3529 = vmatprep.subr.mxu0 %v3153
    %3530 = vmatpush1.msra.mxu0 %v3152
    %3531 = vmatprep.subr.mxu0 %v3155
    %3532 = vmatpush1.msra.mxu0 %v3154
    %3533 = vmatprep.subr.mxu0 %v3157
    %3534 = vmatpush1.msra.mxu0 %v3156
    %3535 = vmatprep.subr.mxu0 %v3159
    %3536 = vmatpush1.msra.mxu0 %v3158
    %3537 = vmatprep.subr.mxu0 %v3161
    %3538 = vmatpush1.msra.mxu0 %v3160
    %3539 = vmatprep.subr.mxu0 0.0
    %3540 = vmatpush1.msra.mxu0 0.0
    %3541 = vmatprep.subr.mxu0 0.0
    %3542 = vmatpush1.msra.mxu0 0.0
    %3543 = vmatprep.subr.mxu0 0.0
    %3544 = vmatpush1.msra.mxu0 0.0
    %3545 = vmatprep.subr.mxu0 0.0
    %3546 = vmatpush1.msra.mxu0 0.0
    %3547 = vmatprep.subr.mxu0 0.0
    %3548 = vmatpush1.msra.mxu0 0.0
    %3549 = vmatprep.subr.mxu0 0.0
    %3550 = vmatpush1.msra.mxu0 0.0
    %3551 = vmatprep.subr.mxu0 0.0
    %3552 = vmatpush1.msra.mxu0 0.0
    %3553 = vmatprep.subr.mxu0 0.0
    %3554 = vmatpush1.msra.mxu0 0.0
    %3555 = vmatprep.subr.mxu0 0.0
    %3556 = vmatpush1.msra.mxu0 0.0
    %3557 = vmatprep.subr.mxu0 0.0
    %3558 = vmatpush1.msra.mxu0 0.0
    %3559 = vmatprep.subr.mxu0 0.0
    %3560 = vmatpush1.msra.mxu0 0.0
    %3561 = vmatprep.subr.mxu0 0.0
    %3562 = vmatpush1.msra.mxu0 0.0
    %3563 = vmatprep.subr.mxu0 0.0
    %3564 = vmatpush1.msra.mxu0 0.0
    %3565 = vmatprep.subr.mxu0 0.0
    %3566 = vmatpush1.msra.mxu0 0.0
    %3567 = vmatprep.subr.mxu0 0.0
    %3568 = vmatpush1.msra.mxu0 0.0
    %3569 = vmatprep.subr.mxu0 0.0
    %3570 = vmatpush1.msra.mxu0 0.0
    %3571 = vmatprep.mubr.f32.mxu0 0.0
    %3572 = vmatmul.mubr.f32.gmra.mrb[0].mxu0 %v3505
    %v3573 = vpop.f32.mrb[0].mxu0
    %v3574 = vadd.f32 0.0, %v3573
    %v3575 = vpop.f32.mrb[0].mxu0
    %v3576 = vadd.f32 0.0, %v3575
    %3577 = vdwg.mxu0
    %v3578 = vadd.f32 %v3344, %v3574
    %v3579 = vadd.f32 %v3348, %v3576
    %v3580 = vxor.u32 %v3578, 2147483648
    %v3581 = vxor.u32 %v3579, 2147483648
    %v3582 = vmul.f32 %v3580, 1.442695
    %v3583 = vpow.pop %v3582
    %v3584 = vmul.f32 %v3581, 1.442695
    %v3585 = vpow.pop %v3584
    %v3586 = vadd.f32 %v3583, 1.0
    %v3587 = vadd.f32 %v3585, 1.0
    %v3588 = vrcp.pop %v3586
    %v3589 = vmul.f32 1.0, %v3588
    %v3590 = vrcp.pop %v3587
    %v3591 = vmul.f32 1.0, %v3590
    %v3592 = vtanh.pop %v3579
    %v3593 = vmul.f32 %v3589, %v3376
    %3595 = vrot.lane.b32.xlu0 %v3592, 64
    %v3596 = vpop.permute.xlu0 %3595
    %v3598 = vmul.f32 %v3589, %v3596
    %3600 = vrot.lane.b32.xlu0 %v3598, 64
    %v3601 = vpop.permute.xlu0 %3600
    %v3603 = vadd.f32 %v3593, %v3601
    %v3604 = vtanh.pop %v3603
    %3606 = vrot.lane.b32.xlu0 %v3604, 64
    %v3607 = vpop.permute.xlu0 %3606
    %v3609 = vmul.f32 %v3591, %v3607
    %v3611 = vrot.slane %v3497, 2
    %v3612 = vsel %vm388, %v3611, 0
    %3614 = vmatprep.subr.mxu0 %v3115
    %3615 = vmatpush1.msra.mxu0 %v3114
    %3616 = vmatprep.subr.mxu0 %v3117
    %3617 = vmatpush1.msra.mxu0 %v3116
    %3618 = vmatprep.subr.mxu0 %v3119
    %3619 = vmatpush1.msra.mxu0 %v3118
    %3620 = vmatprep.subr.mxu0 %v3121
    %3621 = vmatpush1.msra.mxu0 %v3120
    %3622 = vmatprep.subr.mxu0 %v3123
    %3623 = vmatpush1.msra.mxu0 %v3122
    %3624 = vmatprep.subr.mxu0 %v3125
    %3625 = vmatpush1.msra.mxu0 %v3124
    %3626 = vmatprep.subr.mxu0 %v3127
    %3627 = vmatpush1.msra.mxu0 %v3126
    %3628 = vmatprep.subr.mxu0 %v3129
    %3629 = vmatpush1.msra.mxu0 %v3128
    %3630 = vmatprep.subr.mxu0 0.0
    %3631 = vmatpush1.msra.mxu0 0.0
    %3632 = vmatprep.subr.mxu0 0.0
    %3633 = vmatpush1.msra.mxu0 0.0
    %3634 = vmatprep.subr.mxu0 0.0
    %3635 = vmatpush1.msra.mxu0 0.0
    %3636 = vmatprep.subr.mxu0 0.0
    %3637 = vmatpush1.msra.mxu0 0.0
    %3638 = vmatprep.subr.mxu0 0.0
    %3639 = vmatpush1.msra.mxu0 0.0
    %3640 = vmatprep.subr.mxu0 0.0
    %3641 = vmatpush1.msra.mxu0 0.0
    %3642 = vmatprep.subr.mxu0 0.0
    %3643 = vmatpush1.msra.mxu0 0.0
    %3644 = vmatprep.subr.mxu0 0.0
    %3645 = vmatpush1.msra.mxu0 0.0
    %3646 = vmatprep.subr.mxu0 0.0
    %3647 = vmatpush1.msra.mxu0 0.0
    %3648 = vmatprep.subr.mxu0 0.0
    %3649 = vmatpush1.msra.mxu0 0.0
    %3650 = vmatprep.subr.mxu0 0.0
    %3651 = vmatpush1.msra.mxu0 0.0
    %3652 = vmatprep.subr.mxu0 0.0
    %3653 = vmatpush1.msra.mxu0 0.0
    %3654 = vmatprep.subr.mxu0 0.0
    %3655 = vmatpush1.msra.mxu0 0.0
    %3656 = vmatprep.subr.mxu0 0.0
    %3657 = vmatpush1.msra.mxu0 0.0
    %3658 = vmatprep.subr.mxu0 0.0
    %3659 = vmatpush1.msra.mxu0 0.0
    %3660 = vmatprep.subr.mxu0 0.0
    %3661 = vmatpush1.msra.mxu0 0.0
    %3662 = vmatprep.subr.mxu0 0.0
    %3663 = vmatpush1.msra.mxu0 0.0
    %3664 = vmatprep.subr.mxu0 0.0
    %3665 = vmatpush1.msra.mxu0 0.0
    %3666 = vmatprep.subr.mxu0 0.0
    %3667 = vmatpush1.msra.mxu0 0.0
    %3668 = vmatprep.subr.mxu0 0.0
    %3669 = vmatpush1.msra.mxu0 0.0
    %3670 = vmatprep.subr.mxu0 0.0
    %3671 = vmatpush1.msra.mxu0 0.0
    %3672 = vmatprep.subr.mxu0 0.0
    %3673 = vmatpush1.msra.mxu0 0.0
    %3674 = vmatprep.subr.mxu0 0.0
    %3675 = vmatpush1.msra.mxu0 0.0
    %3676 = vmatprep.subr.mxu0 0.0
    %3677 = vmatpush1.msra.mxu0 0.0
    %3678 = vmatprep.mubr.f32.mxu0 0.0
    %3679 = vmatmul.mubr.f32.gmra.mrb[0].mxu0 %v3612
    %v3680 = vpop.f32.mrb[0].mxu0
    %v3681 = vadd.f32 0.0, %v3680
    %v3682 = vpop.f32.mrb[0].mxu0
    %v3683 = vadd.f32 0.0, %v3682
    %3684 = vdwg.mxu0
    %v3687 = vrot.slane %v3681, 4
    %v3688 = vrot.slane %v3683, 4
    %v3691 = vadd.f32 %v3104, %v3687
    %v3692 = vadd.f32 %v3106, %v3688
    %v3693 = vxor.u32 %v3691, 2147483648
    %v3694 = vxor.u32 %v3692, 2147483648
    %v3695 = vmul.f32 %v3693, 1.442695
    %v3696 = vpow.pop %v3695
    %v3697 = vmul.f32 %v3694, 1.442695
    %v3698 = vpow.pop %v3697
    %v3699 = vadd.f32 %v3696, 1.0
    %v3700 = vadd.f32 %v3698, 1.0
    %v3701 = vrcp.pop %v3699
    %v3702 = vmul.f32 1.0, %v3701
    %v3703 = vrcp.pop %v3700
    %v3704 = vmul.f32 1.0, %v3703
    %v3705 = vtanh.pop %v3692
    %v3707 = vrot.slane %v3491, 6
    %v3709 = vmul.f32 %v3702, %v3707
    %3711 = vrot.lane.b32.xlu0 %v3705, 64
    %v3712 = vpop.permute.xlu0 %3711
    %v3714 = vmul.f32 %v3702, %v3712
    %3716 = vrot.lane.b32.xlu0 %v3714, 64
    %v3717 = vpop.permute.xlu0 %3716
    %v3719 = vadd.f32 %v3709, %v3717
    %v3720 = vtanh.pop %v3719
    %3722 = vrot.lane.b32.xlu0 %v3720, 64
    %v3723 = vpop.permute.xlu0 %3722
    %v3725 = vmul.f32 %v3704, %v3723
    %v3727 = vrot.slane %v3609, 4
    %3728 = vrot.lane.b32.xlu0 %v3727, 64
    %v3729 = vpop.permute.xlu0 %3728
    %v3731 = vsel %vm388, %v3725, %v3729
    %v3733 = vrot.slane %v3731, 4
    %3735 = vmatprep.subr.mxu0 %v3131
    %3736 = vmatpush1.msra.mxu0 %v3130
    %3737 = vmatprep.subr.mxu0 %v3133
    %3738 = vmatpush1.msra.mxu0 %v3132
    %3739 = vmatprep.subr.mxu0 %v3135
    %3740 = vmatpush1.msra.mxu0 %v3134
    %3741 = vmatprep.subr.mxu0 %v3137
    %3742 = vmatpush1.msra.mxu0 %v3136
    %3743 = vmatprep.subr.mxu0 %v3139
    %3744 = vmatpush1.msra.mxu0 %v3138
    %3745 = vmatprep.subr.mxu0 %v3141
    %3746 = vmatpush1.msra.mxu0 %v3140
    %3747 = vmatprep.subr.mxu0 %v3143
    %3748 = vmatpush1.msra.mxu0 %v3142
    %3749 = vmatprep.subr.mxu0 %v3145
    %3750 = vmatpush1.msra.mxu0 %v3144
    %3751 = vmatprep.subr.mxu0 %v3147
    %3752 = vmatpush1.msra.mxu0 %v3146
    %3753 = vmatprep.subr.mxu0 %v3149
    %3754 = vmatpush1.msra.mxu0 %v3148
    %3755 = vmatprep.subr.mxu0 %v3151
    %3756 = vmatpush1.msra.mxu0 %v3150
    %3757 = vmatprep.subr.mxu0 %v3153
    %3758 = vmatpush1.msra.mxu0 %v3152
    %3759 = vmatprep.subr.mxu0 %v3155
    %3760 = vmatpush1.msra.mxu0 %v3154
    %3761 = vmatprep.subr.mxu0 %v3157
    %3762 = vmatpush1.msra.mxu0 %v3156
    %3763 = vmatprep.subr.mxu0 %v3159
    %3764 = vmatpush1.msra.mxu0 %v3158
    %3765 = vmatprep.subr.mxu0 %v3161
    %3766 = vmatpush1.msra.mxu0 %v3160
    %3767 = vmatprep.subr.mxu0 0.0
    %3768 = vmatpush1.msra.mxu0 0.0
    %3769 = vmatprep.subr.mxu0 0.0
    %3770 = vmatpush1.msra.mxu0 0.0
    %3771 = vmatprep.subr.mxu0 0.0
    %3772 = vmatpush1.msra.mxu0 0.0
    %3773 = vmatprep.subr.mxu0 0.0
    %3774 = vmatpush1.msra.mxu0 0.0
    %3775 = vmatprep.subr.mxu0 0.0
    %3776 = vmatpush1.msra.mxu0 0.0
    %3777 = vmatprep.subr.mxu0 0.0
    %3778 = vmatpush1.msra.mxu0 0.0
    %3779 = vmatprep.subr.mxu0 0.0
    %3780 = vmatpush1.msra.mxu0 0.0
    %3781 = vmatprep.subr.mxu0 0.0
    %3782 = vmatpush1.msra.mxu0 0.0
    %3783 = vmatprep.subr.mxu0 0.0
    %3784 = vmatpush1.msra.mxu0 0.0
    %3785 = vmatprep.subr.mxu0 0.0
    %3786 = vmatpush1.msra.mxu0 0.0
    %3787 = vmatprep.subr.mxu0 0.0
    %3788 = vmatpush1.msra.mxu0 0.0
    %3789 = vmatprep.subr.mxu0 0.0
    %3790 = vmatpush1.msra.mxu0 0.0
    %3791 = vmatprep.subr.mxu0 0.0
    %3792 = vmatpush1.msra.mxu0 0.0
    %3793 = vmatprep.subr.mxu0 0.0
    %3794 = vmatpush1.msra.mxu0 0.0
    %3795 = vmatprep.subr.mxu0 0.0
    %3796 = vmatpush1.msra.mxu0 0.0
    %3797 = vmatprep.subr.mxu0 0.0
    %3798 = vmatpush1.msra.mxu0 0.0
    %3799 = vmatprep.mubr.f32.mxu0 0.0
    %3800 = vmatmul.mubr.f32.gmra.mrb[0].mxu0 %v3733
    %v3801 = vpop.f32.mrb[0].mxu0
    %v3802 = vadd.f32 0.0, %v3801
    %v3803 = vpop.f32.mrb[0].mxu0
    %v3804 = vadd.f32 0.0, %v3803
    %3805 = vdwg.mxu0
    %v3806 = vadd.f32 %v3344, %v3802
    %v3807 = vadd.f32 %v3348, %v3804
    %v3808 = vxor.u32 %v3806, 2147483648
    %v3809 = vxor.u32 %v3807, 2147483648
    %v3810 = vmul.f32 %v3808, 1.442695
    %v3811 = vpow.pop %v3810
    %v3812 = vmul.f32 %v3809, 1.442695
    %v3813 = vpow.pop %v3812
    %v3814 = vadd.f32 %v3811, 1.0
    %v3815 = vadd.f32 %v3813, 1.0
    %v3816 = vrcp.pop %v3814
    %v3817 = vmul.f32 1.0, %v3816
    %v3818 = vrcp.pop %v3815
    %v3819 = vmul.f32 1.0, %v3818
    %v3820 = vtanh.pop %v3807
    %v3821 = vmul.f32 %v3817, %v3603
    %3823 = vrot.lane.b32.xlu0 %v3820, 64
    %v3824 = vpop.permute.xlu0 %3823
    %v3826 = vmul.f32 %v3817, %v3824
    %3828 = vrot.lane.b32.xlu0 %v3826, 64
    %v3829 = vpop.permute.xlu0 %3828
    %v3831 = vadd.f32 %v3821, %v3829
    %v3832 = vtanh.pop %v3831
    %3834 = vrot.lane.b32.xlu0 %v3832, 64
    %v3835 = vpop.permute.xlu0 %3834
    %v3837 = vmul.f32 %v3819, %v3835
    %v3839 = vrot.slane %v3725, 4
    %v3840 = vsel %vm388, %v3839, 0
    %3842 = vmatprep.subr.mxu0 %v3115
    %3843 = vmatpush1.msra.mxu0 %v3114
    %3844 = vmatprep.subr.mxu0 %v3117
    %3845 = vmatpush1.msra.mxu0 %v3116
    %3846 = vmatprep.subr.mxu0 %v3119
    %3847 = vmatpush1.msra.mxu0 %v3118
    %3848 = vmatprep.subr.mxu0 %v3121
    %3849 = vmatpush1.msra.mxu0 %v3120
    %3850 = vmatprep.subr.mxu0 %v3123
    %3851 = vmatpush1.msra.mxu0 %v3122
    %3852 = vmatprep.subr.mxu0 %v3125
    %3853 = vmatpush1.msra.mxu0 %v3124
    %3854 = vmatprep.subr.mxu0 %v3127
    %3855 = vmatpush1.msra.mxu0 %v3126
    %3856 = vmatprep.subr.mxu0 %v3129
    %3857 = vmatpush1.msra.mxu0 %v3128
    %3858 = vmatprep.subr.mxu0 0.0
    %3859 = vmatpush1.msra.mxu0 0.0
    %3860 = vmatprep.subr.mxu0 0.0
    %3861 = vmatpush1.msra.mxu0 0.0
    %3862 = vmatprep.subr.mxu0 0.0
    %3863 = vmatpush1.msra.mxu0 0.0
    %3864 = vmatprep.subr.mxu0 0.0
    %3865 = vmatpush1.msra.mxu0 0.0
    %3866 = vmatprep.subr.mxu0 0.0
    %3867 = vmatpush1.msra.mxu0 0.0
    %3868 = vmatprep.subr.mxu0 0.0
    %3869 = vmatpush1.msra.mxu0 0.0
    %3870 = vmatprep.subr.mxu0 0.0
    %3871 = vmatpush1.msra.mxu0 0.0
    %3872 = vmatprep.subr.mxu0 0.0
    %3873 = vmatpush1.msra.mxu0 0.0
    %3874 = vmatprep.subr.mxu0 0.0
    %3875 = vmatpush1.msra.mxu0 0.0
    %3876 = vmatprep.subr.mxu0 0.0
    %3877 = vmatpush1.msra.mxu0 0.0
    %3878 = vmatprep.subr.mxu0 0.0
    %3879 = vmatpush1.msra.mxu0 0.0
    %3880 = vmatprep.subr.mxu0 0.0
    %3881 = vmatpush1.msra.mxu0 0.0
    %3882 = vmatprep.subr.mxu0 0.0
    %3883 = vmatpush1.msra.mxu0 0.0
    %3884 = vmatprep.subr.mxu0 0.0
    %3885 = vmatpush1.msra.mxu0 0.0
    %3886 = vmatprep.subr.mxu0 0.0
    %3887 = vmatpush1.msra.mxu0 0.0
    %3888 = vmatprep.subr.mxu0 0.0
    %3889 = vmatpush1.msra.mxu0 0.0
    %3890 = vmatprep.subr.mxu0 0.0
    %3891 = vmatpush1.msra.mxu0 0.0
    %3892 = vmatprep.subr.mxu0 0.0
    %3893 = vmatpush1.msra.mxu0 0.0
    %3894 = vmatprep.subr.mxu0 0.0
    %3895 = vmatpush1.msra.mxu0 0.0
    %3896 = vmatprep.subr.mxu0 0.0
    %3897 = vmatpush1.msra.mxu0 0.0
    %3898 = vmatprep.subr.mxu0 0.0
    %3899 = vmatpush1.msra.mxu0 0.0
    %3900 = vmatprep.subr.mxu0 0.0
    %3901 = vmatpush1.msra.mxu0 0.0
    %3902 = vmatprep.subr.mxu0 0.0
    %3903 = vmatpush1.msra.mxu0 0.0
    %3904 = vmatprep.subr.mxu0 0.0
    %3905 = vmatpush1.msra.mxu0 0.0
    %3906 = vmatprep.mubr.f32.mxu0 0.0
    %3907 = vmatmul.mubr.f32.gmra.mrb[0].mxu0 %v3840
    %v3908 = vpop.f32.mrb[0].mxu0
    %v3909 = vadd.f32 0.0, %v3908
    %v3910 = vpop.f32.mrb[0].mxu0
    %v3911 = vadd.f32 0.0, %v3910
    %3912 = vdwg.mxu0
    %v3915 = vrot.slane %v3909, 2
    %v3916 = vrot.slane %v3911, 2
    %v3919 = vadd.f32 %v3104, %v3915
    %v3920 = vadd.f32 %v3106, %v3916
    %v3921 = vxor.u32 %v3919, 2147483648
    %v3922 = vxor.u32 %v3920, 2147483648
    %v3923 = vmul.f32 %v3921, 1.442695
    %v3924 = vpow.pop %v3923
    %v3925 = vmul.f32 %v3922, 1.442695
    %v3926 = vpow.pop %v3925
    %v3927 = vadd.f32 %v3924, 1.0
    %v3928 = vadd.f32 %v3926, 1.0
    %v3929 = vrcp.pop %v3927
    %v3930 = vmul.f32 1.0, %v3929
    %v3931 = vrcp.pop %v3928
    %v3932 = vmul.f32 1.0, %v3931
    %v3933 = vtanh.pop %v3920
    %v3935 = vrot.slane %v3719, 6
    %v3937 = vmul.f32 %v3930, %v3935
    %3939 = vrot.lane.b32.xlu0 %v3933, 64
    %v3940 = vpop.permute.xlu0 %3939
    %v3942 = vmul.f32 %v3930, %v3940
    %3944 = vrot.lane.b32.xlu0 %v3942, 64
    %v3945 = vpop.permute.xlu0 %3944
    %v3947 = vadd.f32 %v3937, %v3945
    %v3948 = vtanh.pop %v3947
    %3950 = vrot.lane.b32.xlu0 %v3948, 64
    %v3951 = vpop.permute.xlu0 %3950
    %v3953 = vmul.f32 %v3932, %v3951
    %v3955 = vrot.slane %v3837, 2
    %3956 = vrot.lane.b32.xlu0 %v3955, 64
    %v3957 = vpop.permute.xlu0 %3956
    %v3959 = vsel %vm388, %v3953, %v3957
    %v3961 = vrot.slane %v3959, 6
    %3963 = vmatprep.subr.mxu0 %v3131
    %3964 = vmatpush1.msra.mxu0 %v3130
    %3965 = vmatprep.subr.mxu0 %v3133
    %3966 = vmatpush1.msra.mxu0 %v3132
    %3967 = vmatprep.subr.mxu0 %v3135
    %3968 = vmatpush1.msra.mxu0 %v3134
    %3969 = vmatprep.subr.mxu0 %v3137
    %3970 = vmatpush1.msra.mxu0 %v3136
    %3971 = vmatprep.subr.mxu0 %v3139
    %3972 = vmatpush1.msra.mxu0 %v3138
    %3973 = vmatprep.subr.mxu0 %v3141
    %3974 = vmatpush1.msra.mxu0 %v3140
    %3975 = vmatprep.subr.mxu0 %v3143
    %3976 = vmatpush1.msra.mxu0 %v3142
    %3977 = vmatprep.subr.mxu0 %v3145
    %3978 = vmatpush1.msra.mxu0 %v3144
    %3979 = vmatprep.subr.mxu0 %v3147
    %3980 = vmatpush1.msra.mxu0 %v3146
    %3981 = vmatprep.subr.mxu0 %v3149
    %3982 = vmatpush1.msra.mxu0 %v3148
    %3983 = vmatprep.subr.mxu0 %v3151
    %3984 = vmatpush1.msra.mxu0 %v3150
    %3985 = vmatprep.subr.mxu0 %v3153
    %3986 = vmatpush1.msra.mxu0 %v3152
    %3987 = vmatprep.subr.mxu0 %v3155
    %3988 = vmatpush1.msra.mxu0 %v3154
    %3989 = vmatprep.subr.mxu0 %v3157
    %3990 = vmatpush1.msra.mxu0 %v3156
    %3991 = vmatprep.subr.mxu0 %v3159
    %3992 = vmatpush1.msra.mxu0 %v3158
    %3993 = vmatprep.subr.mxu0 %v3161
    %3994 = vmatpush1.msra.mxu0 %v3160
    %3995 = vmatprep.subr.mxu0 0.0
    %3996 = vmatpush1.msra.mxu0 0.0
    %3997 = vmatprep.subr.mxu0 0.0
    %3998 = vmatpush1.msra.mxu0 0.0
    %3999 = vmatprep.subr.mxu0 0.0
    %4000 = vmatpush1.msra.mxu0 0.0
    %4001 = vmatprep.subr.mxu0 0.0
    %4002 = vmatpush1.msra.mxu0 0.0
    %4003 = vmatprep.subr.mxu0 0.0
    %4004 = vmatpush1.msra.mxu0 0.0
    %4005 = vmatprep.subr.mxu0 0.0
    %4006 = vmatpush1.msra.mxu0 0.0
    %4007 = vmatprep.subr.mxu0 0.0
    %4008 = vmatpush1.msra.mxu0 0.0
    %4009 = vmatprep.subr.mxu0 0.0
    %4010 = vmatpush1.msra.mxu0 0.0
    %4011 = vmatprep.subr.mxu0 0.0
    %4012 = vmatpush1.msra.mxu0 0.0
    %4013 = vmatprep.subr.mxu0 0.0
    %4014 = vmatpush1.msra.mxu0 0.0
    %4015 = vmatprep.subr.mxu0 0.0
    %4016 = vmatpush1.msra.mxu0 0.0
    %4017 = vmatprep.subr.mxu0 0.0
    %4018 = vmatpush1.msra.mxu0 0.0
    %4019 = vmatprep.subr.mxu0 0.0
    %4020 = vmatpush1.msra.mxu0 0.0
    %4021 = vmatprep.subr.mxu0 0.0
    %4022 = vmatpush1.msra.mxu0 0.0
    %4023 = vmatprep.subr.mxu0 0.0
    %4024 = vmatpush1.msra.mxu0 0.0
    %4025 = vmatprep.subr.mxu0 0.0
    %4026 = vmatpush1.msra.mxu0 0.0
    %4027 = vmatprep.mubr.f32.mxu0 0.0
    %4028 = vmatmul.mubr.f32.gmra.mrb[0].mxu0 %v3961
    %v4029 = vpop.f32.mrb[0].mxu0
    %v4030 = vadd.f32 0.0, %v4029
    %v4031 = vpop.f32.mrb[0].mxu0
    %v4032 = vadd.f32 0.0, %v4031
    %4033 = vdwg.mxu0
    %v4034 = vadd.f32 %v3344, %v4030
    %v4035 = vadd.f32 %v3348, %v4032
    %v4036 = vxor.u32 %v4034, 2147483648
    %v4037 = vxor.u32 %v4035, 2147483648
    %v4038 = vmul.f32 %v4036, 1.442695
    %v4039 = vpow.pop %v4038
    %v4040 = vmul.f32 %v4037, 1.442695
    %v4041 = vpow.pop %v4040
    %v4042 = vadd.f32 %v4039, 1.0
    %v4043 = vadd.f32 %v4041, 1.0
    %v4044 = vrcp.pop %v4042
    %v4045 = vmul.f32 1.0, %v4044
    %v4046 = vrcp.pop %v4043
    %v4047 = vmul.f32 1.0, %v4046
    %v4048 = vtanh.pop %v4035
    %v4049 = vmul.f32 %v4045, %v3831
    %4051 = vrot.lane.b32.xlu0 %v4048, 64
    %v4052 = vpop.permute.xlu0 %4051
    %v4054 = vmul.f32 %v4045, %v4052
    %4056 = vrot.lane.b32.xlu0 %v4054, 64
    %v4057 = vpop.permute.xlu0 %4056
    %v4059 = vadd.f32 %v4049, %v4057
    %v4060 = vtanh.pop %v4059
    %4062 = vrot.lane.b32.xlu0 %v4060, 64
    %v4063 = vpop.permute.xlu0 %4062
    %v4065 = vmul.f32 %v4047, %v4063
    %v4067 = vrot.slane %v3953, 6
    %v4068 = vsel %vm388, %v4067, 0
    %4070 = vmatprep.subr.mxu0 %v3115
    %4071 = vmatpush1.msra.mxu0 %v3114
    %4072 = vmatprep.subr.mxu0 %v3117
    %4073 = vmatpush1.msra.mxu0 %v3116
    %4074 = vmatprep.subr.mxu0 %v3119
    %4075 = vmatpush1.msra.mxu0 %v3118
    %4076 = vmatprep.subr.mxu0 %v3121
    %4077 = vmatpush1.msra.mxu0 %v3120
    %4078 = vmatprep.subr.mxu0 %v3123
    %4079 = vmatpush1.msra.mxu0 %v3122
    %4080 = vmatprep.subr.mxu0 %v3125
    %4081 = vmatpush1.msra.mxu0 %v3124
    %4082 = vmatprep.subr.mxu0 %v3127
    %4083 = vmatpush1.msra.mxu0 %v3126
    %4084 = vmatprep.subr.mxu0 %v3129
    %4085 = vmatpush1.msra.mxu0 %v3128
    %4086 = vmatprep.subr.mxu0 0.0
    %4087 = vmatpush1.msra.mxu0 0.0
    %4088 = vmatprep.subr.mxu0 0.0
    %4089 = vmatpush1.msra.mxu0 0.0
    %4090 = vmatprep.subr.mxu0 0.0
    %4091 = vmatpush1.msra.mxu0 0.0
    %4092 = vmatprep.subr.mxu0 0.0
    %4093 = vmatpush1.msra.mxu0 0.0
    %4094 = vmatprep.subr.mxu0 0.0
    %4095 = vmatpush1.msra.mxu0 0.0
    %4096 = vmatprep.subr.mxu0 0.0
    %4097 = vmatpush1.msra.mxu0 0.0
    %4098 = vmatprep.subr.mxu0 0.0
    %4099 = vmatpush1.msra.mxu0 0.0
    %4100 = vmatprep.subr.mxu0 0.0
    %4101 = vmatpush1.msra.mxu0 0.0
    %4102 = vmatprep.subr.mxu0 0.0
    %4103 = vmatpush1.msra.mxu0 0.0
    %4104 = vmatprep.subr.mxu0 0.0
    %4105 = vmatpush1.msra.mxu0 0.0
    %4106 = vmatprep.subr.mxu0 0.0
    %4107 = vmatpush1.msra.mxu0 0.0
    %4108 = vmatprep.subr.mxu0 0.0
    %4109 = vmatpush1.msra.mxu0 0.0
    %4110 = vmatprep.subr.mxu0 0.0
    %4111 = vmatpush1.msra.mxu0 0.0
    %4112 = vmatprep.subr.mxu0 0.0
    %4113 = vmatpush1.msra.mxu0 0.0
    %4114 = vmatprep.subr.mxu0 0.0
    %4115 = vmatpush1.msra.mxu0 0.0
    %4116 = vmatprep.subr.mxu0 0.0
    %4117 = vmatpush1.msra.mxu0 0.0
    %4118 = vmatprep.subr.mxu0 0.0
    %4119 = vmatpush1.msra.mxu0 0.0
    %4120 = vmatprep.subr.mxu0 0.0
    %4121 = vmatpush1.msra.mxu0 0.0
    %4122 = vmatprep.subr.mxu0 0.0
    %4123 = vmatpush1.msra.mxu0 0.0
    %4124 = vmatprep.subr.mxu0 0.0
    %4125 = vmatpush1.msra.mxu0 0.0
    %4126 = vmatprep.subr.mxu0 0.0
    %4127 = vmatpush1.msra.mxu0 0.0
    %4128 = vmatprep.subr.mxu0 0.0
    %4129 = vmatpush1.msra.mxu0 0.0
    %4130 = vmatprep.subr.mxu0 0.0
    %4131 = vmatpush1.msra.mxu0 0.0
    %4132 = vmatprep.subr.mxu0 0.0
    %4133 = vmatpush1.msra.mxu0 0.0
    %4134 = vmatprep.mubr.f32.mxu0 0.0
    %4135 = vmatmul.mubr.f32.gmra.mrb[0].mxu0 %v4068
    %v4136 = vpop.f32.mrb[0].mxu0
    %v4137 = vadd.f32 0.0, %v4136
    %v4138 = vpop.f32.mrb[0].mxu0
    %v4139 = vadd.f32 0.0, %v4138
    %4140 = vdwg.mxu0
    %v4141 = vadd.f32 %v3110, %v4137
    %v4142 = vadd.f32 %v3112, %v4139
    %v4143 = vxor.u32 %v4141, 2147483648
    %v4144 = vxor.u32 %v4142, 2147483648
    %v4145 = vmul.f32 %v4143, 1.442695
    %v4146 = vpow.pop %v4145
    %v4147 = vmul.f32 %v4144, 1.442695
    %v4148 = vpow.pop %v4147
    %v4149 = vadd.f32 %v4146, 1.0
    %v4150 = vadd.f32 %v4148, 1.0
    %v4151 = vrcp.pop %v4149
    %v4152 = vmul.f32 1.0, %v4151
    %v4153 = vrcp.pop %v4150
    %v4154 = vmul.f32 1.0, %v4153
    %v4155 = vtanh.pop %v4142
    %v4157 = vrot.slane %v3947, 6
    %v4159 = vmul.f32 %v4152, %v4157
    %4161 = vrot.lane.b32.xlu0 %v4155, 64
    %v4162 = vpop.permute.xlu0 %4161
    %v4164 = vmul.f32 %v4152, %v4162
    %4166 = vrot.lane.b32.xlu0 %v4164, 64
    %v4167 = vpop.permute.xlu0 %4166
    %v4169 = vadd.f32 %v4159, %v4167
    %v4170 = vtanh.pop %v4169
    %4172 = vrot.lane.b32.xlu0 %v4170, 64
    %v4173 = vpop.permute.xlu0 %4172
    %v4175 = vmul.f32 %v4154, %v4173
    %4177 = vrot.lane.b32.xlu0 %v4065, 64
    %v4178 = vpop.permute.xlu0 %4177
    %v4180 = vsel %vm388, %v4175, %v4178
    %4181 = vmatprep.subr.mxu0 %v3131
    %4182 = vmatpush1.msra.mxu0 %v3130
    %4183 = vmatprep.subr.mxu0 %v3133
    %4184 = vmatpush1.msra.mxu0 %v3132
    %4185 = vmatprep.subr.mxu0 %v3135
    %4186 = vmatpush1.msra.mxu0 %v3134
    %4187 = vmatprep.subr.mxu0 %v3137
    %4188 = vmatpush1.msra.mxu0 %v3136
    %4189 = vmatprep.subr.mxu0 %v3139
    %4190 = vmatpush1.msra.mxu0 %v3138
    %4191 = vmatprep.subr.mxu0 %v3141
    %4192 = vmatpush1.msra.mxu0 %v3140
    %4193 = vmatprep.subr.mxu0 %v3143
    %4194 = vmatpush1.msra.mxu0 %v3142
    %4195 = vmatprep.subr.mxu0 %v3145
    %4196 = vmatpush1.msra.mxu0 %v3144
    %4197 = vmatprep.subr.mxu0 %v3147
    %4198 = vmatpush1.msra.mxu0 %v3146
    %4199 = vmatprep.subr.mxu0 %v3149
    %4200 = vmatpush1.msra.mxu0 %v3148
    %4201 = vmatprep.subr.mxu0 %v3151
    %4202 = vmatpush1.msra.mxu0 %v3150
    %4203 = vmatprep.subr.mxu0 %v3153
    %4204 = vmatpush1.msra.mxu0 %v3152
    %4205 = vmatprep.subr.mxu0 %v3155
    %4206 = vmatpush1.msra.mxu0 %v3154
    %4207 = vmatprep.subr.mxu0 %v3157
    %4208 = vmatpush1.msra.mxu0 %v3156
    %4209 = vmatprep.subr.mxu0 %v3159
    %4210 = vmatpush1.msra.mxu0 %v3158
    %4211 = vmatprep.subr.mxu0 %v3161
    %4212 = vmatpush1.msra.mxu0 %v3160
    %4213 = vmatprep.subr.mxu0 0.0
    %4214 = vmatpush1.msra.mxu0 0.0
    %4215 = vmatprep.subr.mxu0 0.0
    %4216 = vmatpush1.msra.mxu0 0.0
    %4217 = vmatprep.subr.mxu0 0.0
    %4218 = vmatpush1.msra.mxu0 0.0
    %4219 = vmatprep.subr.mxu0 0.0
    %4220 = vmatpush1.msra.mxu0 0.0
    %4221 = vmatprep.subr.mxu0 0.0
    %4222 = vmatpush1.msra.mxu0 0.0
    %4223 = vmatprep.subr.mxu0 0.0
    %4224 = vmatpush1.msra.mxu0 0.0
    %4225 = vmatprep.subr.mxu0 0.0
    %4226 = vmatpush1.msra.mxu0 0.0
    %4227 = vmatprep.subr.mxu0 0.0
    %4228 = vmatpush1.msra.mxu0 0.0
    %4229 = vmatprep.subr.mxu0 0.0
    %4230 = vmatpush1.msra.mxu0 0.0
    %4231 = vmatprep.subr.mxu0 0.0
    %4232 = vmatpush1.msra.mxu0 0.0
    %4233 = vmatprep.subr.mxu0 0.0
    %4234 = vmatpush1.msra.mxu0 0.0
    %4235 = vmatprep.subr.mxu0 0.0
    %4236 = vmatpush1.msra.mxu0 0.0
    %4237 = vmatprep.subr.mxu0 0.0
    %4238 = vmatpush1.msra.mxu0 0.0
    %4239 = vmatprep.subr.mxu0 0.0
    %4240 = vmatpush1.msra.mxu0 0.0
    %4241 = vmatprep.subr.mxu0 0.0
    %4242 = vmatpush1.msra.mxu0 0.0
    %4243 = vmatprep.subr.mxu0 0.0
    %4244 = vmatpush1.msra.mxu0 0.0
    %4245 = vmatprep.mubr.f32.mxu0 0.0
    %4246 = vmatmul.mubr.f32.gmra.mrb[0].mxu0 %v4180
    %v4247 = vpop.f32.mrb[0].mxu0
    %v4248 = vadd.f32 0.0, %v4247
    %v4249 = vpop.f32.mrb[0].mxu0
    %v4250 = vadd.f32 0.0, %v4249
    %4251 = vdwg.mxu0
    %v4252 = vadd.f32 %v3344, %v4248
    %v4253 = vadd.f32 %v3348, %v4250
    %v4254 = vxor.u32 %v4252, 2147483648
    %v4255 = vxor.u32 %v4253, 2147483648
    %v4256 = vmul.f32 %v4254, 1.442695
    %v4257 = vpow.pop %v4256
    %v4258 = vmul.f32 %v4255, 1.442695
    %v4259 = vpow.pop %v4258
    %v4260 = vadd.f32 %v4257, 1.0
    %v4261 = vadd.f32 %v4259, 1.0
    %v4262 = vrcp.pop %v4260
    %v4263 = vmul.f32 1.0, %v4262
    %v4264 = vrcp.pop %v4261
    %v4265 = vmul.f32 1.0, %v4264
    %v4266 = vtanh.pop %v4253
    %v4267 = vmul.f32 %v4263, %v4059
    %4269 = vrot.lane.b32.xlu0 %v4266, 64
    %v4270 = vpop.permute.xlu0 %4269
    %v4272 = vmul.f32 %v4263, %v4270
    %4274 = vrot.lane.b32.xlu0 %v4272, 64
    %v4275 = vpop.permute.xlu0 %4274
    %v4277 = vadd.f32 %v4267, %v4275
    %v4278 = vtanh.pop %v4277
    %4280 = vrot.lane.b32.xlu0 %v4278, 64
    %v4281 = vpop.permute.xlu0 %4280
    %v4283 = vmul.f32 %v4265, %v4281
    %v4285 = vsel %vm388, %v4175, 0
    %4287 = vmatprep.subr.mxu0 %v3115
    %4288 = vmatpush1.msra.mxu0 %v3114
    %4289 = vmatprep.subr.mxu0 %v3117
    %4290 = vmatpush1.msra.mxu0 %v3116
    %4291 = vmatprep.subr.mxu0 %v3119
    %4292 = vmatpush1.msra.mxu0 %v3118
    %4293 = vmatprep.subr.mxu0 %v3121
    %4294 = vmatpush1.msra.mxu0 %v3120
    %4295 = vmatprep.subr.mxu0 %v3123
    %4296 = vmatpush1.msra.mxu0 %v3122
    %4297 = vmatprep.subr.mxu0 %v3125
    %4298 = vmatpush1.msra.mxu0 %v3124
    %4299 = vmatprep.subr.mxu0 %v3127
    %4300 = vmatpush1.msra.mxu0 %v3126
    %4301 = vmatprep.subr.mxu0 %v3129
    %4302 = vmatpush1.msra.mxu0 %v3128
    %4303 = vmatprep.subr.mxu0 0.0
    %4304 = vmatpush1.msra.mxu0 0.0
    %4305 = vmatprep.subr.mxu0 0.0
    %4306 = vmatpush1.msra.mxu0 0.0
    %4307 = vmatprep.subr.mxu0 0.0
    %4308 = vmatpush1.msra.mxu0 0.0
    %4309 = vmatprep.subr.mxu0 0.0
    %4310 = vmatpush1.msra.mxu0 0.0
    %4311 = vmatprep.subr.mxu0 0.0
    %4312 = vmatpush1.msra.mxu0 0.0
    %4313 = vmatprep.subr.mxu0 0.0
    %4314 = vmatpush1.msra.mxu0 0.0
    %4315 = vmatprep.subr.mxu0 0.0
    %4316 = vmatpush1.msra.mxu0 0.0
    %4317 = vmatprep.subr.mxu0 0.0
    %4318 = vmatpush1.msra.mxu0 0.0
    %4319 = vmatprep.subr.mxu0 0.0
    %4320 = vmatpush1.msra.mxu0 0.0
    %4321 = vmatprep.subr.mxu0 0.0
    %4322 = vmatpush1.msra.mxu0 0.0
    %4323 = vmatprep.subr.mxu0 0.0
    %4324 = vmatpush1.msra.mxu0 0.0
    %4325 = vmatprep.subr.mxu0 0.0
    %4326 = vmatpush1.msra.mxu0 0.0
    %4327 = vmatprep.subr.mxu0 0.0
    %4328 = vmatpush1.msra.mxu0 0.0
    %4329 = vmatprep.subr.mxu0 0.0
    %4330 = vmatpush1.msra.mxu0 0.0
    %4331 = vmatprep.subr.mxu0 0.0
    %4332 = vmatpush1.msra.mxu0 0.0
    %4333 = vmatprep.subr.mxu0 0.0
    %4334 = vmatpush1.msra.mxu0 0.0
    %4335 = vmatprep.subr.mxu0 0.0
    %4336 = vmatpush1.msra.mxu0 0.0
    %4337 = vmatprep.subr.mxu0 0.0
    %4338 = vmatpush1.msra.mxu0 0.0
    %4339 = vmatprep.subr.mxu0 0.0
    %4340 = vmatpush1.msra.mxu0 0.0
    %4341 = vmatprep.subr.mxu0 0.0
    %4342 = vmatpush1.msra.mxu0 0.0
    %4343 = vmatprep.subr.mxu0 0.0
    %4344 = vmatpush1.msra.mxu0 0.0
    %4345 = vmatprep.subr.mxu0 0.0
    %4346 = vmatpush1.msra.mxu0 0.0
    %4347 = vmatprep.subr.mxu0 0.0
    %4348 = vmatpush1.msra.mxu0 0.0
    %4349 = vmatprep.subr.mxu0 0.0
    %4350 = vmatpush1.msra.mxu0 0.0
    %4351 = vmatprep.mubr.f32.mxu0 0.0
    %4352 = vmatmul.mubr.f32.gmra.mrb[0].mxu0 %v4285
    %v4353 = vpop.f32.mrb[0].mxu0
    %v4354 = vadd.f32 0.0, %v4353
    %v4355 = vpop.f32.mrb[0].mxu0
    %v4356 = vadd.f32 0.0, %v4355
    %4357 = vdwg.mxu0
    %v4360 = vrot.slane %v4354, 6
    %v4361 = vrot.slane %v4356, 6
    %v4364 = vadd.f32 %v3110, %v4360
    %v4365 = vadd.f32 %v3112, %v4361
    %v4366 = vxor.u32 %v4364, 2147483648
    %v4367 = vxor.u32 %v4365, 2147483648
    %v4368 = vmul.f32 %v4366, 1.442695
    %v4369 = vpow.pop %v4368
    %v4370 = vmul.f32 %v4367, 1.442695
    %v4371 = vpow.pop %v4370
    %v4372 = vadd.f32 %v4369, 1.0
    %v4373 = vadd.f32 %v4371, 1.0
    %v4374 = vrcp.pop %v4372
    %v4375 = vmul.f32 1.0, %v4374
    %v4376 = vrcp.pop %v4373
    %v4377 = vmul.f32 1.0, %v4376
    %v4378 = vtanh.pop %v4365
    %v4380 = vrot.slane %v4169, 6
    %v4382 = vmul.f32 %v4375, %v4380
    %4384 = vrot.lane.b32.xlu0 %v4378, 64
    %v4385 = vpop.permute.xlu0 %4384
    %v4387 = vmul.f32 %v4375, %v4385
    %4389 = vrot.lane.b32.xlu0 %v4387, 64
    %v4390 = vpop.permute.xlu0 %4389
    %v4392 = vadd.f32 %v4382, %v4390
    %v4393 = vtanh.pop %v4392
    %4395 = vrot.lane.b32.xlu0 %v4393, 64
    %v4396 = vpop.permute.xlu0 %4395
    %v4398 = vmul.f32 %v4377, %v4396
    %v4400 = vrot.slane %v4283, 6
    %4401 = vrot.lane.b32.xlu0 %v4400, 64
    %v4402 = vpop.permute.xlu0 %4401
    %v4404 = vsel %vm388, %v4398, %v4402
    %v4406 = vrot.slane %v4404, 2
    %4408 = vmatprep.subr.mxu0 %v3131
    %4409 = vmatpush1.msra.mxu0 %v3130
    %4410 = vmatprep.subr.mxu0 %v3133
    %4411 = vmatpush1.msra.mxu0 %v3132
    %4412 = vmatprep.subr.mxu0 %v3135
    %4413 = vmatpush1.msra.mxu0 %v3134
    %4414 = vmatprep.subr.mxu0 %v3137
    %4415 = vmatpush1.msra.mxu0 %v3136
    %4416 = vmatprep.subr.mxu0 %v3139
    %4417 = vmatpush1.msra.mxu0 %v3138
    %4418 = vmatprep.subr.mxu0 %v3141
    %4419 = vmatpush1.msra.mxu0 %v3140
    %4420 = vmatprep.subr.mxu0 %v3143
    %4421 = vmatpush1.msra.mxu0 %v3142
    %4422 = vmatprep.subr.mxu0 %v3145
    %4423 = vmatpush1.msra.mxu0 %v3144
    %4424 = vmatprep.subr.mxu0 %v3147
    %4425 = vmatpush1.msra.mxu0 %v3146
    %4426 = vmatprep.subr.mxu0 %v3149
    %4427 = vmatpush1.msra.mxu0 %v3148
    %4428 = vmatprep.subr.mxu0 %v3151
    %4429 = vmatpush1.msra.mxu0 %v3150
    %4430 = vmatprep.subr.mxu0 %v3153
    %4431 = vmatpush1.msra.mxu0 %v3152
    %4432 = vmatprep.subr.mxu0 %v3155
    %4433 = vmatpush1.msra.mxu0 %v3154
    %4434 = vmatprep.subr.mxu0 %v3157
    %4435 = vmatpush1.msra.mxu0 %v3156
    %4436 = vmatprep.subr.mxu0 %v3159
    %4437 = vmatpush1.msra.mxu0 %v3158
    %4438 = vmatprep.subr.mxu0 %v3161
    %4439 = vmatpush1.msra.mxu0 %v3160
    %4440 = vmatprep.subr.mxu0 0.0
    %4441 = vmatpush1.msra.mxu0 0.0
    %4442 = vmatprep.subr.mxu0 0.0
    %4443 = vmatpush1.msra.mxu0 0.0
    %4444 = vmatprep.subr.mxu0 0.0
    %4445 = vmatpush1.msra.mxu0 0.0
    %4446 = vmatprep.subr.mxu0 0.0
    %4447 = vmatpush1.msra.mxu0 0.0
    %4448 = vmatprep.subr.mxu0 0.0
    %4449 = vmatpush1.msra.mxu0 0.0
    %4450 = vmatprep.subr.mxu0 0.0
    %4451 = vmatpush1.msra.mxu0 0.0
    %4452 = vmatprep.subr.mxu0 0.0
    %4453 = vmatpush1.msra.mxu0 0.0
    %4454 = vmatprep.subr.mxu0 0.0
    %4455 = vmatpush1.msra.mxu0 0.0
    %4456 = vmatprep.subr.mxu0 0.0
    %4457 = vmatpush1.msra.mxu0 0.0
    %4458 = vmatprep.subr.mxu0 0.0
    %4459 = vmatpush1.msra.mxu0 0.0
    %4460 = vmatprep.subr.mxu0 0.0
    %4461 = vmatpush1.msra.mxu0 0.0
    %4462 = vmatprep.subr.mxu0 0.0
    %4463 = vmatpush1.msra.mxu0 0.0
    %4464 = vmatprep.subr.mxu0 0.0
    %4465 = vmatpush1.msra.mxu0 0.0
    %4466 = vmatprep.subr.mxu0 0.0
    %4467 = vmatpush1.msra.mxu0 0.0
    %4468 = vmatprep.subr.mxu0 0.0
    %4469 = vmatpush1.msra.mxu0 0.0
    %4470 = vmatprep.subr.mxu0 0.0
    %4471 = vmatpush1.msra.mxu0 0.0
    %4472 = vmatprep.mubr.f32.mxu0 0.0
    %4473 = vmatmul.mubr.f32.gmra.mrb[0].mxu0 %v4406
    %v4474 = vpop.f32.mrb[0].mxu0
    %v4475 = vadd.f32 0.0, %v4474
    %v4476 = vpop.f32.mrb[0].mxu0
    %v4477 = vadd.f32 0.0, %v4476
    %4478 = vdwg.mxu0
    %v4479 = vadd.f32 %v3344, %v4475
    %v4480 = vadd.f32 %v3348, %v4477
    %v4481 = vxor.u32 %v4479, 2147483648
    %v4482 = vxor.u32 %v4480, 2147483648
    %v4483 = vmul.f32 %v4481, 1.442695
    %v4484 = vpow.pop %v4483
    %v4485 = vmul.f32 %v4482, 1.442695
    %v4486 = vpow.pop %v4485
    %v4487 = vadd.f32 %v4484, 1.0
    %v4488 = vadd.f32 %v4486, 1.0
    %v4489 = vrcp.pop %v4487
    %v4490 = vmul.f32 1.0, %v4489
    %v4491 = vrcp.pop %v4488
    %v4492 = vmul.f32 1.0, %v4491
    %v4493 = vtanh.pop %v4480
    %v4494 = vmul.f32 %v4490, %v4277
    %4496 = vrot.lane.b32.xlu0 %v4493, 64
    %v4497 = vpop.permute.xlu0 %4496
    %v4499 = vmul.f32 %v4490, %v4497
    %4501 = vrot.lane.b32.xlu0 %v4499, 64
    %v4502 = vpop.permute.xlu0 %4501
    %v4504 = vadd.f32 %v4494, %v4502
    %v4505 = vtanh.pop %v4504
    %4507 = vrot.lane.b32.xlu0 %v4505, 64
    %v4508 = vpop.permute.xlu0 %4507
    %v4510 = vmul.f32 %v4492, %v4508
    %v4512 = vrot.slane %v4398, 2
    %v4513 = vsel %vm388, %v4512, 0
    %4515 = vmatprep.subr.mxu0 %v3115
    %4516 = vmatpush1.msra.mxu0 %v3114
    %4517 = vmatprep.subr.mxu0 %v3117
    %4518 = vmatpush1.msra.mxu0 %v3116
    %4519 = vmatprep.subr.mxu0 %v3119
    %4520 = vmatpush1.msra.mxu0 %v3118
    %4521 = vmatprep.subr.mxu0 %v3121
    %4522 = vmatpush1.msra.mxu0 %v3120
    %4523 = vmatprep.subr.mxu0 %v3123
    %4524 = vmatpush1.msra.mxu0 %v3122
    %4525 = vmatprep.subr.mxu0 %v3125
    %4526 = vmatpush1.msra.mxu0 %v3124
    %4527 = vmatprep.subr.mxu0 %v3127
    %4528 = vmatpush1.msra.mxu0 %v3126
    %4529 = vmatprep.subr.mxu0 %v3129
    %4530 = vmatpush1.msra.mxu0 %v3128
    %4531 = vmatprep.subr.mxu0 0.0
    %4532 = vmatpush1.msra.mxu0 0.0
    %4533 = vmatprep.subr.mxu0 0.0
    %4534 = vmatpush1.msra.mxu0 0.0
    %4535 = vmatprep.subr.mxu0 0.0
    %4536 = vmatpush1.msra.mxu0 0.0
    %4537 = vmatprep.subr.mxu0 0.0
    %4538 = vmatpush1.msra.mxu0 0.0
    %4539 = vmatprep.subr.mxu0 0.0
    %4540 = vmatpush1.msra.mxu0 0.0
    %4541 = vmatprep.subr.mxu0 0.0
    %4542 = vmatpush1.msra.mxu0 0.0
    %4543 = vmatprep.subr.mxu0 0.0
    %4544 = vmatpush1.msra.mxu0 0.0
    %4545 = vmatprep.subr.mxu0 0.0
    %4546 = vmatpush1.msra.mxu0 0.0
    %4547 = vmatprep.subr.mxu0 0.0
    %4548 = vmatpush1.msra.mxu0 0.0
    %4549 = vmatprep.subr.mxu0 0.0
    %4550 = vmatpush1.msra.mxu0 0.0
    %4551 = vmatprep.subr.mxu0 0.0
    %4552 = vmatpush1.msra.mxu0 0.0
    %4553 = vmatprep.subr.mxu0 0.0
    %4554 = vmatpush1.msra.mxu0 0.0
    %4555 = vmatprep.subr.mxu0 0.0
    %4556 = vmatpush1.msra.mxu0 0.0
    %4557 = vmatprep.subr.mxu0 0.0
    %4558 = vmatpush1.msra.mxu0 0.0
    %4559 = vmatprep.subr.mxu0 0.0
    %4560 = vmatpush1.msra.mxu0 0.0
    %4561 = vmatprep.subr.mxu0 0.0
    %4562 = vmatpush1.msra.mxu0 0.0
    %4563 = vmatprep.subr.mxu0 0.0
    %4564 = vmatpush1.msra.mxu0 0.0
    %4565 = vmatprep.subr.mxu0 0.0
    %4566 = vmatpush1.msra.mxu0 0.0
    %4567 = vmatprep.subr.mxu0 0.0
    %4568 = vmatpush1.msra.mxu0 0.0
    %4569 = vmatprep.subr.mxu0 0.0
    %4570 = vmatpush1.msra.mxu0 0.0
    %4571 = vmatprep.subr.mxu0 0.0
    %4572 = vmatpush1.msra.mxu0 0.0
    %4573 = vmatprep.subr.mxu0 0.0
    %4574 = vmatpush1.msra.mxu0 0.0
    %4575 = vmatprep.subr.mxu0 0.0
    %4576 = vmatpush1.msra.mxu0 0.0
    %4577 = vmatprep.subr.mxu0 0.0
    %4578 = vmatpush1.msra.mxu0 0.0
    %4579 = vmatprep.mubr.f32.mxu0 0.0
    %4580 = vmatmul.mubr.f32.gmra.mrb[0].mxu0 %v4513
    %v4581 = vpop.f32.mrb[0].mxu0
    %v4582 = vadd.f32 0.0, %v4581
    %v4583 = vpop.f32.mrb[0].mxu0
    %v4584 = vadd.f32 0.0, %v4583
    %4585 = vdwg.mxu0
    %v4588 = vrot.slane %v4582, 4
    %v4589 = vrot.slane %v4584, 4
    %v4592 = vadd.f32 %v3110, %v4588
    %v4593 = vadd.f32 %v3112, %v4589
    %v4594 = vxor.u32 %v4592, 2147483648
    %v4595 = vxor.u32 %v4593, 2147483648
    %v4596 = vmul.f32 %v4594, 1.442695
    %v4597 = vpow.pop %v4596
    %v4598 = vmul.f32 %v4595, 1.442695
    %v4599 = vpow.pop %v4598
    %v4600 = vadd.f32 %v4597, 1.0
    %v4601 = vadd.f32 %v4599, 1.0
    %v4602 = vrcp.pop %v4600
    %v4603 = vmul.f32 1.0, %v4602
    %v4604 = vrcp.pop %v4601
    %v4605 = vmul.f32 1.0, %v4604
    %v4606 = vtanh.pop %v4593
    %v4608 = vrot.slane %v4392, 6
    %v4610 = vmul.f32 %v4603, %v4608
    %4612 = vrot.lane.b32.xlu0 %v4606, 64
    %v4613 = vpop.permute.xlu0 %4612
    %v4615 = vmul.f32 %v4603, %v4613
    %4617 = vrot.lane.b32.xlu0 %v4615, 64
    %v4618 = vpop.permute.xlu0 %4617
    %v4620 = vadd.f32 %v4610, %v4618
    %v4621 = vtanh.pop %v4620
    %4623 = vrot.lane.b32.xlu0 %v4621, 64
    %v4624 = vpop.permute.xlu0 %4623
    %v4626 = vmul.f32 %v4605, %v4624
    %v4628 = vrot.slane %v4510, 4
    %4629 = vrot.lane.b32.xlu0 %v4628, 64
    %v4630 = vpop.permute.xlu0 %4629
    %v4632 = vsel %vm388, %v4626, %v4630
    %v4634 = vrot.slane %v4632, 4
    %4636 = vmatprep.subr.mxu0 %v3131
    %4637 = vmatpush1.msra.mxu0 %v3130
    %4638 = vmatprep.subr.mxu0 %v3133
    %4639 = vmatpush1.msra.mxu0 %v3132
    %4640 = vmatprep.subr.mxu0 %v3135
    %4641 = vmatpush1.msra.mxu0 %v3134
    %4642 = vmatprep.subr.mxu0 %v3137
    %4643 = vmatpush1.msra.mxu0 %v3136
    %4644 = vmatprep.subr.mxu0 %v3139
    %4645 = vmatpush1.msra.mxu0 %v3138
    %4646 = vmatprep.subr.mxu0 %v3141
    %4647 = vmatpush1.msra.mxu0 %v3140
    %4648 = vmatprep.subr.mxu0 %v3143
    %4649 = vmatpush1.msra.mxu0 %v3142
    %4650 = vmatprep.subr.mxu0 %v3145
    %4651 = vmatpush1.msra.mxu0 %v3144
    %4652 = vmatprep.subr.mxu0 %v3147
    %4653 = vmatpush1.msra.mxu0 %v3146
    %4654 = vmatprep.subr.mxu0 %v3149
    %4655 = vmatpush1.msra.mxu0 %v3148
    %4656 = vmatprep.subr.mxu0 %v3151
    %4657 = vmatpush1.msra.mxu0 %v3150
    %4658 = vmatprep.subr.mxu0 %v3153
    %4659 = vmatpush1.msra.mxu0 %v3152
    %4660 = vmatprep.subr.mxu0 %v3155
    %4661 = vmatpush1.msra.mxu0 %v3154
    %4662 = vmatprep.subr.mxu0 %v3157
    %4663 = vmatpush1.msra.mxu0 %v3156
    %4664 = vmatprep.subr.mxu0 %v3159
    %4665 = vmatpush1.msra.mxu0 %v3158
    %4666 = vmatprep.subr.mxu0 %v3161
    %4667 = vmatpush1.msra.mxu0 %v3160
    %4668 = vmatprep.subr.mxu0 0.0
    %4669 = vmatpush1.msra.mxu0 0.0
    %4670 = vmatprep.subr.mxu0 0.0
    %4671 = vmatpush1.msra.mxu0 0.0
    %4672 = vmatprep.subr.mxu0 0.0
    %4673 = vmatpush1.msra.mxu0 0.0
    %4674 = vmatprep.subr.mxu0 0.0
    %4675 = vmatpush1.msra.mxu0 0.0
    %4676 = vmatprep.subr.mxu0 0.0
    %4677 = vmatpush1.msra.mxu0 0.0
    %4678 = vmatprep.subr.mxu0 0.0
    %4679 = vmatpush1.msra.mxu0 0.0
    %4680 = vmatprep.subr.mxu0 0.0
    %4681 = vmatpush1.msra.mxu0 0.0
    %4682 = vmatprep.subr.mxu0 0.0
    %4683 = vmatpush1.msra.mxu0 0.0
    %4684 = vmatprep.subr.mxu0 0.0
    %4685 = vmatpush1.msra.mxu0 0.0
    %4686 = vmatprep.subr.mxu0 0.0
    %4687 = vmatpush1.msra.mxu0 0.0
    %4688 = vmatprep.subr.mxu0 0.0
    %4689 = vmatpush1.msra.mxu0 0.0
    %4690 = vmatprep.subr.mxu0 0.0
    %4691 = vmatpush1.msra.mxu0 0.0
    %4692 = vmatprep.subr.mxu0 0.0
    %4693 = vmatpush1.msra.mxu0 0.0
    %4694 = vmatprep.subr.mxu0 0.0
    %4695 = vmatpush1.msra.mxu0 0.0
    %4696 = vmatprep.subr.mxu0 0.0
    %4697 = vmatpush1.msra.mxu0 0.0
    %4698 = vmatprep.subr.mxu0 0.0
    %4699 = vmatpush1.msra.mxu0 0.0
    %4700 = vmatprep.mubr.f32.mxu0 0.0
    %4701 = vmatmul.mubr.f32.gmra.mrb[0].mxu0 %v4634
    %v4702 = vpop.f32.mrb[0].mxu0
    %v4703 = vadd.f32 0.0, %v4702
    %v4704 = vpop.f32.mrb[0].mxu0
    %v4705 = vadd.f32 0.0, %v4704
    %4706 = vdwg.mxu0
    %v4707 = vadd.f32 %v3344, %v4703
    %v4708 = vadd.f32 %v3348, %v4705
    %v4709 = vxor.u32 %v4707, 2147483648
    %v4710 = vxor.u32 %v4708, 2147483648
    %v4711 = vmul.f32 %v4709, 1.442695
    %v4712 = vpow.pop %v4711
    %v4713 = vmul.f32 %v4710, 1.442695
    %v4714 = vpow.pop %v4713
    %v4715 = vadd.f32 %v4712, 1.0
    %v4716 = vadd.f32 %v4714, 1.0
    %v4717 = vrcp.pop %v4715
    %v4718 = vmul.f32 1.0, %v4717
    %v4719 = vrcp.pop %v4716
    %v4720 = vmul.f32 1.0, %v4719
    %v4721 = vtanh.pop %v4708
    %v4722 = vmul.f32 %v4718, %v4504
    %4724 = vrot.lane.b32.xlu0 %v4721, 64
    %v4725 = vpop.permute.xlu0 %4724
    %v4727 = vmul.f32 %v4718, %v4725
    %4729 = vrot.lane.b32.xlu0 %v4727, 64
    %v4730 = vpop.permute.xlu0 %4729
    %v4732 = vadd.f32 %v4722, %v4730
    %v4733 = vtanh.pop %v4732
    %4735 = vrot.lane.b32.xlu0 %v4733, 64
    %v4736 = vpop.permute.xlu0 %4735
    %v4738 = vmul.f32 %v4720, %v4736
    %v4740 = vrot.slane %v4626, 4
    %v4741 = vsel %vm388, %v4740, 0
    %4743 = vmatprep.subr.mxu0 %v3115
    %4744 = vmatpush1.msra.mxu0 %v3114
    %4745 = vmatprep.subr.mxu0 %v3117
    %4746 = vmatpush1.msra.mxu0 %v3116
    %4747 = vmatprep.subr.mxu0 %v3119
    %4748 = vmatpush1.msra.mxu0 %v3118
    %4749 = vmatprep.subr.mxu0 %v3121
    %4750 = vmatpush1.msra.mxu0 %v3120
    %4751 = vmatprep.subr.mxu0 %v3123
    %4752 = vmatpush1.msra.mxu0 %v3122
    %4753 = vmatprep.subr.mxu0 %v3125
    %4754 = vmatpush1.msra.mxu0 %v3124
    %4755 = vmatprep.subr.mxu0 %v3127
    %4756 = vmatpush1.msra.mxu0 %v3126
    %4757 = vmatprep.subr.mxu0 %v3129
    %4758 = vmatpush1.msra.mxu0 %v3128
    %4759 = vmatprep.subr.mxu0 0.0
    %4760 = vmatpush1.msra.mxu0 0.0
    %4761 = vmatprep.subr.mxu0 0.0
    %4762 = vmatpush1.msra.mxu0 0.0
    %4763 = vmatprep.subr.mxu0 0.0
    %4764 = vmatpush1.msra.mxu0 0.0
    %4765 = vmatprep.subr.mxu0 0.0
    %4766 = vmatpush1.msra.mxu0 0.0
    %4767 = vmatprep.subr.mxu0 0.0
    %4768 = vmatpush1.msra.mxu0 0.0
    %4769 = vmatprep.subr.mxu0 0.0
    %4770 = vmatpush1.msra.mxu0 0.0
    %4771 = vmatprep.subr.mxu0 0.0
    %4772 = vmatpush1.msra.mxu0 0.0
    %4773 = vmatprep.subr.mxu0 0.0
    %4774 = vmatpush1.msra.mxu0 0.0
    %4775 = vmatprep.subr.mxu0 0.0
    %4776 = vmatpush1.msra.mxu0 0.0
    %4777 = vmatprep.subr.mxu0 0.0
    %4778 = vmatpush1.msra.mxu0 0.0
    %4779 = vmatprep.subr.mxu0 0.0
    %4780 = vmatpush1.msra.mxu0 0.0
    %4781 = vmatprep.subr.mxu0 0.0
    %4782 = vmatpush1.msra.mxu0 0.0
    %4783 = vmatprep.subr.mxu0 0.0
    %4784 = vmatpush1.msra.mxu0 0.0
    %4785 = vmatprep.subr.mxu0 0.0
    %4786 = vmatpush1.msra.mxu0 0.0
    %4787 = vmatprep.subr.mxu0 0.0
    %4788 = vmatpush1.msra.mxu0 0.0
    %4789 = vmatprep.subr.mxu0 0.0
    %4790 = vmatpush1.msra.mxu0 0.0
    %4791 = vmatprep.subr.mxu0 0.0
    %4792 = vmatpush1.msra.mxu0 0.0
    %4793 = vmatprep.subr.mxu0 0.0
    %4794 = vmatpush1.msra.mxu0 0.0
    %4795 = vmatprep.subr.mxu0 0.0
    %4796 = vmatpush1.msra.mxu0 0.0
    %4797 = vmatprep.subr.mxu0 0.0
    %4798 = vmatpush1.msra.mxu0 0.0
    %4799 = vmatprep.subr.mxu0 0.0
    %4800 = vmatpush1.msra.mxu0 0.0
    %4801 = vmatprep.subr.mxu0 0.0
    %4802 = vmatpush1.msra.mxu0 0.0
    %4803 = vmatprep.subr.mxu0 0.0
    %4804 = vmatpush1.msra.mxu0 0.0
    %4805 = vmatprep.subr.mxu0 0.0
    %4806 = vmatpush1.msra.mxu0 0.0
    %4807 = vmatprep.mubr.f32.mxu0 0.0
    %4808 = vmatmul.mubr.f32.gmra.mrb[0].mxu0 %v4741
    %v4809 = vpop.f32.mrb[0].mxu0
    %v4810 = vadd.f32 0.0, %v4809
    %v4811 = vpop.f32.mrb[0].mxu0
    %v4812 = vadd.f32 0.0, %v4811
    %4813 = vdwg.mxu0
    %v4816 = vrot.slane %v4810, 2
    %v4817 = vrot.slane %v4812, 2
    %v4820 = vadd.f32 %v3110, %v4816
    %v4821 = vadd.f32 %v3112, %v4817
    %v4822 = vxor.u32 %v4820, 2147483648
    %v4823 = vxor.u32 %v4821, 2147483648
    %v4824 = vmul.f32 %v4822, 1.442695
    %v4825 = vpow.pop %v4824
    %v4826 = vmul.f32 %v4823, 1.442695
    %v4827 = vpow.pop %v4826
    %v4828 = vadd.f32 %v4825, 1.0
    %v4829 = vadd.f32 %v4827, 1.0
    %v4830 = vrcp.pop %v4828
    %v4831 = vmul.f32 1.0, %v4830
    %v4832 = vrcp.pop %v4829
    %v4833 = vmul.f32 1.0, %v4832
    %v4834 = vtanh.pop %v4821
    %v4836 = vrot.slane %v4620, 6
    %v4838 = vmul.f32 %v4831, %v4836
    %4840 = vrot.lane.b32.xlu0 %v4834, 64
    %v4841 = vpop.permute.xlu0 %4840
    %v4843 = vmul.f32 %v4831, %v4841
    %4845 = vrot.lane.b32.xlu0 %v4843, 64
    %v4846 = vpop.permute.xlu0 %4845
    %v4848 = vadd.f32 %v4838, %v4846
    %v4849 = vtanh.pop %v4848
    %4851 = vrot.lane.b32.xlu0 %v4849, 64
    %v4852 = vpop.permute.xlu0 %4851
    %v4854 = vmul.f32 %v4833, %v4852
    %v4856 = vrot.slane %v4738, 2
    %4857 = vrot.lane.b32.xlu0 %v4856, 64
    %v4858 = vpop.permute.xlu0 %4857
    %v4860 = vsel %vm388, %v4854, %v4858
    %v4862 = vrot.slane %v4860, 6
    %4864 = vmatprep.subr.mxu0 %v3131
    %4865 = vmatpush1.msra.mxu0 %v3130
    %4866 = vmatprep.subr.mxu0 %v3133
    %4867 = vmatpush1.msra.mxu0 %v3132
    %4868 = vmatprep.subr.mxu0 %v3135
    %4869 = vmatpush1.msra.mxu0 %v3134
    %4870 = vmatprep.subr.mxu0 %v3137
    %4871 = vmatpush1.msra.mxu0 %v3136
    %4872 = vmatprep.subr.mxu0 %v3139
    %4873 = vmatpush1.msra.mxu0 %v3138
    %4874 = vmatprep.subr.mxu0 %v3141
    %4875 = vmatpush1.msra.mxu0 %v3140
    %4876 = vmatprep.subr.mxu0 %v3143
    %4877 = vmatpush1.msra.mxu0 %v3142
    %4878 = vmatprep.subr.mxu0 %v3145
    %4879 = vmatpush1.msra.mxu0 %v3144
    %4880 = vmatprep.subr.mxu0 %v3147
    %4881 = vmatpush1.msra.mxu0 %v3146
    %4882 = vmatprep.subr.mxu0 %v3149
    %4883 = vmatpush1.msra.mxu0 %v3148
    %4884 = vmatprep.subr.mxu0 %v3151
    %4885 = vmatpush1.msra.mxu0 %v3150
    %4886 = vmatprep.subr.mxu0 %v3153
    %4887 = vmatpush1.msra.mxu0 %v3152
    %4888 = vmatprep.subr.mxu0 %v3155
    %4889 = vmatpush1.msra.mxu0 %v3154
    %4890 = vmatprep.subr.mxu0 %v3157
    %4891 = vmatpush1.msra.mxu0 %v3156
    %4892 = vmatprep.subr.mxu0 %v3159
    %4893 = vmatpush1.msra.mxu0 %v3158
    %4894 = vmatprep.subr.mxu0 %v3161
    %4895 = vmatpush1.msra.mxu0 %v3160
    %4896 = vmatprep.subr.mxu0 0.0
    %4897 = vmatpush1.msra.mxu0 0.0
    %4898 = vmatprep.subr.mxu0 0.0
    %4899 = vmatpush1.msra.mxu0 0.0
    %4900 = vmatprep.subr.mxu0 0.0
    %4901 = vmatpush1.msra.mxu0 0.0
    %4902 = vmatprep.subr.mxu0 0.0
    %4903 = vmatpush1.msra.mxu0 0.0
    %4904 = vmatprep.subr.mxu0 0.0
    %4905 = vmatpush1.msra.mxu0 0.0
    %4906 = vmatprep.subr.mxu0 0.0
    %4907 = vmatpush1.msra.mxu0 0.0
    %4908 = vmatprep.subr.mxu0 0.0
    %4909 = vmatpush1.msra.mxu0 0.0
    %4910 = vmatprep.subr.mxu0 0.0
    %4911 = vmatpush1.msra.mxu0 0.0
    %4912 = vmatprep.subr.mxu0 0.0
    %4913 = vmatpush1.msra.mxu0 0.0
    %4914 = vmatprep.subr.mxu0 0.0
    %4915 = vmatpush1.msra.mxu0 0.0
    %4916 = vmatprep.subr.mxu0 0.0
    %4917 = vmatpush1.msra.mxu0 0.0
    %4918 = vmatprep.subr.mxu0 0.0
    %4919 = vmatpush1.msra.mxu0 0.0
    %4920 = vmatprep.subr.mxu0 0.0
    %4921 = vmatpush1.msra.mxu0 0.0
    %4922 = vmatprep.subr.mxu0 0.0
    %4923 = vmatpush1.msra.mxu0 0.0
    %4924 = vmatprep.subr.mxu0 0.0
    %4925 = vmatpush1.msra.mxu0 0.0
    %4926 = vmatprep.subr.mxu0 0.0
    %4927 = vmatpush1.msra.mxu0 0.0
    %4928 = vmatprep.mubr.f32.mxu0 0.0
    %4929 = vmatmul.mubr.f32.gmra.mrb[0].mxu0 %v4862
    %v4930 = vpop.f32.mrb[0].mxu0
    %v4931 = vadd.f32 0.0, %v4930
    %v4932 = vpop.f32.mrb[0].mxu0
    %v4933 = vadd.f32 0.0, %v4932
    %4934 = vdwg.mxu0
    %v4935 = vadd.f32 %v3344, %v4931
    %v4936 = vadd.f32 %v3348, %v4933
    %v4937 = vxor.u32 %v4935, 2147483648
    %v4938 = vxor.u32 %v4936, 2147483648
    %v4939 = vmul.f32 %v4937, 1.442695
    %v4940 = vpow.pop %v4939
    %v4941 = vmul.f32 %v4938, 1.442695
    %v4942 = vpow.pop %v4941
    %v4943 = vadd.f32 %v4940, 1.0
    %v4944 = vadd.f32 %v4942, 1.0
    %v4945 = vrcp.pop %v4943
    %v4946 = vmul.f32 1.0, %v4945
    %v4947 = vrcp.pop %v4944
    %v4948 = vmul.f32 1.0, %v4947
    %v4949 = vtanh.pop %v4936
    %v4950 = vmul.f32 %v4946, %v4732
    %4952 = vrot.lane.b32.xlu0 %v4949, 64
    %v4953 = vpop.permute.xlu0 %4952
    %v4955 = vmul.f32 %v4946, %v4953
    %4957 = vrot.lane.b32.xlu0 %v4955, 64
    %v4958 = vpop.permute.xlu0 %4957
    %v4960 = vadd.f32 %v4950, %v4958
    %v4961 = vtanh.pop %v4960
    %4963 = vrot.lane.b32.xlu0 %v4961, 64
    %v4964 = vpop.permute.xlu0 %4963
    %v4966 = vmul.f32 %v4948, %v4964
    %v4967 = vmax.f32 %v4966, 0.0
    %v4968 = vld [vmem:[%s15] sm:$0xff]
    %v4969 = vld [vmem:[%s15 + $0x8] sm:$0xff]
    %v4970 = vld [vmem:[%s15 + $0x10] sm:$0xff]
    %v4971 = vld [vmem:[%s15 + $0x18] sm:$0xff]
    %v4972 = vld [vmem:[%s15 + $0x20] sm:$0xff]
    %v4973 = vld [vmem:[%s15 + $0x28] sm:$0xff]
    %v4974 = vld [vmem:[%s15 + $0x30] sm:$0xff]
    %v4975 = vld [vmem:[%s15 + $0x38] sm:$0xff]
    %v4976 = vld [vmem:[#allocation2] sm:$0x1]
    %v4978 = vlaneseq
    %v4979 = vshrl.u32 %v4978, 7
    %v4980 = vsub.s32 0, %v4979
    %v4981 = vrot.slane %v4976, %v4980
    %v4984 = vsel %vm388, %v4967, 0
    %4986 = vmatprep.subr.mxu0 0.0
    %4987 = vmatpush1.msra.mxu0 %v4968
    %4988 = vmatprep.subr.mxu0 0.0
    %4989 = vmatpush1.msra.mxu0 %v4969
    %4990 = vmatprep.subr.mxu0 0.0
    %4991 = vmatpush1.msra.mxu0 %v4970
    %4992 = vmatprep.subr.mxu0 0.0
    %4993 = vmatpush1.msra.mxu0 %v4971
    %4994 = vmatprep.subr.mxu0 0.0
    %4995 = vmatpush1.msra.mxu0 %v4972
    %4996 = vmatprep.subr.mxu0 0.0
    %4997 = vmatpush1.msra.mxu0 %v4973
    %4998 = vmatprep.subr.mxu0 0.0
    %4999 = vmatpush1.msra.mxu0 %v4974
    %5000 = vmatprep.subr.mxu0 0.0
    %5001 = vmatpush1.msra.mxu0 %v4975
    %5002 = vmatprep.subr.mxu0 0.0
    %5003 = vmatpush1.msra.mxu0 0.0
    %5004 = vmatprep.subr.mxu0 0.0
    %5005 = vmatpush1.msra.mxu0 0.0
    %5006 = vmatprep.subr.mxu0 0.0
    %5007 = vmatpush1.msra.mxu0 0.0
    %5008 = vmatprep.subr.mxu0 0.0
    %5009 = vmatpush1.msra.mxu0 0.0
    %5010 = vmatprep.subr.mxu0 0.0
    %5011 = vmatpush1.msra.mxu0 0.0
    %5012 = vmatprep.subr.mxu0 0.0
    %5013 = vmatpush1.msra.mxu0 0.0
    %5014 = vmatprep.subr.mxu0 0.0
    %5015 = vmatpush1.msra.mxu0 0.0
    %5016 = vmatprep.subr.mxu0 0.0
    %5017 = vmatpush1.msra.mxu0 0.0
    %5018 = vmatprep.subr.mxu0 0.0
    %5019 = vmatpush1.msra.mxu0 0.0
    %5020 = vmatprep.subr.mxu0 0.0
    %5021 = vmatpush1.msra.mxu0 0.0
    %5022 = vmatprep.subr.mxu0 0.0
    %5023 = vmatpush1.msra.mxu0 0.0
    %5024 = vmatprep.subr.mxu0 0.0
    %5025 = vmatpush1.msra.mxu0 0.0
    %5026 = vmatprep.subr.mxu0 0.0
    %5027 = vmatpush1.msra.mxu0 0.0
    %5028 = vmatprep.subr.mxu0 0.0
    %5029 = vmatpush1.msra.mxu0 0.0
    %5030 = vmatprep.subr.mxu0 0.0
    %5031 = vmatpush1.msra.mxu0 0.0
    %5032 = vmatprep.subr.mxu0 0.0
    %5033 = vmatpush1.msra.mxu0 0.0
    %5034 = vmatprep.subr.mxu0 0.0
    %5035 = vmatpush1.msra.mxu0 0.0
    %5036 = vmatprep.subr.mxu0 0.0
    %5037 = vmatpush1.msra.mxu0 0.0
    %5038 = vmatprep.subr.mxu0 0.0
    %5039 = vmatpush1.msra.mxu0 0.0
    %5040 = vmatprep.subr.mxu0 0.0
    %5041 = vmatpush1.msra.mxu0 0.0
    %5042 = vmatprep.subr.mxu0 0.0
    %5043 = vmatpush1.msra.mxu0 0.0
    %5044 = vmatprep.subr.mxu0 0.0
    %5045 = vmatpush1.msra.mxu0 0.0
    %5046 = vmatprep.subr.mxu0 0.0
    %5047 = vmatpush1.msra.mxu0 0.0
    %5048 = vmatprep.subr.mxu0 0.0
    %5049 = vmatpush1.msra.mxu0 0.0
    %5050 = vmatprep.mubr.f32.mxu0 0.0
    %5051 = vmatmul.mubr.f32.gmra.mrb[0].mxu0 %v4984
    %v5052 = vpop.f32.mrb[0].mxu0
    %v5053 = vadd.f32 %v4981, %v5052
    %v5054 = vpop.f32.mrb[0].mxu0
    %5055 = vdwg.mxu0
    %vm5056 = vcmask 1024
    %5057 = vst.msk [vmem:[%s17] sm:$0x3] %vm5056, %v5053
    // Predicated region
    $region110: #{tpu_custom_call.1} parent=1 // pred_check
      _
    $region111: #{tpu_custom_call.1} parent=1 // pred_check_branch
      %5059 = sbr.rel (0) target = $region113
    $region112: #{tpu_custom_call.1} parent=1 // pred_region
      _
    $region113: #{tpu_custom_call.1} parent=1 // pred_fallthru
      _
    // Predicated region
    $region114: #{tpu_custom_call.1} parent=1 // pred_check
      _
    $region115: #{tpu_custom_call.1} parent=1 // pred_check_branch
      %5061 = sbr.rel (0) target = $region117
    $region116: #{tpu_custom_call.1} parent=1 // pred_region
      _
    $region117: #{tpu_custom_call.1} parent=1 // pred_fallthru
      _
    %5062 = vsyncpa [#allocation4], 1
    %5063 = vsyncpa [#allocation6], 1
    %5064 = vsyncpa [#allocation9], 1
    %5065 = vsyncpa [#allocation12], 1
    %5066 = vsyncpa [#allocation15], 1
    %5067 = vsyncpa [#allocation18], 1

</llo_original>
